<compile_context>
chip_gen: v7x
topology: tpu7x:2x2x1
jax: 0.10.0
libtpu: 0.0.40
codegen_flags: <defaults>
</compile_context>

<pallas_src>
import functools

import jax
import jax.numpy as jnp
import numpy as np
from jax.experimental import pallas as pl
from jax.experimental.pallas import tpu as pltpu


# ----------------------------------------------------------------------------
# Pallas kernel: tiled matmul (bf16 in, f32 acc) + per-column affine (+ ReLU)
# ----------------------------------------------------------------------------
def _matmul_affine_kernel(x_ref, w_ref, scale_ref, bias_ref, o_ref, acc_ref, *,
                          apply_relu):
    @pl.when(pl.program_id(1) == 0)
    def _():
        acc_ref[...] = jnp.zeros_like(acc_ref)

    acc_ref[...] += jnp.dot(x_ref[...], w_ref[...],
                            preferred_element_type=jnp.float32)

    @pl.when(pl.program_id(1) == pl.num_programs(1) - 1)
    def _():
        y = acc_ref[...] * scale_ref[...] + bias_ref[...]
        if apply_relu:
            y = jnp.maximum(y, 0.0)
        o_ref[...] = y.astype(o_ref.dtype)


def _pick_tile(dim, target, align):
    """Largest multiple of `align` that divides `dim` and is <= target (else dim)."""
    if dim <= target:
        return dim
    t = (target // align) * align
    while t >= align:
        if dim % t == 0:
            return t
        t -= align
    return dim


def matmul_affine(x, w, scale, bias, apply_relu, out_dtype=jnp.bfloat16):
    """(M,K) @ (K,N) in bf16 on the MXU (f32 accumulation), then per-column
    scale/bias and optional ReLU, all inside one Pallas kernel."""
    M, K = x.shape
    K2, N = w.shape
    assert K == K2
    # M tiles divide M exactly (no padded copy); >=2 tiles when possible (megacore).
    tm = _pick_tile(M, min(512, max(8, M // 2)), 8)
    tk = _pick_tile(K, 1024, 128)
    nm, nk = M // tm, K // tk

    out = pl.pallas_call(
        functools.partial(_matmul_affine_kernel, apply_relu=apply_relu),
        out_shape=jax.ShapeDtypeStruct((M, N), out_dtype),
        grid_spec=pltpu.PrefetchScalarGridSpec(
            num_scalar_prefetch=0,
            grid=(nm, nk),
            in_specs=[
                pl.BlockSpec((tm, tk), lambda i, k: (i, k)),
                pl.BlockSpec((tk, N), lambda i, k: (k, 0)),
                pl.BlockSpec((1, N), lambda i, k: (0, 0)),
                pl.BlockSpec((1, N), lambda i, k: (0, 0)),
            ],
            out_specs=pl.BlockSpec((tm, N), lambda i, k: (i, 0)),
            scratch_shapes=[pltpu.VMEM((tm, N), jnp.float32)],
        ),
        compiler_params=pltpu.CompilerParams(
            dimension_semantics=("parallel", "arbitrary"),
            vmem_limit_bytes=48 * 1024 * 1024,
        ),
    )(
        x.astype(jnp.bfloat16),
        w.astype(jnp.bfloat16),
        scale.reshape(1, N).astype(jnp.float32),
        bias.reshape(1, N).astype(jnp.float32),
    )
    return out


# ----------------------------------------------------------------------------
# ConvTranspose2d(k=4, s=2, p=1, bias=False) via sub-pixel phase decomposition
# ----------------------------------------------------------------------------
# y[n, 2a+rh, 2b+rc, co] = sum_{dh,dw in {0,1}, ci}
#     x_pad[n, a+rh+dh, b+rc+dw, ci] * w[ci, co, 3-rh-2dh, 3-rc-2dw]
# All four phases are read from the shared 3x3 window of the 1-padded input, so a
# single matmul with K = 9*Ci and N = 4*Co (columns ordered (rh, rc, co)) covers
# the whole layer; a pixel shuffle interleaves the phases back into 2H x 2W.
def _phase_weight(w):
    """PyTorch ConvTranspose2d weight (Ci, Co, 4, 4) -> stacked (9*Ci, 4*Co)."""
    ci, co = w.shape[0], w.shape[1]
    wall = jnp.zeros((3, 3, ci, 2, 2, co), w.dtype)
    for rh in range(2):
        for rc in range(2):
            for dhp in range(2):
                for dwp in range(2):
                    kh = 3 - rh - 2 * dhp
                    kw = 3 - rc - 2 * dwp
                    wall = wall.at[rh + dhp, rc + dwp, :, rh, rc, :].set(w[:, :, kh, kw])
    return wall.reshape(9 * ci, 4 * co)


def conv_transpose_phase(x, w, scale_c, bias_c, apply_relu, out_dtype):
    """x: (N, H, W, Ci) NHWC; w: (Ci, Co, 4, 4). Returns (N, 2H, 2W, Co) NHWC."""
    n, h, wd, ci = x.shape
    co = w.shape[1]
    xp = jnp.pad(x, ((0, 0), (1, 1), (1, 1), (0, 0)))
    # 3x3 stencil gather along the channel axis (no transposes, stays NHWC).
    cols = jnp.concatenate(
        [xp[:, dh:dh + h, dw:dw + wd, :] for dh in range(3) for dw in range(3)],
        axis=-1)
    xmat = cols.reshape(n * h * wd, 9 * ci)

    wall = _phase_weight(w)                      # (9*Ci, 4*Co), cols = (rh, rc, co)
    scale_cols = jnp.tile(scale_c, 4)
    bias_cols = jnp.tile(bias_c, 4)

    ymat = matmul_affine(xmat, wall, scale_cols, bias_cols, apply_relu, out_dtype)

    # Pixel shuffle: (n, h, w, rh, rc, co) -> (n, 2h, 2w, co)
    y = ymat.reshape(n, h, wd, 2, 2, co).transpose(0, 1, 3, 2, 4, 5)
    return y.reshape(n, 2 * h, 2 * wd, co)


def bn_affine(gamma, beta, mean, var, eps=1e-5):
    inv = gamma / jnp.sqrt(var + eps)
    return inv, beta - mean * inv


# ----------------------------------------------------------------------------
# Parameter init (deterministic, synthetic) and forward pass
# ----------------------------------------------------------------------------
def init_decoder_params(key, input_shape=(32, 32), latent_dim=32, channel=64,
                        kernel_size=4, stride=2, padding=1):
    shape = np.array(input_shape)
    for _ in range(5):  # 1 + 4 in the PyTorch __init__
        shape = np.floor((shape + 2 * padding - kernel_size) / stride).astype(int) + 1
    out_features = int(channel * shape.prod())

    chans = [channel, channel // 2, channel // 4, channel // 8, channel // 16, 3]
    keys = jax.random.split(key, 32)
    ki = iter(range(32))

    def winit(k_, shp, fan_in):
        return (jax.random.normal(k_, shp, jnp.float32) / np.sqrt(fan_in)).astype(jnp.float32)

    params = {
        "fc_w": winit(keys[next(ki)], (out_features, latent_dim), latent_dim),
        "fc_b": 0.01 * jax.random.normal(keys[next(ki)], (out_features,), jnp.float32),
    }
    bn_dims = [channel, channel // 2, channel // 4, channel // 8, channel // 16]
    for i, c in enumerate(bn_dims, start=1):
        params[f"bn{i}_g"] = 1.0 + 0.1 * jax.random.normal(keys[next(ki)], (c,), jnp.float32)
        params[f"bn{i}_b"] = 0.1 * jax.random.normal(keys[next(ki)], (c,), jnp.float32)
        params[f"bn{i}_m"] = 0.1 * jax.random.normal(keys[next(ki)], (c,), jnp.float32)
        params[f"bn{i}_v"] = 0.5 + jnp.abs(jax.random.normal(keys[next(ki)], (c,), jnp.float32))
    for i in range(2, 7):  # tp_conv2..tp_conv6, (Ci, Co, k, k), bias=False
        ci_, co_ = chans[i - 2], chans[i - 1]
        params[f"w{i}"] = winit(keys[next(ki)], (ci_, co_, kernel_size, kernel_size),
                                ci_ * kernel_size * kernel_size)
    return params, tuple(int(v) for v in shape), chans


def decoder_forward(latent, params, channel, shape):
    n = latent.shape[0]
    sh, sw = shape

    # fc -> view(N, C, sh, sw) -> bn1 -> relu, fused in one Pallas matmul.
    # fc weight columns are permuted so the matmul directly emits NHWC ordering.
    a1, c1 = bn_affine(params["bn1_g"], params["bn1_b"], params["bn1_m"], params["bn1_v"])
    wmat = (params["fc_w"].T
            .reshape(-1, channel, sh, sw).transpose(0, 2, 3, 1)
            .reshape(-1, sh * sw * channel))
    bvec = params["fc_b"].reshape(channel, sh, sw).transpose(1, 2, 0).reshape(-1)
    scale_cols = jnp.tile(a1, sh * sw)
    bias_cols = bvec * scale_cols + jnp.tile(c1, sh * sw)
    h = matmul_affine(latent, wmat, scale_cols, bias_cols, apply_relu=True,
                      out_dtype=jnp.bfloat16)
    h = h.reshape(n, sh, sw, channel)                       # NHWC

    for i in range(2, 6):  # tp_conv2..tp_conv5, each followed by bn + relu
        a, c = bn_affine(params[f"bn{i}_g"], params[f"bn{i}_b"],
                         params[f"bn{i}_m"], params[f"bn{i}_v"])
        h = conv_transpose_phase(h, params[f"w{i}"], a, c, apply_relu=True,
                                 out_dtype=jnp.bfloat16)

    # final tp_conv6: no BN, no ReLU, f32 output
    co = params["w6"].shape[1]
    h = conv_transpose_phase(h, params["w6"], jnp.ones((co,), jnp.float32),
                             jnp.zeros((co,), jnp.float32), apply_relu=False,
                             out_dtype=jnp.float32)
    return h.transpose(0, 3, 1, 2)                          # NHWC -> NCHW


# ----------------------------------------------------------------------------
# Pure-JAX f32 reference (for correctness check)
# ----------------------------------------------------------------------------
def _ref_conv_transpose(x, w, k=4, s=2, p=1):
    # x: (N, Ci, H, W); w: (Ci, Co, k, k) in PyTorch ConvTranspose2d layout.
    w_conv = jnp.flip(w, (2, 3)).transpose(1, 0, 2, 3)      # (Co, Ci, k, k)
    return jax.lax.conv_general_dilated(
        x, w_conv, window_strides=(1, 1),
        padding=[(k - 1 - p, k - 1 - p)] * 2,
        lhs_dilation=(s, s),
        dimension_numbers=("NCHW", "OIHW", "NCHW"))


def decoder_forward_ref(latent, params, channel, shape):
    n = latent.shape[0]
    sh, sw = shape

    def bn(x, i):
        g, b, m, v = (params[f"bn{i}_{t}"] for t in ("g", "b", "m", "v"))
        inv = g / jnp.sqrt(v + 1e-5)
        return (x - m[None, :, None, None]) * inv[None, :, None, None] + b[None, :, None, None]

    h = latent @ params["fc_w"].T + params["fc_b"]
    h = h.reshape(n, channel, sh, sw)
    h = jax.nn.relu(bn(h, 1))
    for i in range(2, 6):
        h = _ref_conv_transpose(h, params[f"w{i}"])
        h = jax.nn.relu(bn(h, i))
    return _ref_conv_transpose(h, params["w6"])


if __name__ == "__main__":
    key = jax.random.PRNGKey(0)
    pkey, lkey = jax.random.split(key)

    input_shape = (32, 32)   # CIFAR-like spatial size -> 5 downsamples -> (1, 1)
    latent_dim = 32
    channel = 64             # small stand-in for the default 512
    batch = 2

    params, shape, _ = init_decoder_params(
        pkey, input_shape=input_shape, latent_dim=latent_dim, channel=channel)
    latent = jax.random.normal(lkey, (batch, latent_dim), jnp.float32)

    fwd = jax.jit(decoder_forward, static_argnums=(2, 3))
    out = jax.block_until_ready(fwd(latent, params, channel, shape))

    assert out.shape == (batch, 3, input_shape[0], input_shape[1]), out.shape
    assert bool(jnp.all(jnp.isfinite(out)))

    ref = jax.block_until_ready(decoder_forward_ref(latent, params, channel, shape))
    rel_err = float(jnp.max(jnp.abs(out - ref)) / (jnp.max(jnp.abs(ref)) + 1e-6))
    assert rel_err < 0.08, f"mismatch vs reference: rel-max err {rel_err:.4f}"
    print("KERNEL_OK")
</pallas_src>

<mosaic_0001>
module attributes {stable_mosaic.version = 11 : i64} {
  func.func @_matmul_affine_kernel(%arg0: i32, %arg1: i32, %arg2: memref<2x32xbf16, #tpu.memory_space<vmem>>, %arg3: memref<32x64xbf16, #tpu.memory_space<vmem>>, %arg4: memref<1x64xf32, #tpu.memory_space<vmem>>, %arg5: memref<1x64xf32, #tpu.memory_space<vmem>>, %arg6: memref<2x64xbf16, #tpu.memory_space<vmem>>, %arg7: memref<2x64xf32, #tpu.memory_space<vmem>>) attributes {dimension_semantics = [#tpu.dimension_semantics<parallel>, #tpu.dimension_semantics<arbitrary>], iteration_bounds = array<i64: 1, 1>, scalar_prefetch = 0 : i64, scratch_operands = 1 : i64, tpu.core_type = #tpu.core_type<tc>, window_params = [{transform_indices = @transform_0, window_bounds = array<i64: 2, 32>}, {transform_indices = @transform_1, window_bounds = array<i64: 32, 64>}, {pipeline_mode = #tpu.pipeline_mode<synchronous>, transform_indices = @transform_2, window_bounds = array<i64: 1, 64>}, {pipeline_mode = #tpu.pipeline_mode<synchronous>, transform_indices = @transform_3, window_bounds = array<i64: 1, 64>}, {transform_indices = @transform_4, window_bounds = array<i64: 2, 64>}]} {
    %c0_i32 = arith.constant 0 : i32
    %0 = arith.cmpi eq, %arg1, %c0_i32 : i32
    %1 = arith.extui %0 : i1 to i32
    %c0_i32_0 = arith.constant 0 : i32
    %2 = arith.cmpi ne, %1, %c0_i32_0 : i32
    scf.if %2 {
      %cst_10 = arith.constant 0.000000e+00 : f32
      %12 = vector.broadcast %cst_10 : f32 to vector<2x64xf32>
      %c0_11 = arith.constant 0 : index
      %c0_12 = arith.constant 0 : index
      %13 = vector.load %arg7[%c0_11, %c0_12] : memref<2x64xf32, #tpu.memory_space<vmem>>, vector<2x64xf32>
      tpu.vector_store %arg7[%c0_11, %c0_12], %12 {strides = array<i32>} : memref<2x64xf32, #tpu.memory_space<vmem>>, vector<2x64xf32>,
    } else {
    }
    %c0 = arith.constant 0 : index
    %c0_1 = arith.constant 0 : index
    %3 = vector.load %arg7[%c0, %c0_1] : memref<2x64xf32, #tpu.memory_space<vmem>>, vector<2x64xf32>
    %c0_2 = arith.constant 0 : index
    %c0_3 = arith.constant 0 : index
    %4 = vector.load %arg2[%c0_2, %c0_3] : memref<2x32xbf16, #tpu.memory_space<vmem>>, vector<2x32xbf16>
    %c0_4 = arith.constant 0 : index
    %c0_5 = arith.constant 0 : index
    %5 = vector.load %arg3[%c0_4, %c0_5] : memref<32x64xbf16, #tpu.memory_space<vmem>>, vector<32x64xbf16>
    %cst = arith.constant dense<0.000000e+00> : vector<2x64xf32>
    %6 = tpu.matmul %4, %5, %cst {dimension_numbers = #tpu.dot_dimension_numbers<[1], [0], [0], [1], [0, 0, 1, 1], [], []>} : vector<2x32xbf16>, vector<32x64xbf16>, vector<2x64xf32> -> vector<2x64xf32>
    %7 = arith.addf %3, %6 : vector<2x64xf32>
    %c0_6 = arith.constant 0 : index
    %c0_7 = arith.constant 0 : index
    %8 = vector.load %arg7[%c0_6, %c0_7] : memref<2x64xf32, #tpu.memory_space<vmem>>, vector<2x64xf32>
    tpu.vector_store %arg7[%c0_6, %c0_7], %7 {strides = array<i32>} : memref<2x64xf32, #tpu.memory_space<vmem>>, vector<2x64xf32>,
    %c0_i32_8 = arith.constant 0 : i32
    %9 = arith.cmpi eq, %arg1, %c0_i32_8 : i32
    %10 = arith.extui %9 : i1 to i32
    %c0_i32_9 = arith.constant 0 : i32
    %11 = arith.cmpi ne, %10, %c0_i32_9 : i32
    scf.if %11 {
      %c0_10 = arith.constant 0 : index
      %c0_11 = arith.constant 0 : index
      %12 = vector.load %arg7[%c0_10, %c0_11] : memref<2x64xf32, #tpu.memory_space<vmem>>, vector<2x64xf32>
      %c0_12 = arith.constant 0 : index
      %c0_13 = arith.constant 0 : index
      %13 = vector.load %arg4[%c0_12, %c0_13] : memref<1x64xf32, #tpu.memory_space<vmem>>, vector<1x64xf32>
      %14 = vector.broadcast %13 : vector<1x64xf32> to vector<2x64xf32>
      %15 = arith.mulf %12, %14 : vector<2x64xf32>
      %c0_14 = arith.constant 0 : index
      %c0_15 = arith.constant 0 : index
      %16 = vector.load %arg5[%c0_14, %c0_15] : memref<1x64xf32, #tpu.memory_space<vmem>>, vector<1x64xf32>
      %17 = vector.broadcast %16 : vector<1x64xf32> to vector<2x64xf32>
      %18 = arith.addf %15, %17 : vector<2x64xf32>
      %cst_16 = arith.constant 0.000000e+00 : f32
      %19 = vector.broadcast %cst_16 : f32 to vector<2x64xf32>
      %20 = arith.maximumf %18, %19 : vector<2x64xf32>
      %21 = arith.truncf %20 : vector<2x64xf32> to vector<2x64xbf16>
      %c0_17 = arith.constant 0 : index
      %c0_18 = arith.constant 0 : index
      %22 = vector.load %arg6[%c0_17, %c0_18] : memref<2x64xbf16, #tpu.memory_space<vmem>>, vector<2x64xbf16>
      tpu.vector_store %arg6[%c0_17, %c0_18], %21 {strides = array<i32>} : memref<2x64xbf16, #tpu.memory_space<vmem>>, vector<2x64xbf16>,
    } else {
    }
    return
  }
  func.func @transform_0(%arg0: i32, %arg1: i32) -> (i32, i32) {
    %c0_i32 = arith.constant 0 : i32
    return %arg0, %arg1 : i32, i32
  }
  func.func @transform_1(%arg0: i32, %arg1: i32) -> (i32, i32) {
    %c0_i32 = arith.constant 0 : i32
    %c0_i32_0 = arith.constant 0 : i32
    return %arg1, %c0_i32 : i32, i32
  }
  func.func @transform_2(%arg0: i32, %arg1: i32) -> (i32, i32) {
    %c0_i32 = arith.constant 0 : i32
    %c0_i32_0 = arith.constant 0 : i32
    %c0_i32_1 = arith.constant 0 : i32
    return %c0_i32, %c0_i32_0 : i32, i32
  }
  func.func @transform_3(%arg0: i32, %arg1: i32) -> (i32, i32) {
    %c0_i32 = arith.constant 0 : i32
    %c0_i32_0 = arith.constant 0 : i32
    %c0_i32_1 = arith.constant 0 : i32
    return %c0_i32, %c0_i32_0 : i32, i32
  }
  func.func @transform_4(%arg0: i32, %arg1: i32) -> (i32, i32) {
    %c0_i32 = arith.constant 0 : i32
    %c0_i32_0 = arith.constant 0 : i32
    return %arg0, %c0_i32 : i32, i32
  }
}

module attributes {stable_mosaic.version = 11 : i64} {
  func.func @_matmul_affine_kernel(%arg0: i32, %arg1: i32, %arg2: memref<2x576xbf16, #tpu.memory_space<vmem>>, %arg3: memref<576x128xbf16, #tpu.memory_space<vmem>>, %arg4: memref<1x128xf32, #tpu.memory_space<vmem>>, %arg5: memref<1x128xf32, #tpu.memory_space<vmem>>, %arg6: memref<2x128xbf16, #tpu.memory_space<vmem>>, %arg7: memref<2x128xf32, #tpu.memory_space<vmem>>) attributes {dimension_semantics = [#tpu.dimension_semantics<parallel>, #tpu.dimension_semantics<arbitrary>], iteration_bounds = array<i64: 1, 1>, scalar_prefetch = 0 : i64, scratch_operands = 1 : i64, tpu.core_type = #tpu.core_type<tc>, window_params = [{transform_indices = @transform_0, window_bounds = array<i64: 2, 576>}, {transform_indices = @transform_1, window_bounds = array<i64: 576, 128>}, {pipeline_mode = #tpu.pipeline_mode<synchronous>, transform_indices = @transform_2, window_bounds = array<i64: 1, 128>}, {pipeline_mode = #tpu.pipeline_mode<synchronous>, transform_indices = @transform_3, window_bounds = array<i64: 1, 128>}, {transform_indices = @transform_4, window_bounds = array<i64: 2, 128>}]} {
    %c0_i32 = arith.constant 0 : i32
    %0 = arith.cmpi eq, %arg1, %c0_i32 : i32
    %1 = arith.extui %0 : i1 to i32
    %c0_i32_0 = arith.constant 0 : i32
    %2 = arith.cmpi ne, %1, %c0_i32_0 : i32
    scf.if %2 {
      %cst_10 = arith.constant 0.000000e+00 : f32
      %12 = vector.broadcast %cst_10 : f32 to vector<2x128xf32>
      %c0_11 = arith.constant 0 : index
      %c0_12 = arith.constant 0 : index
      %13 = vector.load %arg7[%c0_11, %c0_12] : memref<2x128xf32, #tpu.memory_space<vmem>>, vector<2x128xf32>
      tpu.vector_store %arg7[%c0_11, %c0_12], %12 {strides = array<i32>} : memref<2x128xf32, #tpu.memory_space<vmem>>, vector<2x128xf32>,
    } else {
    }
    %c0 = arith.constant 0 : index
    %c0_1 = arith.constant 0 : index
    %3 = vector.load %arg7[%c0, %c0_1] : memref<2x128xf32, #tpu.memory_space<vmem>>, vector<2x128xf32>
    %c0_2 = arith.constant 0 : index
    %c0_3 = arith.constant 0 : index
    %4 = vector.load %arg2[%c0_2, %c0_3] : memref<2x576xbf16, #tpu.memory_space<vmem>>, vector<2x576xbf16>
    %c0_4 = arith.constant 0 : index
    %c0_5 = arith.constant 0 : index
    %5 = vector.load %arg3[%c0_4, %c0_5] : memref<576x128xbf16, #tpu.memory_space<vmem>>, vector<576x128xbf16>
    %cst = arith.constant dense<0.000000e+00> : vector<2x128xf32>
    %6 = tpu.matmul %4, %5, %cst {dimension_numbers = #tpu.dot_dimension_numbers<[1], [0], [0], [1], [0, 0, 1, 1], [], []>} : vector<2x576xbf16>, vector<576x128xbf16>, vector<2x128xf32> -> vector<2x128xf32>
    %7 = arith.addf %3, %6 : vector<2x128xf32>
    %c0_6 = arith.constant 0 : index
    %c0_7 = arith.constant 0 : index
    %8 = vector.load %arg7[%c0_6, %c0_7] : memref<2x128xf32, #tpu.memory_space<vmem>>, vector<2x128xf32>
    tpu.vector_store %arg7[%c0_6, %c0_7], %7 {strides = array<i32>} : memref<2x128xf32, #tpu.memory_space<vmem>>, vector<2x128xf32>,
    %c0_i32_8 = arith.constant 0 : i32
    %9 = arith.cmpi eq, %arg1, %c0_i32_8 : i32
    %10 = arith.extui %9 : i1 to i32
    %c0_i32_9 = arith.constant 0 : i32
    %11 = arith.cmpi ne, %10, %c0_i32_9 : i32
    scf.if %11 {
      %c0_10 = arith.constant 0 : index
      %c0_11 = arith.constant 0 : index
      %12 = vector.load %arg7[%c0_10, %c0_11] : memref<2x128xf32, #tpu.memory_space<vmem>>, vector<2x128xf32>
      %c0_12 = arith.constant 0 : index
      %c0_13 = arith.constant 0 : index
      %13 = vector.load %arg4[%c0_12, %c0_13] : memref<1x128xf32, #tpu.memory_space<vmem>>, vector<1x128xf32>
      %14 = vector.broadcast %13 : vector<1x128xf32> to vector<2x128xf32>
      %15 = arith.mulf %12, %14 : vector<2x128xf32>
      %c0_14 = arith.constant 0 : index
      %c0_15 = arith.constant 0 : index
      %16 = vector.load %arg5[%c0_14, %c0_15] : memref<1x128xf32, #tpu.memory_space<vmem>>, vector<1x128xf32>
      %17 = vector.broadcast %16 : vector<1x128xf32> to vector<2x128xf32>
      %18 = arith.addf %15, %17 : vector<2x128xf32>
      %cst_16 = arith.constant 0.000000e+00 : f32
      %19 = vector.broadcast %cst_16 : f32 to vector<2x128xf32>
      %20 = arith.maximumf %18, %19 : vector<2x128xf32>
      %21 = arith.truncf %20 : vector<2x128xf32> to vector<2x128xbf16>
      %c0_17 = arith.constant 0 : index
      %c0_18 = arith.constant 0 : index
      %22 = vector.load %arg6[%c0_17, %c0_18] : memref<2x128xbf16, #tpu.memory_space<vmem>>, vector<2x128xbf16>
      tpu.vector_store %arg6[%c0_17, %c0_18], %21 {strides = array<i32>} : memref<2x128xbf16, #tpu.memory_space<vmem>>, vector<2x128xbf16>,
    } else {
    }
    return
  }
  func.func @transform_0(%arg0: i32, %arg1: i32) -> (i32, i32) {
    %c0_i32 = arith.constant 0 : i32
    return %arg0, %arg1 : i32, i32
  }
  func.func @transform_1(%arg0: i32, %arg1: i32) -> (i32, i32) {
    %c0_i32 = arith.constant 0 : i32
    %c0_i32_0 = arith.constant 0 : i32
    return %arg1, %c0_i32 : i32, i32
  }
  func.func @transform_2(%arg0: i32, %arg1: i32) -> (i32, i32) {
    %c0_i32 = arith.constant 0 : i32
    %c0_i32_0 = arith.constant 0 : i32
    %c0_i32_1 = arith.constant 0 : i32
    return %c0_i32, %c0_i32_0 : i32, i32
  }
  func.func @transform_3(%arg0: i32, %arg1: i32) -> (i32, i32) {
    %c0_i32 = arith.constant 0 : i32
    %c0_i32_0 = arith.constant 0 : i32
    %c0_i32_1 = arith.constant 0 : i32
    return %c0_i32, %c0_i32_0 : i32, i32
  }
  func.func @transform_4(%arg0: i32, %arg1: i32) -> (i32, i32) {
    %c0_i32 = arith.constant 0 : i32
    %c0_i32_0 = arith.constant 0 : i32
    return %arg0, %c0_i32 : i32, i32
  }
}

module attributes {stable_mosaic.version = 11 : i64} {
  func.func @_matmul_affine_kernel(%arg0: i32, %arg1: i32, %arg2: memref<8x288xbf16, #tpu.memory_space<vmem>>, %arg3: memref<288x64xbf16, #tpu.memory_space<vmem>>, %arg4: memref<1x64xf32, #tpu.memory_space<vmem>>, %arg5: memref<1x64xf32, #tpu.memory_space<vmem>>, %arg6: memref<8x64xbf16, #tpu.memory_space<vmem>>, %arg7: memref<8x64xf32, #tpu.memory_space<vmem>>) attributes {dimension_semantics = [#tpu.dimension_semantics<parallel>, #tpu.dimension_semantics<arbitrary>], iteration_bounds = array<i64: 1, 1>, scalar_prefetch = 0 : i64, scratch_operands = 1 : i64, tpu.core_type = #tpu.core_type<tc>, window_params = [{transform_indices = @transform_0, window_bounds = array<i64: 8, 288>}, {transform_indices = @transform_1, window_bounds = array<i64: 288, 64>}, {pipeline_mode = #tpu.pipeline_mode<synchronous>, transform_indices = @transform_2, window_bounds = array<i64: 1, 64>}, {pipeline_mode = #tpu.pipeline_mode<synchronous>, transform_indices = @transform_3, window_bounds = array<i64: 1, 64>}, {transform_indices = @transform_4, window_bounds = array<i64: 8, 64>}]} {
    %c0_i32 = arith.constant 0 : i32
    %0 = arith.cmpi eq, %arg1, %c0_i32 : i32
    %1 = arith.extui %0 : i1 to i32
    %c0_i32_0 = arith.constant 0 : i32
    %2 = arith.cmpi ne, %1, %c0_i32_0 : i32
    scf.if %2 {
      %cst_10 = arith.constant 0.000000e+00 : f32
      %12 = vector.broadcast %cst_10 : f32 to vector<8x64xf32>
      %c0_11 = arith.constant 0 : index
      %c0_12 = arith.constant 0 : index
      %13 = vector.load %arg7[%c0_11, %c0_12] : memref<8x64xf32, #tpu.memory_space<vmem>>, vector<8x64xf32>
      tpu.vector_store %arg7[%c0_11, %c0_12], %12 {strides = array<i32>} : memref<8x64xf32, #tpu.memory_space<vmem>>, vector<8x64xf32>,
    } else {
    }
    %c0 = arith.constant 0 : index
    %c0_1 = arith.constant 0 : index
    %3 = vector.load %arg7[%c0, %c0_1] : memref<8x64xf32, #tpu.memory_space<vmem>>, vector<8x64xf32>
    %c0_2 = arith.constant 0 : index
    %c0_3 = arith.constant 0 : index
    %4 = vector.load %arg2[%c0_2, %c0_3] : memref<8x288xbf16, #tpu.memory_space<vmem>>, vector<8x288xbf16>
    %c0_4 = arith.constant 0 : index
    %c0_5 = arith.constant 0 : index
    %5 = vector.load %arg3[%c0_4, %c0_5] : memref<288x64xbf16, #tpu.memory_space<vmem>>, vector<288x64xbf16>
    %cst = arith.constant dense<0.000000e+00> : vector<8x64xf32>
    %6 = tpu.matmul %4, %5, %cst {dimension_numbers = #tpu.dot_dimension_numbers<[1], [0], [0], [1], [0, 0, 1, 1], [], []>} : vector<8x288xbf16>, vector<288x64xbf16>, vector<8x64xf32> -> vector<8x64xf32>
    %7 = arith.addf %3, %6 : vector<8x64xf32>
    %c0_6 = arith.constant 0 : index
    %c0_7 = arith.constant 0 : index
    %8 = vector.load %arg7[%c0_6, %c0_7] : memref<8x64xf32, #tpu.memory_space<vmem>>, vector<8x64xf32>
    tpu.vector_store %arg7[%c0_6, %c0_7], %7 {strides = array<i32>} : memref<8x64xf32, #tpu.memory_space<vmem>>, vector<8x64xf32>,
    %c0_i32_8 = arith.constant 0 : i32
    %9 = arith.cmpi eq, %arg1, %c0_i32_8 : i32
    %10 = arith.extui %9 : i1 to i32
    %c0_i32_9 = arith.constant 0 : i32
    %11 = arith.cmpi ne, %10, %c0_i32_9 : i32
    scf.if %11 {
      %c0_10 = arith.constant 0 : index
      %c0_11 = arith.constant 0 : index
      %12 = vector.load %arg7[%c0_10, %c0_11] : memref<8x64xf32, #tpu.memory_space<vmem>>, vector<8x64xf32>
      %c0_12 = arith.constant 0 : index
      %c0_13 = arith.constant 0 : index
      %13 = vector.load %arg4[%c0_12, %c0_13] : memref<1x64xf32, #tpu.memory_space<vmem>>, vector<1x64xf32>
      %14 = vector.broadcast %13 : vector<1x64xf32> to vector<8x64xf32>
      %15 = arith.mulf %12, %14 : vector<8x64xf32>
      %c0_14 = arith.constant 0 : index
      %c0_15 = arith.constant 0 : index
      %16 = vector.load %arg5[%c0_14, %c0_15] : memref<1x64xf32, #tpu.memory_space<vmem>>, vector<1x64xf32>
      %17 = vector.broadcast %16 : vector<1x64xf32> to vector<8x64xf32>
      %18 = arith.addf %15, %17 : vector<8x64xf32>
      %cst_16 = arith.constant 0.000000e+00 : f32
      %19 = vector.broadcast %cst_16 : f32 to vector<8x64xf32>
      %20 = arith.maximumf %18, %19 : vector<8x64xf32>
      %21 = arith.truncf %20 : vector<8x64xf32> to vector<8x64xbf16>
      %c0_17 = arith.constant 0 : index
      %c0_18 = arith.constant 0 : index
      %22 = vector.load %arg6[%c0_17, %c0_18] : memref<8x64xbf16, #tpu.memory_space<vmem>>, vector<8x64xbf16>
      tpu.vector_store %arg6[%c0_17, %c0_18], %21 {strides = array<i32>} : memref<8x64xbf16, #tpu.memory_space<vmem>>, vector<8x64xbf16>,
    } else {
    }
    return
  }
  func.func @transform_0(%arg0: i32, %arg1: i32) -> (i32, i32) {
    %c0_i32 = arith.constant 0 : i32
    return %arg0, %arg1 : i32, i32
  }
  func.func @transform_1(%arg0: i32, %arg1: i32) -> (i32, i32) {
    %c0_i32 = arith.constant 0 : i32
    %c0_i32_0 = arith.constant 0 : i32
    return %arg1, %c0_i32 : i32, i32
  }
  func.func @transform_2(%arg0: i32, %arg1: i32) -> (i32, i32) {
    %c0_i32 = arith.constant 0 : i32
    %c0_i32_0 = arith.constant 0 : i32
    %c0_i32_1 = arith.constant 0 : i32
    return %c0_i32, %c0_i32_0 : i32, i32
  }
  func.func @transform_3(%arg0: i32, %arg1: i32) -> (i32, i32) {
    %c0_i32 = arith.constant 0 : i32
    %c0_i32_0 = arith.constant 0 : i32
    %c0_i32_1 = arith.constant 0 : i32
    return %c0_i32, %c0_i32_0 : i32, i32
  }
  func.func @transform_4(%arg0: i32, %arg1: i32) -> (i32, i32) {
    %c0_i32 = arith.constant 0 : i32
    %c0_i32_0 = arith.constant 0 : i32
    return %arg0, %c0_i32 : i32, i32
  }
}

module attributes {stable_mosaic.version = 11 : i64} {
  func.func @_matmul_affine_kernel(%arg0: i32, %arg1: i32, %arg2: memref<16x144xbf16, #tpu.memory_space<vmem>>, %arg3: memref<144x32xbf16, #tpu.memory_space<vmem>>, %arg4: memref<1x32xf32, #tpu.memory_space<vmem>>, %arg5: memref<1x32xf32, #tpu.memory_space<vmem>>, %arg6: memref<16x32xbf16, #tpu.memory_space<vmem>>, %arg7: memref<16x32xf32, #tpu.memory_space<vmem>>) attributes {dimension_semantics = [#tpu.dimension_semantics<parallel>, #tpu.dimension_semantics<arbitrary>], iteration_bounds = array<i64: 2, 1>, scalar_prefetch = 0 : i64, scratch_operands = 1 : i64, tpu.core_type = #tpu.core_type<tc>, window_params = [{transform_indices = @transform_0, window_bounds = array<i64: 16, 144>}, {transform_indices = @transform_1, window_bounds = array<i64: 144, 32>}, {pipeline_mode = #tpu.pipeline_mode<synchronous>, transform_indices = @transform_2, window_bounds = array<i64: 1, 32>}, {pipeline_mode = #tpu.pipeline_mode<synchronous>, transform_indices = @transform_3, window_bounds = array<i64: 1, 32>}, {transform_indices = @transform_4, window_bounds = array<i64: 16, 32>}]} {
    %c0_i32 = arith.constant 0 : i32
    %0 = arith.cmpi eq, %arg1, %c0_i32 : i32
    %1 = arith.extui %0 : i1 to i32
    %c0_i32_0 = arith.constant 0 : i32
    %2 = arith.cmpi ne, %1, %c0_i32_0 : i32
    scf.if %2 {
      %cst_10 = arith.constant 0.000000e+00 : f32
      %12 = vector.broadcast %cst_10 : f32 to vector<16x32xf32>
      %c0_11 = arith.constant 0 : index
      %c0_12 = arith.constant 0 : index
      %13 = vector.load %arg7[%c0_11, %c0_12] : memref<16x32xf32, #tpu.memory_space<vmem>>, vector<16x32xf32>
      tpu.vector_store %arg7[%c0_11, %c0_12], %12 {strides = array<i32>} : memref<16x32xf32, #tpu.memory_space<vmem>>, vector<16x32xf32>,
    } else {
    }
    %c0 = arith.constant 0 : index
    %c0_1 = arith.constant 0 : index
    %3 = vector.load %arg7[%c0, %c0_1] : memref<16x32xf32, #tpu.memory_space<vmem>>, vector<16x32xf32>
    %c0_2 = arith.constant 0 : index
    %c0_3 = arith.constant 0 : index
    %4 = vector.load %arg2[%c0_2, %c0_3] : memref<16x144xbf16, #tpu.memory_space<vmem>>, vector<16x144xbf16>
    %c0_4 = arith.constant 0 : index
    %c0_5 = arith.constant 0 : index
    %5 = vector.load %arg3[%c0_4, %c0_5] : memref<144x32xbf16, #tpu.memory_space<vmem>>, vector<144x32xbf16>
    %cst = arith.constant dense<0.000000e+00> : vector<16x32xf32>
    %6 = tpu.matmul %4, %5, %cst {dimension_numbers = #tpu.dot_dimension_numbers<[1], [0], [0], [1], [0, 0, 1, 1], [], []>} : vector<16x144xbf16>, vector<144x32xbf16>, vector<16x32xf32> -> vector<16x32xf32>
    %7 = arith.addf %3, %6 : vector<16x32xf32>
    %c0_6 = arith.constant 0 : index
    %c0_7 = arith.constant 0 : index
    %8 = vector.load %arg7[%c0_6, %c0_7] : memref<16x32xf32, #tpu.memory_space<vmem>>, vector<16x32xf32>
    tpu.vector_store %arg7[%c0_6, %c0_7], %7 {strides = array<i32>} : memref<16x32xf32, #tpu.memory_space<vmem>>, vector<16x32xf32>,
    %c0_i32_8 = arith.constant 0 : i32
    %9 = arith.cmpi eq, %arg1, %c0_i32_8 : i32
    %10 = arith.extui %9 : i1 to i32
    %c0_i32_9 = arith.constant 0 : i32
    %11 = arith.cmpi ne, %10, %c0_i32_9 : i32
    scf.if %11 {
      %c0_10 = arith.constant 0 : index
      %c0_11 = arith.constant 0 : index
      %12 = vector.load %arg7[%c0_10, %c0_11] : memref<16x32xf32, #tpu.memory_space<vmem>>, vector<16x32xf32>
      %c0_12 = arith.constant 0 : index
      %c0_13 = arith.constant 0 : index
      %13 = vector.load %arg4[%c0_12, %c0_13] : memref<1x32xf32, #tpu.memory_space<vmem>>, vector<1x32xf32>
      %14 = vector.broadcast %13 : vector<1x32xf32> to vector<16x32xf32>
      %15 = arith.mulf %12, %14 : vector<16x32xf32>
      %c0_14 = arith.constant 0 : index
      %c0_15 = arith.constant 0 : index
      %16 = vector.load %arg5[%c0_14, %c0_15] : memref<1x32xf32, #tpu.memory_space<vmem>>, vector<1x32xf32>
      %17 = vector.broadcast %16 : vector<1x32xf32> to vector<16x32xf32>
      %18 = arith.addf %15, %17 : vector<16x32xf32>
      %cst_16 = arith.constant 0.000000e+00 : f32
      %19 = vector.broadcast %cst_16 : f32 to vector<16x32xf32>
      %20 = arith.maximumf %18, %19 : vector<16x32xf32>
      %21 = arith.truncf %20 : vector<16x32xf32> to vector<16x32xbf16>
      %c0_17 = arith.constant 0 : index
      %c0_18 = arith.constant 0 : index
      %22 = vector.load %arg6[%c0_17, %c0_18] : memref<16x32xbf16, #tpu.memory_space<vmem>>, vector<16x32xbf16>
      tpu.vector_store %arg6[%c0_17, %c0_18], %21 {strides = array<i32>} : memref<16x32xbf16, #tpu.memory_space<vmem>>, vector<16x32xbf16>,
    } else {
    }
    return
  }
  func.func @transform_0(%arg0: i32, %arg1: i32) -> (i32, i32) {
    %c0_i32 = arith.constant 0 : i32
    return %arg0, %arg1 : i32, i32
  }
  func.func @transform_1(%arg0: i32, %arg1: i32) -> (i32, i32) {
    %c0_i32 = arith.constant 0 : i32
    %c0_i32_0 = arith.constant 0 : i32
    return %arg1, %c0_i32 : i32, i32
  }
  func.func @transform_2(%arg0: i32, %arg1: i32) -> (i32, i32) {
    %c0_i32 = arith.constant 0 : i32
    %c0_i32_0 = arith.constant 0 : i32
    %c0_i32_1 = arith.constant 0 : i32
    return %c0_i32, %c0_i32_0 : i32, i32
  }
  func.func @transform_3(%arg0: i32, %arg1: i32) -> (i32, i32) {
    %c0_i32 = arith.constant 0 : i32
    %c0_i32_0 = arith.constant 0 : i32
    %c0_i32_1 = arith.constant 0 : i32
    return %c0_i32, %c0_i32_0 : i32, i32
  }
  func.func @transform_4(%arg0: i32, %arg1: i32) -> (i32, i32) {
    %c0_i32 = arith.constant 0 : i32
    %c0_i32_0 = arith.constant 0 : i32
    return %arg0, %c0_i32 : i32, i32
  }
}

module attributes {stable_mosaic.version = 11 : i64} {
  func.func @_matmul_affine_kernel(%arg0: i32, %arg1: i32, %arg2: memref<64x72xbf16, #tpu.memory_space<vmem>>, %arg3: memref<72x16xbf16, #tpu.memory_space<vmem>>, %arg4: memref<1x16xf32, #tpu.memory_space<vmem>>, %arg5: memref<1x16xf32, #tpu.memory_space<vmem>>, %arg6: memref<64x16xbf16, #tpu.memory_space<vmem>>, %arg7: memref<64x16xf32, #tpu.memory_space<vmem>>) attributes {dimension_semantics = [#tpu.dimension_semantics<parallel>, #tpu.dimension_semantics<arbitrary>], iteration_bounds = array<i64: 2, 1>, scalar_prefetch = 0 : i64, scratch_operands = 1 : i64, tpu.core_type = #tpu.core_type<tc>, window_params = [{transform_indices = @transform_0, window_bounds = array<i64: 64, 72>}, {transform_indices = @transform_1, window_bounds = array<i64: 72, 16>}, {pipeline_mode = #tpu.pipeline_mode<synchronous>, transform_indices = @transform_2, window_bounds = array<i64: 1, 16>}, {pipeline_mode = #tpu.pipeline_mode<synchronous>, transform_indices = @transform_3, window_bounds = array<i64: 1, 16>}, {transform_indices = @transform_4, window_bounds = array<i64: 64, 16>}]} {
    %c0_i32 = arith.constant 0 : i32
    %0 = arith.cmpi eq, %arg1, %c0_i32 : i32
    %1 = arith.extui %0 : i1 to i32
    %c0_i32_0 = arith.constant 0 : i32
    %2 = arith.cmpi ne, %1, %c0_i32_0 : i32
    scf.if %2 {
      %cst_10 = arith.constant 0.000000e+00 : f32
      %12 = vector.broadcast %cst_10 : f32 to vector<64x16xf32>
      %c0_11 = arith.constant 0 : index
      %c0_12 = arith.constant 0 : index
      %13 = vector.load %arg7[%c0_11, %c0_12] : memref<64x16xf32, #tpu.memory_space<vmem>>, vector<64x16xf32>
      tpu.vector_store %arg7[%c0_11, %c0_12], %12 {strides = array<i32>} : memref<64x16xf32, #tpu.memory_space<vmem>>, vector<64x16xf32>,
    } else {
    }
    %c0 = arith.constant 0 : index
    %c0_1 = arith.constant 0 : index
    %3 = vector.load %arg7[%c0, %c0_1] : memref<64x16xf32, #tpu.memory_space<vmem>>, vector<64x16xf32>
    %c0_2 = arith.constant 0 : index
    %c0_3 = arith.constant 0 : index
    %4 = vector.load %arg2[%c0_2, %c0_3] : memref<64x72xbf16, #tpu.memory_space<vmem>>, vector<64x72xbf16>
    %c0_4 = arith.constant 0 : index
    %c0_5 = arith.constant 0 : index
    %5 = vector.load %arg3[%c0_4, %c0_5] : memref<72x16xbf16, #tpu.memory_space<vmem>>, vector<72x16xbf16>
    %cst = arith.constant dense<0.000000e+00> : vector<64x16xf32>
    %6 = tpu.matmul %4, %5, %cst {dimension_numbers = #tpu.dot_dimension_numbers<[1], [0], [0], [1], [0, 0, 1, 1], [], []>} : vector<64x72xbf16>, vector<72x16xbf16>, vector<64x16xf32> -> vector<64x16xf32>
    %7 = arith.addf %3, %6 : vector<64x16xf32>
    %c0_6 = arith.constant 0 : index
    %c0_7 = arith.constant 0 : index
    %8 = vector.load %arg7[%c0_6, %c0_7] : memref<64x16xf32, #tpu.memory_space<vmem>>, vector<64x16xf32>
    tpu.vector_store %arg7[%c0_6, %c0_7], %7 {strides = array<i32>} : memref<64x16xf32, #tpu.memory_space<vmem>>, vector<64x16xf32>,
    %c0_i32_8 = arith.constant 0 : i32
    %9 = arith.cmpi eq, %arg1, %c0_i32_8 : i32
    %10 = arith.extui %9 : i1 to i32
    %c0_i32_9 = arith.constant 0 : i32
    %11 = arith.cmpi ne, %10, %c0_i32_9 : i32
    scf.if %11 {
      %c0_10 = arith.constant 0 : index
      %c0_11 = arith.constant 0 : index
      %12 = vector.load %arg7[%c0_10, %c0_11] : memref<64x16xf32, #tpu.memory_space<vmem>>, vector<64x16xf32>
      %c0_12 = arith.constant 0 : index
      %c0_13 = arith.constant 0 : index
      %13 = vector.load %arg4[%c0_12, %c0_13] : memref<1x16xf32, #tpu.memory_space<vmem>>, vector<1x16xf32>
      %14 = vector.broadcast %13 : vector<1x16xf32> to vector<64x16xf32>
      %15 = arith.mulf %12, %14 : vector<64x16xf32>
      %c0_14 = arith.constant 0 : index
      %c0_15 = arith.constant 0 : index
      %16 = vector.load %arg5[%c0_14, %c0_15] : memref<1x16xf32, #tpu.memory_space<vmem>>, vector<1x16xf32>
      %17 = vector.broadcast %16 : vector<1x16xf32> to vector<64x16xf32>
      %18 = arith.addf %15, %17 : vector<64x16xf32>
      %cst_16 = arith.constant 0.000000e+00 : f32
      %19 = vector.broadcast %cst_16 : f32 to vector<64x16xf32>
      %20 = arith.maximumf %18, %19 : vector<64x16xf32>
      %21 = arith.truncf %20 : vector<64x16xf32> to vector<64x16xbf16>
      %c0_17 = arith.constant 0 : index
      %c0_18 = arith.constant 0 : index
      %22 = vector.load %arg6[%c0_17, %c0_18] : memref<64x16xbf16, #tpu.memory_space<vmem>>, vector<64x16xbf16>
      tpu.vector_store %arg6[%c0_17, %c0_18], %21 {strides = array<i32>} : memref<64x16xbf16, #tpu.memory_space<vmem>>, vector<64x16xbf16>,
    } else {
    }
    return
  }
  func.func @transform_0(%arg0: i32, %arg1: i32) -> (i32, i32) {
    %c0_i32 = arith.constant 0 : i32
    return %arg0, %arg1 : i32, i32
  }
  func.func @transform_1(%arg0: i32, %arg1: i32) -> (i32, i32) {
    %c0_i32 = arith.constant 0 : i32
    %c0_i32_0 = arith.constant 0 : i32
    return %arg1, %c0_i32 : i32, i32
  }
  func.func @transform_2(%arg0: i32, %arg1: i32) -> (i32, i32) {
    %c0_i32 = arith.constant 0 : i32
    %c0_i32_0 = arith.constant 0 : i32
    %c0_i32_1 = arith.constant 0 : i32
    return %c0_i32, %c0_i32_0 : i32, i32
  }
  func.func @transform_3(%arg0: i32, %arg1: i32) -> (i32, i32) {
    %c0_i32 = arith.constant 0 : i32
    %c0_i32_0 = arith.constant 0 : i32
    %c0_i32_1 = arith.constant 0 : i32
    return %c0_i32, %c0_i32_0 : i32, i32
  }
  func.func @transform_4(%arg0: i32, %arg1: i32) -> (i32, i32) {
    %c0_i32 = arith.constant 0 : i32
    %c0_i32_0 = arith.constant 0 : i32
    return %arg0, %c0_i32 : i32, i32
  }
}

module attributes {stable_mosaic.version = 11 : i64} {
  func.func @_matmul_affine_kernel(%arg0: i32, %arg1: i32, %arg2: memref<256x36xbf16, #tpu.memory_space<vmem>>, %arg3: memref<36x12xbf16, #tpu.memory_space<vmem>>, %arg4: memref<1x12xf32, #tpu.memory_space<vmem>>, %arg5: memref<1x12xf32, #tpu.memory_space<vmem>>, %arg6: memref<256x12xf32, #tpu.memory_space<vmem>>, %arg7: memref<256x12xf32, #tpu.memory_space<vmem>>) attributes {dimension_semantics = [#tpu.dimension_semantics<parallel>, #tpu.dimension_semantics<arbitrary>], iteration_bounds = array<i64: 2, 1>, scalar_prefetch = 0 : i64, scratch_operands = 1 : i64, tpu.core_type = #tpu.core_type<tc>, window_params = [{transform_indices = @transform_0, window_bounds = array<i64: 256, 36>}, {transform_indices = @transform_1, window_bounds = array<i64: 36, 12>}, {pipeline_mode = #tpu.pipeline_mode<synchronous>, transform_indices = @transform_2, window_bounds = array<i64: 1, 12>}, {pipeline_mode = #tpu.pipeline_mode<synchronous>, transform_indices = @transform_3, window_bounds = array<i64: 1, 12>}, {transform_indices = @transform_4, window_bounds = array<i64: 256, 12>}]} {
    %c0_i32 = arith.constant 0 : i32
    %0 = arith.cmpi eq, %arg1, %c0_i32 : i32
    %1 = arith.extui %0 : i1 to i32
    %c0_i32_0 = arith.constant 0 : i32
    %2 = arith.cmpi ne, %1, %c0_i32_0 : i32
    scf.if %2 {
      %cst_10 = arith.constant 0.000000e+00 : f32
      %12 = vector.broadcast %cst_10 : f32 to vector<256x12xf32>
      %c0_11 = arith.constant 0 : index
      %c0_12 = arith.constant 0 : index
      %13 = vector.load %arg7[%c0_11, %c0_12] : memref<256x12xf32, #tpu.memory_space<vmem>>, vector<256x12xf32>
      tpu.vector_store %arg7[%c0_11, %c0_12], %12 {strides = array<i32>} : memref<256x12xf32, #tpu.memory_space<vmem>>, vector<256x12xf32>,
    } else {
    }
    %c0 = arith.constant 0 : index
    %c0_1 = arith.constant 0 : index
    %3 = vector.load %arg7[%c0, %c0_1] : memref<256x12xf32, #tpu.memory_space<vmem>>, vector<256x12xf32>
    %c0_2 = arith.constant 0 : index
    %c0_3 = arith.constant 0 : index
    %4 = vector.load %arg2[%c0_2, %c0_3] : memref<256x36xbf16, #tpu.memory_space<vmem>>, vector<256x36xbf16>
    %c0_4 = arith.constant 0 : index
    %c0_5 = arith.constant 0 : index
    %5 = vector.load %arg3[%c0_4, %c0_5] : memref<36x12xbf16, #tpu.memory_space<vmem>>, vector<36x12xbf16>
    %cst = arith.constant dense<0.000000e+00> : vector<256x12xf32>
    %6 = tpu.matmul %4, %5, %cst {dimension_numbers = #tpu.dot_dimension_numbers<[1], [0], [0], [1], [0, 0, 1, 1], [], []>} : vector<256x36xbf16>, vector<36x12xbf16>, vector<256x12xf32> -> vector<256x12xf32>
    %7 = arith.addf %3, %6 : vector<256x12xf32>
    %c0_6 = arith.constant 0 : index
    %c0_7 = arith.constant 0 : index
    %8 = vector.load %arg7[%c0_6, %c0_7] : memref<256x12xf32, #tpu.memory_space<vmem>>, vector<256x12xf32>
    tpu.vector_store %arg7[%c0_6, %c0_7], %7 {strides = array<i32>} : memref<256x12xf32, #tpu.memory_space<vmem>>, vector<256x12xf32>,
    %c0_i32_8 = arith.constant 0 : i32
    %9 = arith.cmpi eq, %arg1, %c0_i32_8 : i32
    %10 = arith.extui %9 : i1 to i32
    %c0_i32_9 = arith.constant 0 : i32
    %11 = arith.cmpi ne, %10, %c0_i32_9 : i32
    scf.if %11 {
      %c0_10 = arith.constant 0 : index
      %c0_11 = arith.constant 0 : index
      %12 = vector.load %arg7[%c0_10, %c0_11] : memref<256x12xf32, #tpu.memory_space<vmem>>, vector<256x12xf32>
      %c0_12 = arith.constant 0 : index
      %c0_13 = arith.constant 0 : index
      %13 = vector.load %arg4[%c0_12, %c0_13] : memref<1x12xf32, #tpu.memory_space<vmem>>, vector<1x12xf32>
      %14 = vector.broadcast %13 : vector<1x12xf32> to vector<256x12xf32>
      %15 = arith.mulf %12, %14 : vector<256x12xf32>
      %c0_14 = arith.constant 0 : index
      %c0_15 = arith.constant 0 : index
      %16 = vector.load %arg5[%c0_14, %c0_15] : memref<1x12xf32, #tpu.memory_space<vmem>>, vector<1x12xf32>
      %17 = vector.broadcast %16 : vector<1x12xf32> to vector<256x12xf32>
      %18 = arith.addf %15, %17 : vector<256x12xf32>
      %c0_16 = arith.constant 0 : index
      %c0_17 = arith.constant 0 : index
      %19 = vector.load %arg6[%c0_16, %c0_17] : memref<256x12xf32, #tpu.memory_space<vmem>>, vector<256x12xf32>
      tpu.vector_store %arg6[%c0_16, %c0_17], %18 {strides = array<i32>} : memref<256x12xf32, #tpu.memory_space<vmem>>, vector<256x12xf32>,
    } else {
    }
    return
  }
  func.func @transform_0(%arg0: i32, %arg1: i32) -> (i32, i32) {
    %c0_i32 = arith.constant 0 : i32
    return %arg0, %arg1 : i32, i32
  }
  func.func @transform_1(%arg0: i32, %arg1: i32) -> (i32, i32) {
    %c0_i32 = arith.constant 0 : i32
    %c0_i32_0 = arith.constant 0 : i32
    return %arg1, %c0_i32 : i32, i32
  }
  func.func @transform_2(%arg0: i32, %arg1: i32) -> (i32, i32) {
    %c0_i32 = arith.constant 0 : i32
    %c0_i32_0 = arith.constant 0 : i32
    %c0_i32_1 = arith.constant 0 : i32
    return %c0_i32, %c0_i32_0 : i32, i32
  }
  func.func @transform_3(%arg0: i32, %arg1: i32) -> (i32, i32) {
    %c0_i32 = arith.constant 0 : i32
    %c0_i32_0 = arith.constant 0 : i32
    %c0_i32_1 = arith.constant 0 : i32
    return %c0_i32, %c0_i32_0 : i32, i32
  }
  func.func @transform_4(%arg0: i32, %arg1: i32) -> (i32, i32) {
    %c0_i32 = arith.constant 0 : i32
    %c0_i32_0 = arith.constant 0 : i32
    return %arg0, %c0_i32 : i32, i32
  }
}

</mosaic_0001>

<llo_original>
// kernel: tile.79
$region0: #{tile.79}
  #allocation0 [shape = 's32[1]{0}', space=sflag, size = 0x4, scoped, tag = 'scoped memory for tile.79']
  %s0 = inlined_call_operand.vmem [shape: f32[4], index: 0, kind: input, shape index: {}]
  %s1 = inlined_call_operand.vmem [shape: f32[4,4], index: 1, kind: output, shape index: {}]
  // Predicated region
  $region2: #{tile.79} parent=0 // pred_check
    _
  $region3: #{tile.79} parent=0 // pred_check_branch
    %3 = sbr.rel (0) target = $region5
  $region4: #{tile.79} parent=0 // pred_region
    _
  $region5: #{tile.79} parent=0 // pred_fallthru
    _
  %v4 = vld [vmem:[%s0] ss:$0 sm:$0xff]
  %5 = vst [vmem:[%s1] sm:$0xf] %v4

// kernel: tile.81
$region0: #{tile.81}
  %s0 = inlined_call_operand.vmem [shape: f32[4,4], index: 0, kind: input, shape index: {}]
  %s1 = inlined_call_operand.vmem [shape: f32[1,16], index: 1, kind: output, shape index: {}]
  $region1: #{tile.81} parent=0
    #allocation0 [shape = 'u8[4096]{0}', space=vmem, size = 0x1000, scoped, tag = 'scoped mem for output reshape']
    #allocation1 [shape = 'u8[4096]{0}', space=vmem, size = 0x1000, scoped, tag = 'scoped mem for input reshape']
    %s3 = sshllo.u32 0, 4
    %v4 = vld [vmem:[%s0] sm:%s3]
    %5 = vst [vmem:[#allocation1] sm:%s3] %v4
    %v6 = vld [vmem:[#allocation1] sm:$0x1]
    %vm7 = vcmask 31744
    %8 = vst.msk [vmem:[#allocation0] sm:$0x1] %vm7, %v6
    %s9 = scalar_lea.vmem [#allocation1], 3
    %v10 = vld [vmem:[%s9] sm:$0x1]
    %11 = vrot.lane.b32.xlu0 %v10, 12
    %v12 = vpop.permute.xlu0 %11
    %vm13 = vcmask 130144
    %14 = vst.msk [vmem:[#allocation0] sm:$0x1] %vm13, %v12
    %s15 = scalar_lea.vmem [#allocation1], 2
    %v16 = vld [vmem:[%s15] sm:$0x1]
    %17 = vrot.lane.b32.xlu0 %v16, 8
    %v18 = vpop.permute.xlu0 %17
    %vm19 = vcmask 97344
    %20 = vst.msk [vmem:[#allocation0] sm:$0x1] %vm19, %v18
    %s21 = scalar_lea.vmem [#allocation1], 1
    %v22 = vld [vmem:[%s21] sm:$0x1]
    %23 = vrot.lane.b32.xlu0 %v22, 4
    %v24 = vpop.permute.xlu0 %23
    %vm25 = vcmask 64544
    %26 = vst.msk [vmem:[#allocation0] sm:$0x1] %vm25, %v24
    %s28 = sshllo.u32 0, 1
    %v30 = vld [vmem:[#allocation0] sm:%s28]
    %s31 = sshllo.u32 0, 1
    %32 = vst [vmem:[%s1] sm:%s31] %v30

// kernel: tile.69
$region0: #{tile.69}
  #allocation0 [shape = 's32[1]{0}', space=sflag, size = 0x4, scoped, tag = 'scoped memory for tile.69']
  %s0 = inlined_call_operand.vmem [shape: f32[8], index: 0, kind: input, shape index: {}]
  %s1 = inlined_call_operand.vmem [shape: f32[4,8], index: 1, kind: output, shape index: {}]
  // Predicated region
  $region2: #{tile.69} parent=0 // pred_check
    _
  $region3: #{tile.69} parent=0 // pred_check_branch
    %3 = sbr.rel (0) target = $region5
  $region4: #{tile.69} parent=0 // pred_region
    _
  $region5: #{tile.69} parent=0 // pred_fallthru
    _
  %v4 = vld [vmem:[%s0] ss:$0 sm:$0xff]
  %5 = vst [vmem:[%s1] sm:$0xf] %v4

// kernel: tile.71
$region0: #{tile.71}
  %s0 = inlined_call_operand.vmem [shape: f32[4,8], index: 0, kind: input, shape index: {}]
  %s1 = inlined_call_operand.vmem [shape: f32[1,32], index: 1, kind: output, shape index: {}]
  $region1: #{tile.71} parent=0
    #allocation0 [shape = 'u8[4096]{0}', space=vmem, size = 0x1000, scoped, tag = 'scoped mem for output reshape']
    #allocation1 [shape = 'u8[4096]{0}', space=vmem, size = 0x1000, scoped, tag = 'scoped mem for input reshape']
    %s3 = sshllo.u32 0, 4
    %v4 = vld [vmem:[%s0] sm:%s3]
    %5 = vst [vmem:[#allocation1] sm:%s3] %v4
    %v6 = vld [vmem:[#allocation1] sm:$0x1]
    %vm7 = vcmask 64512
    %8 = vst.msk [vmem:[#allocation0] sm:$0x1] %vm7, %v6
    %s9 = scalar_lea.vmem [#allocation1], 3
    %v10 = vld [vmem:[%s9] sm:$0x1]
    %11 = vrot.lane.b32.xlu0 %v10, 24
    %v12 = vpop.permute.xlu0 %11
    %vm13 = vcmask 261312
    %14 = vst.msk [vmem:[#allocation0] sm:$0x1] %vm13, %v12
    %s15 = scalar_lea.vmem [#allocation1], 2
    %v16 = vld [vmem:[%s15] sm:$0x1]
    %17 = vrot.lane.b32.xlu0 %v16, 16
    %v18 = vpop.permute.xlu0 %17
    %vm19 = vcmask 195712
    %20 = vst.msk [vmem:[#allocation0] sm:$0x1] %vm19, %v18
    %s21 = scalar_lea.vmem [#allocation1], 1
    %v22 = vld [vmem:[%s21] sm:$0x1]
    %23 = vrot.lane.b32.xlu0 %v22, 8
    %v24 = vpop.permute.xlu0 %23
    %vm25 = vcmask 130112
    %26 = vst.msk [vmem:[#allocation0] sm:$0x1] %vm25, %v24
    %s28 = sshllo.u32 0, 1
    %v30 = vld [vmem:[#allocation0] sm:%s28]
    %s31 = sshllo.u32 0, 1
    %32 = vst [vmem:[%s1] sm:%s31] %v30

// kernel: tile.59
$region0: #{tile.59}
  #allocation0 [shape = 's32[1]{0}', space=sflag, size = 0x4, scoped, tag = 'scoped memory for tile.59']
  %s0 = inlined_call_operand.vmem [shape: f32[16], index: 0, kind: input, shape index: {}]
  %s1 = inlined_call_operand.vmem [shape: f32[4,16], index: 1, kind: output, shape index: {}]
  // Predicated region
  $region2: #{tile.59} parent=0 // pred_check
    _
  $region3: #{tile.59} parent=0 // pred_check_branch
    %3 = sbr.rel (0) target = $region5
  $region4: #{tile.59} parent=0 // pred_region
    _
  $region5: #{tile.59} parent=0 // pred_fallthru
    _
  %v4 = vld [vmem:[%s0] ss:$0 sm:$0xff]
  %5 = vst [vmem:[%s1] sm:$0xf] %v4

// kernel: tile.61
$region0: #{tile.61}
  %s0 = inlined_call_operand.vmem [shape: f32[4,16], index: 0, kind: input, shape index: {}]
  %s1 = inlined_call_operand.vmem [shape: f32[1,64], index: 1, kind: output, shape index: {}]
  $region1: #{tile.61} parent=0
    #allocation0 [shape = 'u8[4096]{0}', space=vmem, size = 0x1000, scoped, tag = 'scoped mem for output reshape']
    #allocation1 [shape = 'u8[4096]{0}', space=vmem, size = 0x1000, scoped, tag = 'scoped mem for input reshape']
    %s3 = sshllo.u32 0, 4
    %v4 = vld [vmem:[%s0] sm:%s3]
    %5 = vst [vmem:[#allocation1] sm:%s3] %v4
    %v6 = vld [vmem:[#allocation1] sm:$0x1]
    %vm7 = vcmask 130048
    %8 = vst.msk [vmem:[#allocation0] sm:$0x1] %vm7, %v6
    %s9 = scalar_lea.vmem [#allocation1], 3
    %v10 = vld [vmem:[%s9] sm:$0x1]
    %11 = vrot.lane.b32.xlu0 %v10, 48
    %v12 = vpop.permute.xlu0 %11
    %vm13 = vcmask 523648
    %14 = vst.msk [vmem:[#allocation0] sm:$0x1] %vm13, %v12
    %s15 = scalar_lea.vmem [#allocation1], 2
    %v16 = vld [vmem:[%s15] sm:$0x1]
    %17 = vrot.lane.b32.xlu0 %v16, 32
    %v18 = vpop.permute.xlu0 %17
    %vm19 = vcmask 392448
    %20 = vst.msk [vmem:[#allocation0] sm:$0x1] %vm19, %v18
    %s21 = scalar_lea.vmem [#allocation1], 1
    %v22 = vld [vmem:[%s21] sm:$0x1]
    %23 = vrot.lane.b32.xlu0 %v22, 16
    %v24 = vpop.permute.xlu0 %23
    %vm25 = vcmask 261248
    %26 = vst.msk [vmem:[#allocation0] sm:$0x1] %vm25, %v24
    %s28 = sshllo.u32 0, 1
    %v30 = vld [vmem:[#allocation0] sm:%s28]
    %s31 = sshllo.u32 0, 1
    %32 = vst [vmem:[%s1] sm:%s31] %v30

// kernel: tile.49
$region0: #{tile.49}
  #allocation0 [shape = 's32[1]{0}', space=sflag, size = 0x4, scoped, tag = 'scoped memory for tile.49']
  %s0 = inlined_call_operand.vmem [shape: f32[32], index: 0, kind: input, shape index: {}]
  %s1 = inlined_call_operand.vmem [shape: f32[4,32], index: 1, kind: output, shape index: {}]
  // Predicated region
  $region2: #{tile.49} parent=0 // pred_check
    _
  $region3: #{tile.49} parent=0 // pred_check_branch
    %3 = sbr.rel (0) target = $region5
  $region4: #{tile.49} parent=0 // pred_region
    _
  $region5: #{tile.49} parent=0 // pred_fallthru
    _
  %v4 = vld [vmem:[%s0] ss:$0 sm:$0xff]
  %5 = vst [vmem:[%s1] sm:$0xf] %v4

// kernel: tile.51
$region0: #{tile.51}
  %s0 = inlined_call_operand.vmem [shape: f32[4,32], index: 0, kind: input, shape index: {}]
  %s1 = inlined_call_operand.vmem [shape: f32[1,128], index: 1, kind: output, shape index: {}]
  $region1: #{tile.51} parent=0
    #allocation0 [shape = 'u8[4096]{0}', space=vmem, size = 0x1000, scoped, tag = 'scoped mem for output reshape']
    #allocation1 [shape = 'u8[4096]{0}', space=vmem, size = 0x1000, scoped, tag = 'scoped mem for input reshape']
    %s3 = sshllo.u32 0, 4
    %v4 = vld [vmem:[%s0] sm:%s3]
    %5 = vst [vmem:[#allocation1] sm:%s3] %v4
    %v6 = vld [vmem:[#allocation1] sm:$0x1]
    %vm7 = vcmask 261120
    %8 = vst.msk [vmem:[#allocation0] sm:$0x1] %vm7, %v6
    %s9 = scalar_lea.vmem [#allocation1], 3
    %v10 = vld [vmem:[%s9] sm:$0x1]
    %11 = vrot.lane.b32.xlu0 %v10, 96
    %v12 = vpop.permute.xlu0 %11
    %vm13 = vcmask 1048320
    %14 = vst.msk [vmem:[#allocation0] sm:$0x1] %vm13, %v12
    %s15 = scalar_lea.vmem [#allocation1], 2
    %v16 = vld [vmem:[%s15] sm:$0x1]
    %17 = vrot.lane.b32.xlu0 %v16, 64
    %v18 = vpop.permute.xlu0 %17
    %vm19 = vcmask 785920
    %20 = vst.msk [vmem:[#allocation0] sm:$0x1] %vm19, %v18
    %s21 = scalar_lea.vmem [#allocation1], 1
    %v22 = vld [vmem:[%s21] sm:$0x1]
    %23 = vrot.lane.b32.xlu0 %v22, 32
    %v24 = vpop.permute.xlu0 %23
    %vm25 = vcmask 523520
    %26 = vst.msk [vmem:[#allocation0] sm:$0x1] %vm25, %v24
    %s28 = sshllo.u32 0, 1
    %v30 = vld [vmem:[#allocation0] sm:%s28]
    %s31 = sshllo.u32 0, 1
    %32 = vst [vmem:[%s1] sm:%s31] %v30

// kernel: decoder_forward.6
$region0: #{decoder_forward.6}
  #allocation0 [shape = 'u32[]', space=smem, size = 0x4, offset = 0x4, fixed_abs, tag = 'smem constant byte address 0x4 - core index']
  #allocation1 [shape = 'u32[144,128]{1,0:T(1,128)}', space=vmem, size = 0x12000, scoped, tag = 'internal scratch']
  #allocation2 [shape = 'f32[2,64]{1,0:T(2,128)}', space=vmem, size = 0x400, scoped, tag = 'scratch operand']
  %s0 = inlined_call_operand.vmem [shape: bf16[2,32], index: 0, kind: input, shape index: {}]
  %s1 = inlined_call_operand.vmem [shape: bf16[32,64], index: 1, kind: input, shape index: {}]
  %s2 = inlined_call_operand.vmem [shape: f32[1,64], index: 2, kind: input, shape index: {}]
  %s3 = inlined_call_operand.vmem [shape: f32[1,64], index: 3, kind: input, shape index: {}]
  %s4 = inlined_call_operand.vmem [shape: bf16[2,64], index: 4, kind: output, shape index: {}]
  %s5 = sld [smem:[#allocation0]]
  $region34: #{decoder_forward.6} parent=0
    _
  %s7 = ssub.s32 1, %s5
  %s8 = scalar_select 0, %s7, %s5
  // Predicated region
  $region2: #{decoder_forward.6} parent=0 // pred_check
    _
  $region3: #{decoder_forward.6} parent=0 // pred_check_branch
    %10 = sbr.rel (0) target = $region5
  $region4: #{decoder_forward.6} parent=0 // pred_region
    _
  $region5: #{decoder_forward.6} parent=0 // pred_fallthru
    _
  // Predicated region
  $region6: #{decoder_forward.6} parent=0 // pred_check
    _
  $region7: #{decoder_forward.6} parent=0 // pred_check_branch
    %12 = sbr.rel (0) target = $region9
  $region8: #{decoder_forward.6} parent=0 // pred_region
    _
  $region9: #{decoder_forward.6} parent=0 // pred_fallthru
    _
  // Predicated region
  $region10: #{decoder_forward.6} parent=0 // pred_check
    _
  $region11: #{decoder_forward.6} parent=0 // pred_check_branch
    %14 = sbr.rel (0) target = $region13
  $region12: #{decoder_forward.6} parent=0 // pred_region
    _
  $region13: #{decoder_forward.6} parent=0 // pred_fallthru
    _
  // Predicated region
  $region14: #{decoder_forward.6} parent=0 // pred_check
    _
  $region15: #{decoder_forward.6} parent=0 // pred_check_branch
    %16 = sbr.rel (0) target = $region17
  $region16: #{decoder_forward.6} parent=0 // pred_region
    _
  $region17: #{decoder_forward.6} parent=0 // pred_fallthru
    _
  %p18 = scmp.eq.s32.totalorder 0, 0
  // Predicated region
  $region18: #{decoder_forward.6} parent=0 // pred_check
    %p19 = pneg %p18
  $region19: #{decoder_forward.6} parent=0 // pred_check_branch
    %21 = sbr.rel (%p19) target = $region21
  $region20: #{decoder_forward.6} parent=0 // pred_region
    %vm22 = vcmask 517120
    %23 = vst.msk [vmem:[#allocation2] sm:$0x3] %vm22, 0.0
  $region21: #{decoder_forward.6} parent=0 // pred_fallthru
    _
  %v24 = vld [vmem:[#allocation2] sm:$0x3]
  %v25 = vld [vmem:[%s0] sm:$0x1]
  %v26 = vld [vmem:[%s1] sm:$0xf]
  %v27 = vld [vmem:[%s1 + $0x4] sm:$0xf]
  %v28 = vld [vmem:[%s1 + $0x8] sm:$0xf]
  %v29 = vld [vmem:[%s1 + $0xc] sm:$0xf]
  %v34 = vunpack.c.l.b16 %v26
  %v35 = vunpack.c.l.b16 %v27
  %v36 = vunpack.c.l.b16 %v28
  %v37 = vunpack.c.l.b16 %v29
  %v38 = vpack.c.b16 %v35, %v34
  %v39 = vpack.c.b16 %v37, %v36
  %vm42 = vcmask 261120
  %v44 = vsel %vm42, %v25, 0
  %46 = vmatprep.subr.bf16.mxu0 0
  %47 = vmatpush1.bf16.msra.mxu0 %v38
  %48 = vmatprep.subr.bf16.mxu0 0
  %49 = vmatpush1.bf16.msra.mxu0 %v39
  %50 = vmatprep.subr.bf16.mxu0 0
  %51 = vmatpush1.bf16.msra.mxu0 0
  %52 = vmatprep.subr.bf16.mxu0 0
  %53 = vmatpush1.bf16.msra.mxu0 0
  %54 = vmatprep.subr.bf16.mxu0 0
  %55 = vmatpush1.bf16.msra.mxu0 0
  %56 = vmatprep.subr.bf16.mxu0 0
  %57 = vmatpush1.bf16.msra.mxu0 0
  %58 = vmatprep.subr.bf16.mxu0 0
  %59 = vmatpush1.bf16.msra.mxu0 0
  %60 = vmatprep.subr.bf16.mxu0 0
  %61 = vmatpush1.bf16.msra.mxu0 0
  %62 = vmatprep.subr.bf16.mxu0 0
  %63 = vmatpush1.bf16.msra.mxu0 0
  %64 = vmatprep.subr.bf16.mxu0 0
  %65 = vmatpush1.bf16.msra.mxu0 0
  %66 = vmatprep.subr.bf16.mxu0 0
  %67 = vmatpush1.bf16.msra.mxu0 0
  %68 = vmatprep.subr.bf16.mxu0 0
  %69 = vmatpush1.bf16.msra.mxu0 0
  %70 = vmatprep.subr.bf16.mxu0 0
  %71 = vmatpush1.bf16.msra.mxu0 0
  %72 = vmatprep.subr.bf16.mxu0 0
  %73 = vmatpush1.bf16.msra.mxu0 0
  %74 = vmatprep.subr.bf16.mxu0 0
  %75 = vmatpush1.bf16.msra.mxu0 0
  %76 = vmatprep.subr.bf16.mxu0 0
  %77 = vmatpush1.bf16.msra.mxu0 0
  %78 = vmatprep.mubr.bf16.mxu0 0
  %79 = vmatmul.mubr.bf16.gmra.mrb[0].mxu0 %v44
  %v80 = vpop.f32.mrb[0].mxu0
  %v81 = vadd.f32 0.0, %v80
  %v82 = vpop.f32.mrb[0].mxu0
  %v83 = vpop.f32.mrb[0].mxu0
  %v84 = vpop.f32.mrb[0].mxu0
  %85 = vdwg.mxu0
  %v86 = vadd.f32 %v24, %v81
  %vm87 = vcmask 517120
  %88 = vst.msk [vmem:[#allocation2] sm:$0x3] %vm87, %v86
  // Predicated region
  $region22: #{decoder_forward.6} parent=0 // pred_check
    %p89 = pneg %p18
  $region23: #{decoder_forward.6} parent=0 // pred_check_branch
    %91 = sbr.rel (%p89) target = $region25
  $region24: #{decoder_forward.6} parent=0 // pred_region
    %v92 = vld [vmem:[#allocation2] sm:$0x3]
    %v93 = vld [vmem:[%s2] sm:$0x1]
    %v95 = vlaneseq
    %v96 = vshrl.u32 %v95, 7
    %v97 = vsub.s32 0, %v96
    %v98 = vrot.slane %v93, %v97
    %v100 = vmul.f32 %v92, %v98
    %v101 = vld [vmem:[%s3] sm:$0x1]
    %v103 = vlaneseq
    %v104 = vshrl.u32 %v103, 7
    %v105 = vsub.s32 0, %v104
    %v106 = vrot.slane %v101, %v105
    %v108 = vadd.f32 %v100, %v106
    %v109 = vmax.f32 %v108, 0.0
    %v110 = vpack.c.bf16 %v109, %v109
    %vm111 = vcmask 516096
    %112 = vst.msk [vmem:[%s4] sm:$0x1] %vm111, %v110
  $region25: #{decoder_forward.6} parent=0 // pred_fallthru
    _
  // Predicated region
  $region26: #{decoder_forward.6} parent=0 // pred_check
    _
  $region27: #{decoder_forward.6} parent=0 // pred_check_branch
    %114 = sbr.rel (0) target = $region29
  $region28: #{decoder_forward.6} parent=0 // pred_region
    _
  $region29: #{decoder_forward.6} parent=0 // pred_fallthru
    _
  // Predicated region
  $region30: #{decoder_forward.6} parent=0 // pred_check
    _
  $region31: #{decoder_forward.6} parent=0 // pred_check_branch
    %116 = sbr.rel (0) target = $region33
  $region32: #{decoder_forward.6} parent=0 // pred_region
    _
  $region33: #{decoder_forward.6} parent=0 // pred_fallthru
    _

// kernel: decoder_forward.7
$region0: #{decoder_forward.7}
  #allocation0 [shape = 'u32[]', space=smem, size = 0x4, offset = 0x4, fixed_abs, tag = 'smem constant byte address 0x4 - core index']
  #allocation1 [shape = 'u32[144,128]{1,0:T(1,128)}', space=vmem, size = 0x12000, scoped, tag = 'internal scratch']
  #allocation2 [shape = 'f32[2,128]{1,0:T(2,128)}', space=vmem, size = 0x400, scoped, tag = 'scratch operand']
  %s0 = inlined_call_operand.vmem [shape: bf16[2,576], index: 0, kind: input, shape index: {}]
  %s1 = inlined_call_operand.vmem [shape: bf16[576,128], index: 1, kind: input, shape index: {}]
  %s2 = inlined_call_operand.vmem [shape: f32[1,128], index: 2, kind: input, shape index: {}]
  %s3 = inlined_call_operand.vmem [shape: f32[1,128], index: 3, kind: input, shape index: {}]
  %s4 = inlined_call_operand.vmem [shape: bf16[2,128], index: 4, kind: output, shape index: {}]
  %s5 = sld [smem:[#allocation0]]
  $region34: #{decoder_forward.7} parent=0
    _
  %s7 = ssub.s32 1, %s5
  %s8 = scalar_select 0, %s7, %s5
  // Predicated region
  $region2: #{decoder_forward.7} parent=0 // pred_check
    _
  $region3: #{decoder_forward.7} parent=0 // pred_check_branch
    %10 = sbr.rel (0) target = $region5
  $region4: #{decoder_forward.7} parent=0 // pred_region
    _
  $region5: #{decoder_forward.7} parent=0 // pred_fallthru
    _
  // Predicated region
  $region6: #{decoder_forward.7} parent=0 // pred_check
    _
  $region7: #{decoder_forward.7} parent=0 // pred_check_branch
    %12 = sbr.rel (0) target = $region9
  $region8: #{decoder_forward.7} parent=0 // pred_region
    _
  $region9: #{decoder_forward.7} parent=0 // pred_fallthru
    _
  // Predicated region
  $region10: #{decoder_forward.7} parent=0 // pred_check
    _
  $region11: #{decoder_forward.7} parent=0 // pred_check_branch
    %14 = sbr.rel (0) target = $region13
  $region12: #{decoder_forward.7} parent=0 // pred_region
    _
  $region13: #{decoder_forward.7} parent=0 // pred_fallthru
    _
  // Predicated region
  $region14: #{decoder_forward.7} parent=0 // pred_check
    _
  $region15: #{decoder_forward.7} parent=0 // pred_check_branch
    %16 = sbr.rel (0) target = $region17
  $region16: #{decoder_forward.7} parent=0 // pred_region
    _
  $region17: #{decoder_forward.7} parent=0 // pred_fallthru
    _
  %p18 = scmp.eq.s32.totalorder 0, 0
  // Predicated region
  $region18: #{decoder_forward.7} parent=0 // pred_check
    %p19 = pneg %p18
  $region19: #{decoder_forward.7} parent=0 // pred_check_branch
    %21 = sbr.rel (%p19) target = $region21
  $region20: #{decoder_forward.7} parent=0 // pred_region
    %22 = vst [vmem:[#allocation2] sm:$0x3] 0.0
  $region21: #{decoder_forward.7} parent=0 // pred_fallthru
    _
  %v23 = vld [vmem:[#allocation2] sm:$0x3]
  %v24 = vld [vmem:[%s0] sm:$0x1f]
  %v25 = vld [vmem:[%s1] sm:$0xf]
  %v26 = vld [vmem:[%s1 + $0x4] sm:$0xf]
  %v27 = vld [vmem:[%s1 + $0x8] sm:$0xf]
  %v28 = vld [vmem:[%s1 + $0xc] sm:$0xf]
  %v29 = vld [vmem:[%s1 + $0x10] sm:$0xf]
  %v30 = vld [vmem:[%s1 + $0x14] sm:$0xf]
  %v31 = vld [vmem:[%s1 + $0x18] sm:$0xf]
  %v32 = vld [vmem:[%s1 + $0x1c] sm:$0xf]
  %v33 = vld [vmem:[%s1 + $0x20] sm:$0xf]
  %v34 = vld [vmem:[%s1 + $0x24] sm:$0xf]
  %v35 = vld [vmem:[%s1 + $0x28] sm:$0xf]
  %v36 = vld [vmem:[%s1 + $0x2c] sm:$0xf]
  %v37 = vld [vmem:[%s1 + $0x30] sm:$0xf]
  %v38 = vld [vmem:[%s1 + $0x34] sm:$0xf]
  %v39 = vld [vmem:[%s1 + $0x38] sm:$0xf]
  %v40 = vld [vmem:[%s1 + $0x3c] sm:$0xf]
  %v41 = vld [vmem:[%s1 + $0x40] sm:$0xf]
  %v42 = vld [vmem:[%s1 + $0x44] sm:$0xf]
  %v43 = vld [vmem:[%s1 + $0x48] sm:$0xf]
  %v44 = vld [vmem:[%s1 + $0x4c] sm:$0xf]
  %v45 = vld [vmem:[%s1 + $0x50] sm:$0xf]
  %v46 = vld [vmem:[%s1 + $0x54] sm:$0xf]
  %v47 = vld [vmem:[%s1 + $0x58] sm:$0xf]
  %v48 = vld [vmem:[%s1 + $0x5c] sm:$0xf]
  %v49 = vld [vmem:[%s1 + $0x60] sm:$0xf]
  %v50 = vld [vmem:[%s1 + $0x64] sm:$0xf]
  %v51 = vld [vmem:[%s1 + $0x68] sm:$0xf]
  %v52 = vld [vmem:[%s1 + $0x6c] sm:$0xf]
  %v53 = vld [vmem:[%s1 + $0x70] sm:$0xf]
  %v54 = vld [vmem:[%s1 + $0x74] sm:$0xf]
  %v55 = vld [vmem:[%s1 + $0x78] sm:$0xf]
  %v56 = vld [vmem:[%s1 + $0x7c] sm:$0xf]
  %v57 = vld [vmem:[%s1 + $0x80] sm:$0xf]
  %v58 = vld [vmem:[%s1 + $0x84] sm:$0xf]
  %v59 = vld [vmem:[%s1 + $0x88] sm:$0xf]
  %v60 = vld [vmem:[%s1 + $0x8c] sm:$0xf]
  %v61 = vld [vmem:[%s1 + $0x90] sm:$0xf]
  %v62 = vld [vmem:[%s1 + $0x94] sm:$0xf]
  %v63 = vld [vmem:[%s1 + $0x98] sm:$0xf]
  %v64 = vld [vmem:[%s1 + $0x9c] sm:$0xf]
  %v65 = vld [vmem:[%s1 + $0xa0] sm:$0xf]
  %v66 = vld [vmem:[%s1 + $0xa4] sm:$0xf]
  %v67 = vld [vmem:[%s1 + $0xa8] sm:$0xf]
  %v68 = vld [vmem:[%s1 + $0xac] sm:$0xf]
  %v69 = vld [vmem:[%s1 + $0xb0] sm:$0xf]
  %v70 = vld [vmem:[%s1 + $0xb4] sm:$0xf]
  %v71 = vld [vmem:[%s1 + $0xb8] sm:$0xf]
  %v72 = vld [vmem:[%s1 + $0xbc] sm:$0xf]
  %v73 = vld [vmem:[%s1 + $0xc0] sm:$0xf]
  %v74 = vld [vmem:[%s1 + $0xc4] sm:$0xf]
  %v75 = vld [vmem:[%s1 + $0xc8] sm:$0xf]
  %v76 = vld [vmem:[%s1 + $0xcc] sm:$0xf]
  %v77 = vld [vmem:[%s1 + $0xd0] sm:$0xf]
  %v78 = vld [vmem:[%s1 + $0xd4] sm:$0xf]
  %v79 = vld [vmem:[%s1 + $0xd8] sm:$0xf]
  %v80 = vld [vmem:[%s1 + $0xdc] sm:$0xf]
  %v81 = vld [vmem:[%s1 + $0xe0] sm:$0xf]
  %v82 = vld [vmem:[%s1 + $0xe4] sm:$0xf]
  %v83 = vld [vmem:[%s1 + $0xe8] sm:$0xf]
  %v84 = vld [vmem:[%s1 + $0xec] sm:$0xf]
  %v85 = vld [vmem:[%s1 + $0xf0] sm:$0xf]
  %v86 = vld [vmem:[%s1 + $0xf4] sm:$0xf]
  %v87 = vld [vmem:[%s1 + $0xf8] sm:$0xf]
  %v88 = vld [vmem:[%s1 + $0xfc] sm:$0xf]
  %v89 = vld [vmem:[%s1 + $0x100] sm:$0xf]
  %v90 = vld [vmem:[%s1 + $0x104] sm:$0xf]
  %v91 = vld [vmem:[%s1 + $0x108] sm:$0xf]
  %v92 = vld [vmem:[%s1 + $0x10c] sm:$0xf]
  %v93 = vld [vmem:[%s1 + $0x110] sm:$0xf]
  %v94 = vld [vmem:[%s1 + $0x114] sm:$0xf]
  %v95 = vld [vmem:[%s1 + $0x118] sm:$0xf]
  %v96 = vld [vmem:[%s1 + $0x11c] sm:$0xf]
  %v98 = vcombine.high %v24, %v24
  %v100 = vunpack.c.l.s4 1966171168
  %v101 = vunpack.c.0.s8 %v100
  %v102 = vlaneseq
  %v103 = vshrl.u32 %v102, 7
  %v104 = vsub.s32 %v101, %v103
  %v105 = vrot.slane %v24, %v104
  %v107 = vunpack.c.l.s4 1966171168
  %v108 = vunpack.c.0.s8 %v107
  %v109 = vlaneseq
  %v110 = vshrl.u32 %v109, 7
  %v111 = vsub.s32 %v108, %v110
  %v112 = vrot.slane %v98, %v111
  %v113 = vcombine.high %v105, %v105
  %v115 = vunpack.c.l.s4 1966171168
  %v116 = vunpack.c.0.s8 %v115
  %v117 = vlaneseq
  %v118 = vshrl.u32 %v117, 7
  %v119 = vsub.s32 %v116, %v118
  %v120 = vrot.slane %v105, %v119
  %v122 = vunpack.c.l.s4 1966171168
  %v123 = vunpack.c.0.s8 %v122
  %v124 = vlaneseq
  %v125 = vshrl.u32 %v124, 7
  %v126 = vsub.s32 %v123, %v125
  %v127 = vrot.slane %v112, %v126
  %v129 = vunpack.c.l.s4 1966171168
  %v130 = vunpack.c.0.s8 %v129
  %v131 = vlaneseq
  %v132 = vshrl.u32 %v131, 7
  %v133 = vsub.s32 %v130, %v132
  %v134 = vrot.slane %v113, %v133
  %v135 = vcombine.high %v120, %v120
  %v136 = vcombine.high %v134, %v134
  %v213 = vunpack.c.l.b16 %v25
  %v214 = vunpack.c.l.b16 %v26
  %v215 = vunpack.c.l.b16 %v27
  %v216 = vunpack.c.l.b16 %v28
  %v217 = vunpack.c.l.b16 %v29
  %v218 = vunpack.c.l.b16 %v30
  %v219 = vunpack.c.l.b16 %v31
  %v220 = vunpack.c.l.b16 %v32
  %v221 = vunpack.c.l.b16 %v33
  %v222 = vunpack.c.l.b16 %v34
  %v223 = vunpack.c.l.b16 %v35
  %v224 = vunpack.c.l.b16 %v36
  %v225 = vunpack.c.l.b16 %v37
  %v226 = vunpack.c.l.b16 %v38
  %v227 = vunpack.c.l.b16 %v39
  %v228 = vunpack.c.l.b16 %v40
  %v229 = vunpack.c.l.b16 %v41
  %v230 = vunpack.c.l.b16 %v42
  %v231 = vunpack.c.l.b16 %v43
  %v232 = vunpack.c.l.b16 %v44
  %v233 = vunpack.c.l.b16 %v45
  %v234 = vunpack.c.l.b16 %v46
  %v235 = vunpack.c.l.b16 %v47
  %v236 = vunpack.c.l.b16 %v48
  %v237 = vunpack.c.l.b16 %v49
  %v238 = vunpack.c.l.b16 %v50
  %v239 = vunpack.c.l.b16 %v51
  %v240 = vunpack.c.l.b16 %v52
  %v241 = vunpack.c.l.b16 %v53
  %v242 = vunpack.c.l.b16 %v54
  %v243 = vunpack.c.l.b16 %v55
  %v244 = vunpack.c.l.b16 %v56
  %v245 = vunpack.c.l.b16 %v57
  %v246 = vunpack.c.l.b16 %v58
  %v247 = vunpack.c.l.b16 %v59
  %v248 = vunpack.c.l.b16 %v60
  %v249 = vunpack.c.l.b16 %v61
  %v250 = vunpack.c.l.b16 %v62
  %v251 = vunpack.c.l.b16 %v63
  %v252 = vunpack.c.l.b16 %v64
  %v253 = vunpack.c.l.b16 %v65
  %v254 = vunpack.c.l.b16 %v66
  %v255 = vunpack.c.l.b16 %v67
  %v256 = vunpack.c.l.b16 %v68
  %v257 = vunpack.c.l.b16 %v69
  %v258 = vunpack.c.l.b16 %v70
  %v259 = vunpack.c.l.b16 %v71
  %v260 = vunpack.c.l.b16 %v72
  %v261 = vunpack.c.l.b16 %v73
  %v262 = vunpack.c.l.b16 %v74
  %v263 = vunpack.c.l.b16 %v75
  %v264 = vunpack.c.l.b16 %v76
  %v265 = vunpack.c.l.b16 %v77
  %v266 = vunpack.c.l.b16 %v78
  %v267 = vunpack.c.l.b16 %v79
  %v268 = vunpack.c.l.b16 %v80
  %v269 = vunpack.c.l.b16 %v81
  %v270 = vunpack.c.l.b16 %v82
  %v271 = vunpack.c.l.b16 %v83
  %v272 = vunpack.c.l.b16 %v84
  %v273 = vunpack.c.l.b16 %v85
  %v274 = vunpack.c.l.b16 %v86
  %v275 = vunpack.c.l.b16 %v87
  %v276 = vunpack.c.l.b16 %v88
  %v277 = vunpack.c.l.b16 %v89
  %v278 = vunpack.c.l.b16 %v90
  %v279 = vunpack.c.l.b16 %v91
  %v280 = vunpack.c.l.b16 %v92
  %v281 = vunpack.c.l.b16 %v93
  %v282 = vunpack.c.l.b16 %v94
  %v283 = vunpack.c.l.b16 %v95
  %v284 = vunpack.c.l.b16 %v96
  %v285 = vpack.c.b16 %v214, %v213
  %v286 = vpack.c.b16 %v216, %v215
  %v287 = vpack.c.b16 %v218, %v217
  %v288 = vpack.c.b16 %v220, %v219
  %v289 = vpack.c.b16 %v222, %v221
  %v290 = vpack.c.b16 %v224, %v223
  %v291 = vpack.c.b16 %v226, %v225
  %v292 = vpack.c.b16 %v228, %v227
  %v293 = vpack.c.b16 %v230, %v229
  %v294 = vpack.c.b16 %v232, %v231
  %v295 = vpack.c.b16 %v234, %v233
  %v296 = vpack.c.b16 %v236, %v235
  %v297 = vpack.c.b16 %v238, %v237
  %v298 = vpack.c.b16 %v240, %v239
  %v299 = vpack.c.b16 %v242, %v241
  %v300 = vpack.c.b16 %v244, %v243
  %v301 = vpack.c.b16 %v246, %v245
  %v302 = vpack.c.b16 %v248, %v247
  %v303 = vpack.c.b16 %v250, %v249
  %v304 = vpack.c.b16 %v252, %v251
  %v305 = vpack.c.b16 %v254, %v253
  %v306 = vpack.c.b16 %v256, %v255
  %v307 = vpack.c.b16 %v258, %v257
  %v308 = vpack.c.b16 %v260, %v259
  %v309 = vpack.c.b16 %v262, %v261
  %v310 = vpack.c.b16 %v264, %v263
  %v311 = vpack.c.b16 %v266, %v265
  %v312 = vpack.c.b16 %v268, %v267
  %v313 = vpack.c.b16 %v270, %v269
  %v314 = vpack.c.b16 %v272, %v271
  %v315 = vpack.c.b16 %v274, %v273
  %v316 = vpack.c.b16 %v276, %v275
  %v317 = vpack.c.b16 %v278, %v277
  %v318 = vpack.c.b16 %v280, %v279
  %v319 = vpack.c.b16 %v282, %v281
  %v320 = vpack.c.b16 %v284, %v283
  %vm357 = vcmask 523264
  %v359 = vsel %vm357, %v127, 0
  %361 = vmatprep.subr.bf16.mxu0 0
  %362 = vmatpush1.bf16.msra.mxu0 %v285
  %363 = vmatprep.subr.bf16.mxu0 0
  %364 = vmatpush1.bf16.msra.mxu0 %v286
  %365 = vmatprep.subr.bf16.mxu0 0
  %366 = vmatpush1.bf16.msra.mxu0 %v287
  %367 = vmatprep.subr.bf16.mxu0 0
  %368 = vmatpush1.bf16.msra.mxu0 %v288
  %369 = vmatprep.subr.bf16.mxu0 0
  %370 = vmatpush1.bf16.msra.mxu0 %v289
  %371 = vmatprep.subr.bf16.mxu0 0
  %372 = vmatpush1.bf16.msra.mxu0 %v290
  %373 = vmatprep.subr.bf16.mxu0 0
  %374 = vmatpush1.bf16.msra.mxu0 %v291
  %375 = vmatprep.subr.bf16.mxu0 0
  %376 = vmatpush1.bf16.msra.mxu0 %v292
  %377 = vmatprep.subr.bf16.mxu0 0
  %378 = vmatpush1.bf16.msra.mxu0 %v293
  %379 = vmatprep.subr.bf16.mxu0 0
  %380 = vmatpush1.bf16.msra.mxu0 %v294
  %381 = vmatprep.subr.bf16.mxu0 0
  %382 = vmatpush1.bf16.msra.mxu0 %v295
  %383 = vmatprep.subr.bf16.mxu0 0
  %384 = vmatpush1.bf16.msra.mxu0 %v296
  %385 = vmatprep.subr.bf16.mxu0 0
  %386 = vmatpush1.bf16.msra.mxu0 %v297
  %387 = vmatprep.subr.bf16.mxu0 0
  %388 = vmatpush1.bf16.msra.mxu0 %v298
  %389 = vmatprep.subr.bf16.mxu0 0
  %390 = vmatpush1.bf16.msra.mxu0 %v299
  %391 = vmatprep.subr.bf16.mxu0 0
  %392 = vmatpush1.bf16.msra.mxu0 %v300
  %393 = vmatprep.mubr.bf16.mxu0 %v134
  %394 = vmatmul.mubr.bf16.gmra.mrb[0].mxu0 %v120
  %v395 = vpop.f32.mrb[0].mxu0
  %v396 = vadd.f32 0.0, %v395
  %v397 = vpop.f32.mrb[0].mxu0
  %v398 = vpop.f32.mrb[0].mxu0
  %v399 = vpop.f32.mrb[0].mxu0
  %400 = vdwg.mxu0
  %401 = vmatprep.subr.bf16.mxu0 0
  %402 = vmatpush1.bf16.msra.mxu0 %v301
  %403 = vmatprep.subr.bf16.mxu0 0
  %404 = vmatpush1.bf16.msra.mxu0 %v302
  %405 = vmatprep.subr.bf16.mxu0 0
  %406 = vmatpush1.bf16.msra.mxu0 %v303
  %407 = vmatprep.subr.bf16.mxu0 0
  %408 = vmatpush1.bf16.msra.mxu0 %v304
  %409 = vmatprep.subr.bf16.mxu0 0
  %410 = vmatpush1.bf16.msra.mxu0 %v305
  %411 = vmatprep.subr.bf16.mxu0 0
  %412 = vmatpush1.bf16.msra.mxu0 %v306
  %413 = vmatprep.subr.bf16.mxu0 0
  %414 = vmatpush1.bf16.msra.mxu0 %v307
  %415 = vmatprep.subr.bf16.mxu0 0
  %416 = vmatpush1.bf16.msra.mxu0 %v308
  %417 = vmatprep.subr.bf16.mxu0 0
  %418 = vmatpush1.bf16.msra.mxu0 %v309
  %419 = vmatprep.subr.bf16.mxu0 0
  %420 = vmatpush1.bf16.msra.mxu0 %v310
  %421 = vmatprep.subr.bf16.mxu0 0
  %422 = vmatpush1.bf16.msra.mxu0 %v311
  %423 = vmatprep.subr.bf16.mxu0 0
  %424 = vmatpush1.bf16.msra.mxu0 %v312
  %425 = vmatprep.subr.bf16.mxu0 0
  %426 = vmatpush1.bf16.msra.mxu0 %v313
  %427 = vmatprep.subr.bf16.mxu0 0
  %428 = vmatpush1.bf16.msra.mxu0 %v314
  %429 = vmatprep.subr.bf16.mxu0 0
  %430 = vmatpush1.bf16.msra.mxu0 %v315
  %431 = vmatprep.subr.bf16.mxu0 0
  %432 = vmatpush1.bf16.msra.mxu0 %v316
  %433 = vmatprep.mubr.bf16.mxu0 %v136
  %434 = vmatmul.mubr.bf16.gmra.mrb[0].mxu0 %v135
  %v435 = vpop.f32.mrb[0].mxu0
  %v436 = vadd.f32 %v396, %v435
  %v437 = vpop.f32.mrb[0].mxu0
  %v438 = vpop.f32.mrb[0].mxu0
  %v439 = vpop.f32.mrb[0].mxu0
  %440 = vdwg.mxu0
  %441 = vmatprep.subr.bf16.mxu0 0
  %442 = vmatpush1.bf16.msra.mxu0 %v317
  %443 = vmatprep.subr.bf16.mxu0 0
  %444 = vmatpush1.bf16.msra.mxu0 %v318
  %445 = vmatprep.subr.bf16.mxu0 0
  %446 = vmatpush1.bf16.msra.mxu0 %v319
  %447 = vmatprep.subr.bf16.mxu0 0
  %448 = vmatpush1.bf16.msra.mxu0 %v320
  %449 = vmatprep.subr.bf16.mxu0 0
  %450 = vmatpush1.bf16.msra.mxu0 0
  %451 = vmatprep.subr.bf16.mxu0 0
  %452 = vmatpush1.bf16.msra.mxu0 0
  %453 = vmatprep.subr.bf16.mxu0 0
  %454 = vmatpush1.bf16.msra.mxu0 0
  %455 = vmatprep.subr.bf16.mxu0 0
  %456 = vmatpush1.bf16.msra.mxu0 0
  %457 = vmatprep.subr.bf16.mxu0 0
  %458 = vmatpush1.bf16.msra.mxu0 0
  %459 = vmatprep.subr.bf16.mxu0 0
  %460 = vmatpush1.bf16.msra.mxu0 0
  %461 = vmatprep.subr.bf16.mxu0 0
  %462 = vmatpush1.bf16.msra.mxu0 0
  %463 = vmatprep.subr.bf16.mxu0 0
  %464 = vmatpush1.bf16.msra.mxu0 0
  %465 = vmatprep.subr.bf16.mxu0 0
  %466 = vmatpush1.bf16.msra.mxu0 0
  %467 = vmatprep.subr.bf16.mxu0 0
  %468 = vmatpush1.bf16.msra.mxu0 0
  %469 = vmatprep.subr.bf16.mxu0 0
  %470 = vmatpush1.bf16.msra.mxu0 0
  %471 = vmatprep.subr.bf16.mxu0 0
  %472 = vmatpush1.bf16.msra.mxu0 0
  %473 = vmatprep.mubr.bf16.mxu0 0
  %474 = vmatmul.mubr.bf16.gmra.mrb[0].mxu0 %v359
  %v475 = vpop.f32.mrb[0].mxu0
  %v476 = vadd.f32 %v436, %v475
  %v477 = vpop.f32.mrb[0].mxu0
  %v478 = vpop.f32.mrb[0].mxu0
  %v479 = vpop.f32.mrb[0].mxu0
  %480 = vdwg.mxu0
  %v481 = vadd.f32 %v23, %v476
  %482 = vst [vmem:[#allocation2] sm:$0x3] %v481
  // Predicated region
  $region22: #{decoder_forward.7} parent=0 // pred_check
    %p483 = pneg %p18
  $region23: #{decoder_forward.7} parent=0 // pred_check_branch
    %485 = sbr.rel (%p483) target = $region25
  $region24: #{decoder_forward.7} parent=0 // pred_region
    %v486 = vld [vmem:[#allocation2] sm:$0x3]
    %v487 = vld [vmem:[%s2] sm:$0x1]
    %v489 = vlaneseq
    %v490 = vshrl.u32 %v489, 7
    %v491 = vsub.s32 0, %v490
    %v492 = vrot.slane %v487, %v491
    %v494 = vmul.f32 %v486, %v492
    %v495 = vld [vmem:[%s3] sm:$0x1]
    %v497 = vlaneseq
    %v498 = vshrl.u32 %v497, 7
    %v499 = vsub.s32 0, %v498
    %v500 = vrot.slane %v495, %v499
    %v502 = vadd.f32 %v494, %v500
    %v503 = vmax.f32 %v502, 0.0
    %v504 = vpack.c.bf16 %v503, %v503
    %505 = vst [vmem:[%s4] sm:$0x1] %v504
  $region25: #{decoder_forward.7} parent=0 // pred_fallthru
    _
  // Predicated region
  $region26: #{decoder_forward.7} parent=0 // pred_check
    _
  $region27: #{decoder_forward.7} parent=0 // pred_check_branch
    %507 = sbr.rel (0) target = $region29
  $region28: #{decoder_forward.7} parent=0 // pred_region
    _
  $region29: #{decoder_forward.7} parent=0 // pred_fallthru
    _
  // Predicated region
  $region30: #{decoder_forward.7} parent=0 // pred_check
    _
  $region31: #{decoder_forward.7} parent=0 // pred_check_branch
    %509 = sbr.rel (0) target = $region33
  $region32: #{decoder_forward.7} parent=0 // pred_region
    _
  $region33: #{decoder_forward.7} parent=0 // pred_fallthru
    _

// kernel: decoder_forward.8
$region0: #{decoder_forward.8}
  #allocation0 [shape = 'u32[]', space=smem, size = 0x4, offset = 0x4, fixed_abs, tag = 'smem constant byte address 0x4 - core index']
  #allocation1 [shape = 'u32[144,128]{1,0:T(1,128)}', space=vmem, size = 0x12000, scoped, tag = 'internal scratch']
  #allocation2 [shape = 'f32[8,64]{1,0:T(8,128)}', space=vmem, size = 0x1000, scoped, tag = 'scratch operand']
  %s0 = inlined_call_operand.vmem [shape: bf16[8,288], index: 0, kind: input, shape index: {}]
  %s1 = inlined_call_operand.vmem [shape: bf16[288,64], index: 1, kind: input, shape index: {}]
  %s2 = inlined_call_operand.vmem [shape: f32[1,64], index: 2, kind: input, shape index: {}]
  %s3 = inlined_call_operand.vmem [shape: f32[1,64], index: 3, kind: input, shape index: {}]
  %s4 = inlined_call_operand.vmem [shape: bf16[8,64], index: 4, kind: output, shape index: {}]
  %s5 = sld [smem:[#allocation0]]
  $region34: #{decoder_forward.8} parent=0
    _
  %s7 = ssub.s32 1, %s5
  %s8 = scalar_select 0, %s7, %s5
  // Predicated region
  $region2: #{decoder_forward.8} parent=0 // pred_check
    _
  $region3: #{decoder_forward.8} parent=0 // pred_check_branch
    %10 = sbr.rel (0) target = $region5
  $region4: #{decoder_forward.8} parent=0 // pred_region
    _
  $region5: #{decoder_forward.8} parent=0 // pred_fallthru
    _
  // Predicated region
  $region6: #{decoder_forward.8} parent=0 // pred_check
    _
  $region7: #{decoder_forward.8} parent=0 // pred_check_branch
    %12 = sbr.rel (0) target = $region9
  $region8: #{decoder_forward.8} parent=0 // pred_region
    _
  $region9: #{decoder_forward.8} parent=0 // pred_fallthru
    _
  // Predicated region
  $region10: #{decoder_forward.8} parent=0 // pred_check
    _
  $region11: #{decoder_forward.8} parent=0 // pred_check_branch
    %14 = sbr.rel (0) target = $region13
  $region12: #{decoder_forward.8} parent=0 // pred_region
    _
  $region13: #{decoder_forward.8} parent=0 // pred_fallthru
    _
  // Predicated region
  $region14: #{decoder_forward.8} parent=0 // pred_check
    _
  $region15: #{decoder_forward.8} parent=0 // pred_check_branch
    %16 = sbr.rel (0) target = $region17
  $region16: #{decoder_forward.8} parent=0 // pred_region
    _
  $region17: #{decoder_forward.8} parent=0 // pred_fallthru
    _
  %p18 = scmp.eq.s32.totalorder 0, 0
  // Predicated region
  $region18: #{decoder_forward.8} parent=0 // pred_check
    %p19 = pneg %p18
  $region19: #{decoder_forward.8} parent=0 // pred_check_branch
    %21 = sbr.rel (%p19) target = $region21
  $region20: #{decoder_forward.8} parent=0 // pred_region
    %vm22 = vcmask 523264
    %23 = vst.msk [vmem:[#allocation2] sm:$0xff] %vm22, 0.0
  $region21: #{decoder_forward.8} parent=0 // pred_fallthru
    _
  %v24 = vld [vmem:[#allocation2] sm:$0xff]
  %v25 = vld [vmem:[%s0] sm:$0xff]
  %v26 = vld [vmem:[%s0 + $0x8] sm:$0xf]
  %v27 = vld [vmem:[%s1] sm:$0xf]
  %v28 = vld [vmem:[%s1 + $0x4] sm:$0xf]
  %v29 = vld [vmem:[%s1 + $0x8] sm:$0xf]
  %v30 = vld [vmem:[%s1 + $0xc] sm:$0xf]
  %v31 = vld [vmem:[%s1 + $0x10] sm:$0xf]
  %v32 = vld [vmem:[%s1 + $0x14] sm:$0xf]
  %v33 = vld [vmem:[%s1 + $0x18] sm:$0xf]
  %v34 = vld [vmem:[%s1 + $0x1c] sm:$0xf]
  %v35 = vld [vmem:[%s1 + $0x20] sm:$0xf]
  %v36 = vld [vmem:[%s1 + $0x24] sm:$0xf]
  %v37 = vld [vmem:[%s1 + $0x28] sm:$0xf]
  %v38 = vld [vmem:[%s1 + $0x2c] sm:$0xf]
  %v39 = vld [vmem:[%s1 + $0x30] sm:$0xf]
  %v40 = vld [vmem:[%s1 + $0x34] sm:$0xf]
  %v41 = vld [vmem:[%s1 + $0x38] sm:$0xf]
  %v42 = vld [vmem:[%s1 + $0x3c] sm:$0xf]
  %v43 = vld [vmem:[%s1 + $0x40] sm:$0xf]
  %v44 = vld [vmem:[%s1 + $0x44] sm:$0xf]
  %v45 = vld [vmem:[%s1 + $0x48] sm:$0xf]
  %v46 = vld [vmem:[%s1 + $0x4c] sm:$0xf]
  %v47 = vld [vmem:[%s1 + $0x50] sm:$0xf]
  %v48 = vld [vmem:[%s1 + $0x54] sm:$0xf]
  %v49 = vld [vmem:[%s1 + $0x58] sm:$0xf]
  %v50 = vld [vmem:[%s1 + $0x5c] sm:$0xf]
  %v51 = vld [vmem:[%s1 + $0x60] sm:$0xf]
  %v52 = vld [vmem:[%s1 + $0x64] sm:$0xf]
  %v53 = vld [vmem:[%s1 + $0x68] sm:$0xf]
  %v54 = vld [vmem:[%s1 + $0x6c] sm:$0xf]
  %v55 = vld [vmem:[%s1 + $0x70] sm:$0xf]
  %v56 = vld [vmem:[%s1 + $0x74] sm:$0xf]
  %v57 = vld [vmem:[%s1 + $0x78] sm:$0xf]
  %v58 = vld [vmem:[%s1 + $0x7c] sm:$0xf]
  %v59 = vld [vmem:[%s1 + $0x80] sm:$0xf]
  %v60 = vld [vmem:[%s1 + $0x84] sm:$0xf]
  %v61 = vld [vmem:[%s1 + $0x88] sm:$0xf]
  %v62 = vld [vmem:[%s1 + $0x8c] sm:$0xf]
  %v65 = vunpack.c.l.b16 %v25
  %v66 = vunpack.c.h.b16 %v25
  %v67 = vunpack.c.l.b16 %v26
  %v68 = vpack.c.b16 %v65, %v65
  %v69 = vpack.c.b16 %v66, %v66
  %v70 = vpack.c.b16 %v67, %v67
  %v109 = vunpack.c.l.b16 %v27
  %v110 = vunpack.c.l.b16 %v28
  %v111 = vunpack.c.l.b16 %v29
  %v112 = vunpack.c.l.b16 %v30
  %v113 = vunpack.c.l.b16 %v31
  %v114 = vunpack.c.l.b16 %v32
  %v115 = vunpack.c.l.b16 %v33
  %v116 = vunpack.c.l.b16 %v34
  %v117 = vunpack.c.l.b16 %v35
  %v118 = vunpack.c.l.b16 %v36
  %v119 = vunpack.c.l.b16 %v37
  %v120 = vunpack.c.l.b16 %v38
  %v121 = vunpack.c.l.b16 %v39
  %v122 = vunpack.c.l.b16 %v40
  %v123 = vunpack.c.l.b16 %v41
  %v124 = vunpack.c.l.b16 %v42
  %v125 = vunpack.c.l.b16 %v43
  %v126 = vunpack.c.l.b16 %v44
  %v127 = vunpack.c.l.b16 %v45
  %v128 = vunpack.c.l.b16 %v46
  %v129 = vunpack.c.l.b16 %v47
  %v130 = vunpack.c.l.b16 %v48
  %v131 = vunpack.c.l.b16 %v49
  %v132 = vunpack.c.l.b16 %v50
  %v133 = vunpack.c.l.b16 %v51
  %v134 = vunpack.c.l.b16 %v52
  %v135 = vunpack.c.l.b16 %v53
  %v136 = vunpack.c.l.b16 %v54
  %v137 = vunpack.c.l.b16 %v55
  %v138 = vunpack.c.l.b16 %v56
  %v139 = vunpack.c.l.b16 %v57
  %v140 = vunpack.c.l.b16 %v58
  %v141 = vunpack.c.l.b16 %v59
  %v142 = vunpack.c.l.b16 %v60
  %v143 = vunpack.c.l.b16 %v61
  %v144 = vunpack.c.l.b16 %v62
  %v145 = vpack.c.b16 %v110, %v109
  %v146 = vpack.c.b16 %v112, %v111
  %v147 = vpack.c.b16 %v114, %v113
  %v148 = vpack.c.b16 %v116, %v115
  %v149 = vpack.c.b16 %v118, %v117
  %v150 = vpack.c.b16 %v120, %v119
  %v151 = vpack.c.b16 %v122, %v121
  %v152 = vpack.c.b16 %v124, %v123
  %v153 = vpack.c.b16 %v126, %v125
  %v154 = vpack.c.b16 %v128, %v127
  %v155 = vpack.c.b16 %v130, %v129
  %v156 = vpack.c.b16 %v132, %v131
  %v157 = vpack.c.b16 %v134, %v133
  %v158 = vpack.c.b16 %v136, %v135
  %v159 = vpack.c.b16 %v138, %v137
  %v160 = vpack.c.b16 %v140, %v139
  %v161 = vpack.c.b16 %v142, %v141
  %v162 = vpack.c.b16 %v144, %v143
  %vm181 = vcmask 261120
  %v183 = vsel %vm181, %v70, 0
  %185 = vmatprep.subr.bf16.mxu0 0
  %186 = vmatpush1.bf16.msra.mxu0 %v145
  %187 = vmatprep.subr.bf16.mxu0 0
  %188 = vmatpush1.bf16.msra.mxu0 %v146
  %189 = vmatprep.subr.bf16.mxu0 0
  %190 = vmatpush1.bf16.msra.mxu0 %v147
  %191 = vmatprep.subr.bf16.mxu0 0
  %192 = vmatpush1.bf16.msra.mxu0 %v148
  %193 = vmatprep.subr.bf16.mxu0 0
  %194 = vmatpush1.bf16.msra.mxu0 %v149
  %195 = vmatprep.subr.bf16.mxu0 0
  %196 = vmatpush1.bf16.msra.mxu0 %v150
  %197 = vmatprep.subr.bf16.mxu0 0
  %198 = vmatpush1.bf16.msra.mxu0 %v151
  %199 = vmatprep.subr.bf16.mxu0 0
  %200 = vmatpush1.bf16.msra.mxu0 %v152
  %201 = vmatprep.subr.bf16.mxu0 0
  %202 = vmatpush1.bf16.msra.mxu0 %v153
  %203 = vmatprep.subr.bf16.mxu0 0
  %204 = vmatpush1.bf16.msra.mxu0 %v154
  %205 = vmatprep.subr.bf16.mxu0 0
  %206 = vmatpush1.bf16.msra.mxu0 %v155
  %207 = vmatprep.subr.bf16.mxu0 0
  %208 = vmatpush1.bf16.msra.mxu0 %v156
  %209 = vmatprep.subr.bf16.mxu0 0
  %210 = vmatpush1.bf16.msra.mxu0 %v157
  %211 = vmatprep.subr.bf16.mxu0 0
  %212 = vmatpush1.bf16.msra.mxu0 %v158
  %213 = vmatprep.subr.bf16.mxu0 0
  %214 = vmatpush1.bf16.msra.mxu0 %v159
  %215 = vmatprep.subr.bf16.mxu0 0
  %216 = vmatpush1.bf16.msra.mxu0 %v160
  %217 = vmatprep.mubr.bf16.mxu0 %v69
  %218 = vmatmul.mubr.bf16.gmra.mrb[0].mxu0 %v68
  %v219 = vpop.f32.mrb[0].mxu0
  %v220 = vadd.f32 0.0, %v219
  %v221 = vpop.f32.mrb[0].mxu0
  %v222 = vpop.f32.mrb[0].mxu0
  %v223 = vpop.f32.mrb[0].mxu0
  %224 = vdwg.mxu0
  %225 = vmatprep.subr.bf16.mxu0 0
  %226 = vmatpush1.bf16.msra.mxu0 %v161
  %227 = vmatprep.subr.bf16.mxu0 0
  %228 = vmatpush1.bf16.msra.mxu0 %v162
  %229 = vmatprep.subr.bf16.mxu0 0
  %230 = vmatpush1.bf16.msra.mxu0 0
  %231 = vmatprep.subr.bf16.mxu0 0
  %232 = vmatpush1.bf16.msra.mxu0 0
  %233 = vmatprep.subr.bf16.mxu0 0
  %234 = vmatpush1.bf16.msra.mxu0 0
  %235 = vmatprep.subr.bf16.mxu0 0
  %236 = vmatpush1.bf16.msra.mxu0 0
  %237 = vmatprep.subr.bf16.mxu0 0
  %238 = vmatpush1.bf16.msra.mxu0 0
  %239 = vmatprep.subr.bf16.mxu0 0
  %240 = vmatpush1.bf16.msra.mxu0 0
  %241 = vmatprep.subr.bf16.mxu0 0
  %242 = vmatpush1.bf16.msra.mxu0 0
  %243 = vmatprep.subr.bf16.mxu0 0
  %244 = vmatpush1.bf16.msra.mxu0 0
  %245 = vmatprep.subr.bf16.mxu0 0
  %246 = vmatpush1.bf16.msra.mxu0 0
  %247 = vmatprep.subr.bf16.mxu0 0
  %248 = vmatpush1.bf16.msra.mxu0 0
  %249 = vmatprep.subr.bf16.mxu0 0
  %250 = vmatpush1.bf16.msra.mxu0 0
  %251 = vmatprep.subr.bf16.mxu0 0
  %252 = vmatpush1.bf16.msra.mxu0 0
  %253 = vmatprep.subr.bf16.mxu0 0
  %254 = vmatpush1.bf16.msra.mxu0 0
  %255 = vmatprep.subr.bf16.mxu0 0
  %256 = vmatpush1.bf16.msra.mxu0 0
  %257 = vmatprep.mubr.bf16.mxu0 0
  %258 = vmatmul.mubr.bf16.gmra.mrb[0].mxu0 %v183
  %v259 = vpop.f32.mrb[0].mxu0
  %v260 = vadd.f32 %v220, %v259
  %v261 = vpop.f32.mrb[0].mxu0
  %v262 = vpop.f32.mrb[0].mxu0
  %v263 = vpop.f32.mrb[0].mxu0
  %264 = vdwg.mxu0
  %v265 = vadd.f32 %v24, %v260
  %vm266 = vcmask 523264
  %267 = vst.msk [vmem:[#allocation2] sm:$0xff] %vm266, %v265
  // Predicated region
  $region22: #{decoder_forward.8} parent=0 // pred_check
    %p268 = pneg %p18
  $region23: #{decoder_forward.8} parent=0 // pred_check_branch
    %270 = sbr.rel (%p268) target = $region25
  $region24: #{decoder_forward.8} parent=0 // pred_region
    %v271 = vld [vmem:[#allocation2] sm:$0xff]
    %v272 = vld [vmem:[%s2] sm:$0x1]
    %v274 = vlaneseq
    %v275 = vshrl.u32 %v274, 7
    %v276 = vsub.s32 0, %v275
    %v277 = vrot.slane %v272, %v276
    %v279 = vmul.f32 %v271, %v277
    %v280 = vld [vmem:[%s3] sm:$0x1]
    %v282 = vlaneseq
    %v283 = vshrl.u32 %v282, 7
    %v284 = vsub.s32 0, %v283
    %v285 = vrot.slane %v280, %v284
    %v287 = vadd.f32 %v279, %v285
    %v288 = vmax.f32 %v287, 0.0
    %v289 = vpack.c.bf16 %v288, %v288
    %vm290 = vcmask 519168
    %291 = vst.msk [vmem:[%s4] sm:$0xf] %vm290, %v289
  $region25: #{decoder_forward.8} parent=0 // pred_fallthru
    _
  // Predicated region
  $region26: #{decoder_forward.8} parent=0 // pred_check
    _
  $region27: #{decoder_forward.8} parent=0 // pred_check_branch
    %293 = sbr.rel (0) target = $region29
  $region28: #{decoder_forward.8} parent=0 // pred_region
    _
  $region29: #{decoder_forward.8} parent=0 // pred_fallthru
    _
  // Predicated region
  $region30: #{decoder_forward.8} parent=0 // pred_check
    _
  $region31: #{decoder_forward.8} parent=0 // pred_check_branch
    %295 = sbr.rel (0) target = $region33
  $region32: #{decoder_forward.8} parent=0 // pred_region
    _
  $region33: #{decoder_forward.8} parent=0 // pred_fallthru
    _

// kernel: decoder_forward.9
$region0: #{decoder_forward.9}
  #allocation0 [shape = 'u32[]', space=smem, size = 0x4, offset = 0x4, fixed_abs, tag = 'smem constant byte address 0x4 - core index']
  #allocation1 [shape = 'u32[144,128]{1,0:T(1,128)}', space=vmem, size = 0x12000, scoped, tag = 'internal scratch']
  #allocation2 [shape = 'f32[16,32]{1,0:T(8,128)}', space=vmem, size = 0x2000, scoped, tag = 'scratch operand']
  %s0 = inlined_call_operand.vmem [shape: bf16[32,144], index: 0, kind: input, shape index: {}]
  %s1 = inlined_call_operand.vmem [shape: bf16[144,32], index: 1, kind: input, shape index: {}]
  %s2 = inlined_call_operand.vmem [shape: f32[1,32], index: 2, kind: input, shape index: {}]
  %s3 = inlined_call_operand.vmem [shape: f32[1,32], index: 3, kind: input, shape index: {}]
  %s4 = inlined_call_operand.vmem [shape: bf16[32,32], index: 4, kind: output, shape index: {}]
  %s5 = sld [smem:[#allocation0]]
  $region57: #{decoder_forward.9} parent=0
    _
  %s7 = ssub.s32 1, %s5
  %s8 = scalar_select 0, %s7, %s5
  loop: start=0, step=1, limit=4
  $region2: #{decoder_forward.9} parent=0 // loop_pre_header
    _
  $region3: #{decoder_forward.9} parent=0 // loop_header
    %s10 = sphi 0, %s14
    %p11 = scmp.ge.s32.totalorder %s10, 4
    %s17 = sphi 0, %s29
    %s18 = sphi 0, %s25
    %s19 = sphi 0, %s17
    %s20 = sphi 0, %s18
    %s21 = sphi 0, %s19
    %s22 = sphi 0, %s20
    %s34 = sphi 0, %s36
    %s37 = sphi 0, %s34
    %s38 = sphi 0, %s37
    %s54 = sphi 0, %s38
    %s60 = sphi 0, %s62
    %s63 = sphi 0, %s60
    %s64 = sphi 0, %s63
    %s80 = sphi 0, %s64
    %s84 = sphi 0, %s84
    %s86 = sphi 0, %s84
    %s87 = sphi 0, %s86
    %s101 = sphi 0, %s87
    %s105 = sphi 0, %s105
    %s107 = sphi 0, %s105
    %s108 = sphi 0, %s107
    %s122 = sphi 0, %s108
    %s128 = sphi 0, %s130
    %s131 = sphi 0, %s128
    %s132 = sphi 0, %s131
    %s148 = sphi 0, %s132
  $region4: #{decoder_forward.9} parent=0 // loop_header_branch
    %13 = sbr.rel (%p11) target = $region8
  $region5: #{decoder_forward.9} parent=0 // loop_body
    %s15 = ssub.s32 %s10, 1
    %s16 = ssub.s32 %s10, 2
    %s23 = sadd.s32 1, %s18
    %p24 = scmp.ge.s32.totalorder %s23, 1
    %s25 = scalar_select %p24, 0, %s23
    %s26 = sadd.s32 1, %s17
    %s27 = scalar_select %p24, %s26, %s17
    %p28 = scmp.ge.s32.totalorder %s27, 2
    %s29 = scalar_select %p28, 0, %s27
    %s30 = ssub.s32 %s17, %s29
    %s31 = ssub.s32 %s18, %s25
    %s32 = sor.u32 %s30, %s31
    %p33 = scmp.eq.s32.totalorder %s32, 0
    %s35 = sadd.s32 %s34, 1
    %s36 = scalar_select %p33, %s34, %s35
    %p39 = pneg %p33
    %p40 = scmp.eq.s32.totalorder %s10, 1
    %p41 = por %p39, %p40
    %p42 = scmp.ne.s32.totalorder %s34, %s37
    %p43 = scmp.eq.s32.totalorder %s10, 0
    %p44 = por %p42, %p43
    %p45 = scmp.ne.s32.totalorder %s34, %s37
    %p46 = scmp.eq.s32.totalorder %s15, 1
    %p47 = por %p45, %p46
    %p48 = scmp.ne.s32.totalorder %s37, %s38
    %p49 = scmp.eq.s32.totalorder %s15, 0
    %p50 = por %p48, %p49
    %p51 = scmp.ne.s32.totalorder %s37, %s38
    %p52 = scmp.eq.s32.totalorder %s16, 1
    %p53 = por %p51, %p52
    %p55 = scmp.ne.s32.totalorder %s38, %s54
    %p56 = scmp.eq.s32.totalorder %s16, 0
    %p57 = por %p55, %p56
    %s58 = ssub.s32 %s18, %s25
    %p59 = scmp.eq.s32.totalorder %s58, 0
    %s61 = sadd.s32 %s60, 1
    %s62 = scalar_select %p59, %s60, %s61
    %p65 = pneg %p59
    %p66 = scmp.eq.s32.totalorder %s10, 1
    %p67 = por %p65, %p66
    %p68 = scmp.ne.s32.totalorder %s60, %s63
    %p69 = scmp.eq.s32.totalorder %s10, 0
    %p70 = por %p68, %p69
    %p71 = scmp.ne.s32.totalorder %s60, %s63
    %p72 = scmp.eq.s32.totalorder %s15, 1
    %p73 = por %p71, %p72
    %p74 = scmp.ne.s32.totalorder %s63, %s64
    %p75 = scmp.eq.s32.totalorder %s15, 0
    %p76 = por %p74, %p75
    %p77 = scmp.ne.s32.totalorder %s63, %s64
    %p78 = scmp.eq.s32.totalorder %s16, 1
    %p79 = por %p77, %p78
    %p81 = scmp.ne.s32.totalorder %s64, %s80
    %p82 = scmp.eq.s32.totalorder %s16, 0
    %p83 = por %p81, %p82
    %s85 = sadd.s32 %s84, 1
    %p88 = scmp.eq.s32.totalorder %s10, 1
    %p89 = scmp.ne.s32.totalorder %s84, %s86
    %p90 = scmp.eq.s32.totalorder %s10, 0
    %p91 = por %p89, %p90
    %p92 = scmp.ne.s32.totalorder %s84, %s86
    %p93 = scmp.eq.s32.totalorder %s15, 1
    %p94 = por %p92, %p93
    %p95 = scmp.ne.s32.totalorder %s86, %s87
    %p96 = scmp.eq.s32.totalorder %s15, 0
    %p97 = por %p95, %p96
    %p98 = scmp.ne.s32.totalorder %s86, %s87
    %p99 = scmp.eq.s32.totalorder %s16, 1
    %p100 = por %p98, %p99
    %p102 = scmp.ne.s32.totalorder %s87, %s101
    %p103 = scmp.eq.s32.totalorder %s16, 0
    %p104 = por %p102, %p103
    %s106 = sadd.s32 %s105, 1
    %p109 = scmp.eq.s32.totalorder %s10, 1
    %p110 = scmp.ne.s32.totalorder %s105, %s107
    %p111 = scmp.eq.s32.totalorder %s10, 0
    %p112 = por %p110, %p111
    %p113 = scmp.ne.s32.totalorder %s105, %s107
    %p114 = scmp.eq.s32.totalorder %s15, 1
    %p115 = por %p113, %p114
    %p116 = scmp.ne.s32.totalorder %s107, %s108
    %p117 = scmp.eq.s32.totalorder %s15, 0
    %p118 = por %p116, %p117
    %p119 = scmp.ne.s32.totalorder %s107, %s108
    %p120 = scmp.eq.s32.totalorder %s16, 1
    %p121 = por %p119, %p120
    %p123 = scmp.ne.s32.totalorder %s108, %s122
    %p124 = scmp.eq.s32.totalorder %s16, 0
    %p125 = por %p123, %p124
    %s126 = ssub.s32 %s17, %s29
    %p127 = scmp.eq.s32.totalorder %s126, 0
    %s129 = sadd.s32 %s128, 1
    %s130 = scalar_select %p127, %s128, %s129
    %p133 = pneg %p127
    %p134 = scmp.eq.s32.totalorder %s10, 1
    %p135 = por %p133, %p134
    %p136 = scmp.ne.s32.totalorder %s128, %s131
    %p137 = scmp.eq.s32.totalorder %s10, 0
    %p138 = por %p136, %p137
    %p139 = scmp.ne.s32.totalorder %s128, %s131
    %p140 = scmp.eq.s32.totalorder %s15, 1
    %p141 = por %p139, %p140
    %p142 = scmp.ne.s32.totalorder %s131, %s132
    %p143 = scmp.eq.s32.totalorder %s15, 0
    %p144 = por %p142, %p143
    %p145 = scmp.ne.s32.totalorder %s131, %s132
    %p146 = scmp.eq.s32.totalorder %s16, 1
    %p147 = por %p145, %p146
    %p149 = scmp.ne.s32.totalorder %s132, %s148
    %p150 = scmp.eq.s32.totalorder %s16, 0
    %p151 = por %p149, %p150
    %p152 = scmp.le.s32.totalorder 1, %s10
    %p153 = scmp.lt.s32.totalorder %s10, 3
    %p154 = pnand %p152, %p153
    %p155 = pneg %p154
    // Predicated region
    $region9: #{decoder_forward.9} parent=5 // pred_check
      _
    $region10: #{decoder_forward.9} parent=5 // pred_check_branch
      %157 = sbr.rel (%p154) target = $region12
    $region11: #{decoder_forward.9} parent=5 // pred_region
      %s158 = ssub.s32 %s10, 1
      // Predicated region
      $region13: #{decoder_forward.9} parent=11 // pred_check
        %p159 = pneg %p76
      $region14: #{decoder_forward.9} parent=11 // pred_check_branch
        %161 = sbr.rel (%p159) target = $region16
      $region15: #{decoder_forward.9} parent=11 // pred_region
        %s162 = smul.u32 18, %s20
        %p163 = scmp.lt.s32.totalorder %s162, 17
        %s164 = scalar_select %p163, %s162, 17
        %s165 = smul.addr %s164, 4
        %s166 = scalar_lea.vmem %s1, %s165
        %s167 = smul.u32 18, %s20
      $region16: #{decoder_forward.9} parent=11 // pred_fallthru
        _
      // Predicated region
      $region17: #{decoder_forward.9} parent=11 // pred_check
        %p168 = pneg %p97
      $region18: #{decoder_forward.9} parent=11 // pred_check_branch
        %170 = sbr.rel (%p168) target = $region20
      $region19: #{decoder_forward.9} parent=11 // pred_region
        _
      $region20: #{decoder_forward.9} parent=11 // pred_fallthru
        _
      // Predicated region
      $region21: #{decoder_forward.9} parent=11 // pred_check
        %p171 = pneg %p118
      $region22: #{decoder_forward.9} parent=11 // pred_check_branch
        %173 = sbr.rel (%p171) target = $region24
      $region23: #{decoder_forward.9} parent=11 // pred_region
        _
      $region24: #{decoder_forward.9} parent=11 // pred_fallthru
        _
    $region12: #{decoder_forward.9} parent=5 // pred_fallthru
      _
    %p174 = scmp.lt.s32.totalorder %s10, 2
    // Predicated region
    $region25: #{decoder_forward.9} parent=5 // pred_check
      %p175 = pneg %p174
    $region26: #{decoder_forward.9} parent=5 // pred_check_branch
      %177 = sbr.rel (%p175) target = $region28
    $region27: #{decoder_forward.9} parent=5 // pred_region
      // Predicated region
      $region29: #{decoder_forward.9} parent=27 // pred_check
        %p178 = pneg %p44
      $region30: #{decoder_forward.9} parent=27 // pred_check_branch
        %180 = sbr.rel (%p178) target = $region32
      $region31: #{decoder_forward.9} parent=27 // pred_region
        %s181 = smul.u32 2, %s17
        %s182 = smul.u32 2, %s18
        %p183 = scmp.lt.s32.totalorder %s181, 3
        %s184 = scalar_select %p183, %s181, 3
        %p185 = scmp.lt.s32.totalorder %s182, 1
        %s186 = scalar_select %p185, %s182, 1
        %s187 = smul.addr %s184, 2
        %s188 = sadd.s32 %s186, %s187
        %s189 = smul.addr %s188, 4
        %s190 = scalar_lea.vmem %s0, %s189
        %s191 = smul.u32 2, %s17
        %s192 = smul.u32 2, %s18
      $region32: #{decoder_forward.9} parent=27 // pred_fallthru
        _
    $region28: #{decoder_forward.9} parent=5 // pred_fallthru
      _
    %p193 = scmp.le.s32.totalorder 1, %s10
    %p194 = scmp.lt.s32.totalorder %s10, 3
    %p195 = pnand %p193, %p194
    %p196 = pneg %p195
    // Predicated region
    $region33: #{decoder_forward.9} parent=5 // pred_check
      _
    $region34: #{decoder_forward.9} parent=5 // pred_check_branch
      %198 = sbr.rel (%p195) target = $region36
    $region35: #{decoder_forward.9} parent=5 // pred_region
      %s199 = ssub.s32 %s10, 1
      %s200 = smul.u32 2, %s19
      %s201 = smul.u32 2, %s20
      %p202 = scmp.lt.s32.totalorder %s200, 3
      %s203 = scalar_select %p202, %s200, 3
      %p204 = scmp.lt.s32.totalorder %s201, 1
      %s205 = scalar_select %p204, %s201, 1
      %s206 = smul.addr %s203, 2
      %s207 = sadd.s32 %s205, %s206
      %s208 = smul.addr %s207, 4
      %s209 = scalar_lea.vmem %s0, %s208
      %p210 = pneg %p50
      %p211 = pneg %p47
      %s212 = smul.u32 18, %s20
      %p213 = scmp.lt.s32.totalorder %s212, 17
      %s214 = scalar_select %p213, %s212, 17
      %s215 = smul.addr %s214, 4
      %s216 = scalar_lea.vmem %s1, %s215
      %p217 = pneg %p76
      %p218 = pneg %p73
      %p219 = pneg %p97
      %p220 = pneg %p94
      %p221 = pneg %p118
      %p222 = pneg %p115
      %p223 = pneg %p144
      %p224 = pneg %p141
      %s225 = smul.u32 2, %s19
      %p226 = scmp.lt.s32.totalorder %s225, 3
      %s227 = scalar_select %p226, %s225, 3
      %s228 = smul.addr %s227, 4
      %s229 = scalar_lea.vmem %s4, %s228
      %s230 = smul.u32 2, %s19
      %s231 = smul.u32 2, %s20
      %p232 = scmp.lt.s32.totalorder %s230, 3
      %s233 = scalar_select %p232, %s230, 3
      %p234 = scmp.lt.s32.totalorder %s231, 1
      %s235 = scalar_select %p234, %s231, 1
      %s236 = smul.addr %s233, 2
      %s237 = sadd.s32 %s235, %s236
      %s238 = smul.addr %s237, 4
      %s239 = scalar_lea.vmem %s0, %s238
      %s240 = smul.u32 2, %s19
      %s241 = smul.u32 2, %s20
      %s242 = smul.u32 18, %s20
      %p243 = scmp.lt.s32.totalorder %s242, 17
      %s244 = scalar_select %p243, %s242, 17
      %s245 = smul.addr %s244, 4
      %s246 = scalar_lea.vmem %s1, %s245
      %s247 = smul.u32 18, %s20
      %s248 = smul.u32 2, %s19
      %p249 = scmp.lt.s32.totalorder %s248, 3
      %s250 = scalar_select %p249, %s248, 3
      %s251 = smul.addr %s250, 4
      %s252 = scalar_lea.vmem %s4, %s251
      %s253 = smul.u32 2, %s19
      %p255 = scmp.eq.s32.totalorder %s20, 0
      // Predicated region
      $region37: #{decoder_forward.9} parent=35 // pred_check
        %p256 = pneg %p255
      $region38: #{decoder_forward.9} parent=35 // pred_check_branch
        %258 = sbr.rel (%p256) target = $region40
      $region39: #{decoder_forward.9} parent=35 // pred_region
        %vm259 = vcmask 261120
        %260 = vst.msk [vmem:[#allocation2] sm:$0xff] %vm259, 0.0
        %261 = vst.msk [vmem:[#allocation2 + $0x8] sm:$0xff] %vm259, 0.0
      $region40: #{decoder_forward.9} parent=35 // pred_fallthru
        _
      %v262 = vld [vmem:[#allocation2] sm:$0xff]
      %v263 = vld [vmem:[#allocation2 + $0x8] sm:$0xff]
      %v264 = vld [vmem:[%s239] sm:$0xff]
      %v265 = vld [vmem:[%s239 + $0x8] sm:$0xff]
      %v266 = vld [vmem:[%s246] sm:$0xf]
      %v267 = vld [vmem:[%s246 + $0x4] sm:$0xf]
      %v268 = vld [vmem:[%s246 + $0x8] sm:$0xf]
      %v269 = vld [vmem:[%s246 + $0xc] sm:$0xf]
      %v270 = vld [vmem:[%s246 + $0x10] sm:$0xf]
      %v271 = vld [vmem:[%s246 + $0x14] sm:$0xf]
      %v272 = vld [vmem:[%s246 + $0x18] sm:$0xf]
      %v273 = vld [vmem:[%s246 + $0x1c] sm:$0xf]
      %v274 = vld [vmem:[%s246 + $0x20] sm:$0xf]
      %v275 = vld [vmem:[%s246 + $0x24] sm:$0xf]
      %v276 = vld [vmem:[%s246 + $0x28] sm:$0xf]
      %v277 = vld [vmem:[%s246 + $0x2c] sm:$0xf]
      %v278 = vld [vmem:[%s246 + $0x30] sm:$0xf]
      %v279 = vld [vmem:[%s246 + $0x34] sm:$0xf]
      %v280 = vld [vmem:[%s246 + $0x38] sm:$0xf]
      %v281 = vld [vmem:[%s246 + $0x3c] sm:$0xf]
      %v282 = vld [vmem:[%s246 + $0x40] sm:$0xf]
      %v283 = vld [vmem:[%s246 + $0x44] sm:$0xf]
      %v286 = vunpack.c.l.b16 %v264
      %v287 = vunpack.c.h.b16 %v264
      %v288 = vunpack.c.l.b16 %v265
      %v289 = vunpack.c.h.b16 %v265
      %v290 = vpack.c.b16 %v288, %v286
      %v291 = vpack.c.b16 %v289, %v287
      %v311 = vunpack.c.l.b16 %v266
      %v312 = vunpack.c.l.b16 %v267
      %v313 = vunpack.c.l.b16 %v268
      %v314 = vunpack.c.l.b16 %v269
      %v315 = vunpack.c.l.b16 %v270
      %v316 = vunpack.c.l.b16 %v271
      %v317 = vunpack.c.l.b16 %v272
      %v318 = vunpack.c.l.b16 %v273
      %v319 = vunpack.c.l.b16 %v274
      %v320 = vunpack.c.l.b16 %v275
      %v321 = vunpack.c.l.b16 %v276
      %v322 = vunpack.c.l.b16 %v277
      %v323 = vunpack.c.l.b16 %v278
      %v324 = vunpack.c.l.b16 %v279
      %v325 = vunpack.c.l.b16 %v280
      %v326 = vunpack.c.l.b16 %v281
      %v327 = vunpack.c.l.b16 %v282
      %v328 = vunpack.c.l.b16 %v283
      %v329 = vpack.c.b16 %v312, %v311
      %v330 = vpack.c.b16 %v314, %v313
      %v331 = vpack.c.b16 %v316, %v315
      %v332 = vpack.c.b16 %v318, %v317
      %v333 = vpack.c.b16 %v320, %v319
      %v334 = vpack.c.b16 %v322, %v321
      %v335 = vpack.c.b16 %v324, %v323
      %v336 = vpack.c.b16 %v326, %v325
      %v337 = vpack.c.b16 %v328, %v327
      %vm347 = vcmask 130048
      %v349 = vsel %vm347, %v291, 0
      %351 = vmatprep.subr.bf16.mxu0 0
      %352 = vmatpush1.bf16.msra.mxu0 %v329
      %353 = vmatprep.subr.bf16.mxu0 0
      %354 = vmatpush1.bf16.msra.mxu0 %v330
      %355 = vmatprep.subr.bf16.mxu0 0
      %356 = vmatpush1.bf16.msra.mxu0 %v331
      %357 = vmatprep.subr.bf16.mxu0 0
      %358 = vmatpush1.bf16.msra.mxu0 %v332
      %359 = vmatprep.subr.bf16.mxu0 0
      %360 = vmatpush1.bf16.msra.mxu0 %v333
      %361 = vmatprep.subr.bf16.mxu0 0
      %362 = vmatpush1.bf16.msra.mxu0 %v334
      %363 = vmatprep.subr.bf16.mxu0 0
      %364 = vmatpush1.bf16.msra.mxu0 %v335
      %365 = vmatprep.subr.bf16.mxu0 0
      %366 = vmatpush1.bf16.msra.mxu0 %v336
      %367 = vmatprep.subr.bf16.mxu0 0
      %368 = vmatpush1.bf16.msra.mxu0 %v337
      %369 = vmatprep.subr.bf16.mxu0 0
      %370 = vmatpush1.bf16.msra.mxu0 0
      %371 = vmatprep.subr.bf16.mxu0 0
      %372 = vmatpush1.bf16.msra.mxu0 0
      %373 = vmatprep.subr.bf16.mxu0 0
      %374 = vmatpush1.bf16.msra.mxu0 0
      %375 = vmatprep.subr.bf16.mxu0 0
      %376 = vmatpush1.bf16.msra.mxu0 0
      %377 = vmatprep.subr.bf16.mxu0 0
      %378 = vmatpush1.bf16.msra.mxu0 0
      %379 = vmatprep.subr.bf16.mxu0 0
      %380 = vmatpush1.bf16.msra.mxu0 0
      %381 = vmatprep.subr.bf16.mxu0 0
      %382 = vmatpush1.bf16.msra.mxu0 0
      %383 = vmatprep.mubr.bf16.mxu0 %v349
      %384 = vmatmul.mubr.bf16.gmra.mrb[0].mxu0 %v290
      %v385 = vpop.f32.mrb[0].mxu0
      %v386 = vadd.f32 0.0, %v385
      %v387 = vpop.f32.mrb[0].mxu0
      %v388 = vpop.f32.mrb[0].mxu0
      %v389 = vadd.f32 0.0, %v388
      %v390 = vpop.f32.mrb[0].mxu0
      %391 = vdwg.mxu0
      %v392 = vadd.f32 %v262, %v386
      %v393 = vadd.f32 %v263, %v389
      %vm394 = vcmask 261120
      %395 = vst.msk [vmem:[#allocation2] sm:$0xff] %vm394, %v392
      %396 = vst.msk [vmem:[#allocation2 + $0x8] sm:$0xff] %vm394, %v393
      // Predicated region
      $region41: #{decoder_forward.9} parent=35 // pred_check
        %p397 = pneg %p255
      $region42: #{decoder_forward.9} parent=35 // pred_check_branch
        %399 = sbr.rel (%p397) target = $region44
      $region43: #{decoder_forward.9} parent=35 // pred_region
        %v400 = vld [vmem:[#allocation2] sm:$0xff]
        %v401 = vld [vmem:[#allocation2 + $0x8] sm:$0xff]
        %v402 = vld [vmem:[%s2] sm:$0x1]
        %v404 = vlaneseq
        %v405 = vshrl.u32 %v404, 7
        %v406 = vsub.s32 0, %v405
        %v407 = vrot.slane %v402, %v406
        %v409 = vmul.f32 %v400, %v407
        %v410 = vmul.f32 %v401, %v407
        %v411 = vld [vmem:[%s3] sm:$0x1]
        %v413 = vlaneseq
        %v414 = vshrl.u32 %v413, 7
        %v415 = vsub.s32 0, %v414
        %v416 = vrot.slane %v411, %v415
        %v418 = vadd.f32 %v409, %v416
        %v419 = vadd.f32 %v410, %v416
        %v420 = vmax.f32 %v418, 0.0
        %v421 = vmax.f32 %v419, 0.0
        %v422 = vpack.c.bf16 %v421, %v420
        %v424 = vunpack.c.l.b16 %v422
        %v425 = vunpack.c.h.b16 %v422
        %v426 = vpack.c.b16 %v424, %v424
        %v427 = vpack.c.b16 %v425, %v425
        %vm430 = vcmask 257024
        %431 = vst.msk [vmem:[%s252] sm:$0xf] %vm430, %v426
        %432 = vst.msk [vmem:[%s252 + $0x4] sm:$0xf] %vm430, %v427
      $region44: #{decoder_forward.9} parent=35 // pred_fallthru
        _
      %s433 = smul.u32 2, %s19
      %p434 = scmp.lt.s32.totalorder %s433, 3
      %s435 = scalar_select %p434, %s433, 3
      %s436 = smul.addr %s435, 4
      %s437 = scalar_lea.vmem %s4, %s436
      // Predicated region
      $region45: #{decoder_forward.9} parent=35 // pred_check
        %p438 = pneg %p141
      $region46: #{decoder_forward.9} parent=35 // pred_check_branch
        %440 = sbr.rel (%p438) target = $region48
      $region47: #{decoder_forward.9} parent=35 // pred_region
        %s441 = smul.u32 2, %s19
      $region48: #{decoder_forward.9} parent=35 // pred_fallthru
        _
    $region36: #{decoder_forward.9} parent=5 // pred_fallthru
      _
    %p442 = scmp.le.s32.totalorder 2, %s10
    // Predicated region
    $region49: #{decoder_forward.9} parent=5 // pred_check
      %p443 = pneg %p442
    $region50: #{decoder_forward.9} parent=5 // pred_check_branch
      %445 = sbr.rel (%p443) target = $region52
    $region51: #{decoder_forward.9} parent=5 // pred_region
      %s446 = ssub.s32 %s10, 2
      // Predicated region
      $region53: #{decoder_forward.9} parent=51 // pred_check
        %p447 = pneg %p147
      $region54: #{decoder_forward.9} parent=51 // pred_check_branch
        %449 = sbr.rel (%p447) target = $region56
      $region55: #{decoder_forward.9} parent=51 // pred_region
        %s450 = smul.u32 2, %s21
        %p451 = scmp.lt.s32.totalorder %s450, 3
        %s452 = scalar_select %p451, %s450, 3
        %s453 = smul.addr %s452, 4
        %s454 = scalar_lea.vmem %s4, %s453
      $region56: #{decoder_forward.9} parent=51 // pred_fallthru
        _
    $region52: #{decoder_forward.9} parent=5 // pred_fallthru
      _
  $region6: #{decoder_forward.9} parent=0 // loop_footer
    %s14 = sadd.s32 1, %s10
  $region7: #{decoder_forward.9} parent=0 // loop_footer_branch
    %9 = sbr.rel target = $region3
  $region8: #{decoder_forward.9} parent=0 // loop_exit
    _

// kernel: decoder_forward.10
$region0: #{decoder_forward.10}
  #allocation0 [shape = 'u32[]', space=smem, size = 0x4, offset = 0x4, fixed_abs, tag = 'smem constant byte address 0x4 - core index']
  #allocation1 [shape = 'u32[144,128]{1,0:T(1,128)}', space=vmem, size = 0x12000, scoped, tag = 'internal scratch']
  #allocation2 [shape = 'f32[64,16]{1,0:T(8,128)}', space=vmem, size = 0x8000, scoped, tag = 'scratch operand']
  %s0 = inlined_call_operand.vmem [shape: bf16[128,72], index: 0, kind: input, shape index: {}]
  %s1 = inlined_call_operand.vmem [shape: bf16[72,16], index: 1, kind: input, shape index: {}]
  %s2 = inlined_call_operand.vmem [shape: f32[1,16], index: 2, kind: input, shape index: {}]
  %s3 = inlined_call_operand.vmem [shape: f32[1,16], index: 3, kind: input, shape index: {}]
  %s4 = inlined_call_operand.vmem [shape: bf16[128,16], index: 4, kind: output, shape index: {}]
  %s5 = sld [smem:[#allocation0]]
  $region57: #{decoder_forward.10} parent=0
    _
  %s7 = ssub.s32 1, %s5
  %s8 = scalar_select 0, %s7, %s5
  loop: start=0, step=1, limit=4
  $region2: #{decoder_forward.10} parent=0 // loop_pre_header
    _
  $region3: #{decoder_forward.10} parent=0 // loop_header
    %s10 = sphi 0, %s14
    %p11 = scmp.ge.s32.totalorder %s10, 4
    %s17 = sphi 0, %s29
    %s18 = sphi 0, %s25
    %s19 = sphi 0, %s17
    %s20 = sphi 0, %s18
    %s21 = sphi 0, %s19
    %s22 = sphi 0, %s20
    %s34 = sphi 0, %s36
    %s37 = sphi 0, %s34
    %s38 = sphi 0, %s37
    %s54 = sphi 0, %s38
    %s60 = sphi 0, %s62
    %s63 = sphi 0, %s60
    %s64 = sphi 0, %s63
    %s80 = sphi 0, %s64
    %s84 = sphi 0, %s84
    %s86 = sphi 0, %s84
    %s87 = sphi 0, %s86
    %s101 = sphi 0, %s87
    %s105 = sphi 0, %s105
    %s107 = sphi 0, %s105
    %s108 = sphi 0, %s107
    %s122 = sphi 0, %s108
    %s128 = sphi 0, %s130
    %s131 = sphi 0, %s128
    %s132 = sphi 0, %s131
    %s148 = sphi 0, %s132
  $region4: #{decoder_forward.10} parent=0 // loop_header_branch
    %13 = sbr.rel (%p11) target = $region8
  $region5: #{decoder_forward.10} parent=0 // loop_body
    %s15 = ssub.s32 %s10, 1
    %s16 = ssub.s32 %s10, 2
    %s23 = sadd.s32 1, %s18
    %p24 = scmp.ge.s32.totalorder %s23, 1
    %s25 = scalar_select %p24, 0, %s23
    %s26 = sadd.s32 1, %s17
    %s27 = scalar_select %p24, %s26, %s17
    %p28 = scmp.ge.s32.totalorder %s27, 2
    %s29 = scalar_select %p28, 0, %s27
    %s30 = ssub.s32 %s17, %s29
    %s31 = ssub.s32 %s18, %s25
    %s32 = sor.u32 %s30, %s31
    %p33 = scmp.eq.s32.totalorder %s32, 0
    %s35 = sadd.s32 %s34, 1
    %s36 = scalar_select %p33, %s34, %s35
    %p39 = pneg %p33
    %p40 = scmp.eq.s32.totalorder %s10, 1
    %p41 = por %p39, %p40
    %p42 = scmp.ne.s32.totalorder %s34, %s37
    %p43 = scmp.eq.s32.totalorder %s10, 0
    %p44 = por %p42, %p43
    %p45 = scmp.ne.s32.totalorder %s34, %s37
    %p46 = scmp.eq.s32.totalorder %s15, 1
    %p47 = por %p45, %p46
    %p48 = scmp.ne.s32.totalorder %s37, %s38
    %p49 = scmp.eq.s32.totalorder %s15, 0
    %p50 = por %p48, %p49
    %p51 = scmp.ne.s32.totalorder %s37, %s38
    %p52 = scmp.eq.s32.totalorder %s16, 1
    %p53 = por %p51, %p52
    %p55 = scmp.ne.s32.totalorder %s38, %s54
    %p56 = scmp.eq.s32.totalorder %s16, 0
    %p57 = por %p55, %p56
    %s58 = ssub.s32 %s18, %s25
    %p59 = scmp.eq.s32.totalorder %s58, 0
    %s61 = sadd.s32 %s60, 1
    %s62 = scalar_select %p59, %s60, %s61
    %p65 = pneg %p59
    %p66 = scmp.eq.s32.totalorder %s10, 1
    %p67 = por %p65, %p66
    %p68 = scmp.ne.s32.totalorder %s60, %s63
    %p69 = scmp.eq.s32.totalorder %s10, 0
    %p70 = por %p68, %p69
    %p71 = scmp.ne.s32.totalorder %s60, %s63
    %p72 = scmp.eq.s32.totalorder %s15, 1
    %p73 = por %p71, %p72
    %p74 = scmp.ne.s32.totalorder %s63, %s64
    %p75 = scmp.eq.s32.totalorder %s15, 0
    %p76 = por %p74, %p75
    %p77 = scmp.ne.s32.totalorder %s63, %s64
    %p78 = scmp.eq.s32.totalorder %s16, 1
    %p79 = por %p77, %p78
    %p81 = scmp.ne.s32.totalorder %s64, %s80
    %p82 = scmp.eq.s32.totalorder %s16, 0
    %p83 = por %p81, %p82
    %s85 = sadd.s32 %s84, 1
    %p88 = scmp.eq.s32.totalorder %s10, 1
    %p89 = scmp.ne.s32.totalorder %s84, %s86
    %p90 = scmp.eq.s32.totalorder %s10, 0
    %p91 = por %p89, %p90
    %p92 = scmp.ne.s32.totalorder %s84, %s86
    %p93 = scmp.eq.s32.totalorder %s15, 1
    %p94 = por %p92, %p93
    %p95 = scmp.ne.s32.totalorder %s86, %s87
    %p96 = scmp.eq.s32.totalorder %s15, 0
    %p97 = por %p95, %p96
    %p98 = scmp.ne.s32.totalorder %s86, %s87
    %p99 = scmp.eq.s32.totalorder %s16, 1
    %p100 = por %p98, %p99
    %p102 = scmp.ne.s32.totalorder %s87, %s101
    %p103 = scmp.eq.s32.totalorder %s16, 0
    %p104 = por %p102, %p103
    %s106 = sadd.s32 %s105, 1
    %p109 = scmp.eq.s32.totalorder %s10, 1
    %p110 = scmp.ne.s32.totalorder %s105, %s107
    %p111 = scmp.eq.s32.totalorder %s10, 0
    %p112 = por %p110, %p111
    %p113 = scmp.ne.s32.totalorder %s105, %s107
    %p114 = scmp.eq.s32.totalorder %s15, 1
    %p115 = por %p113, %p114
    %p116 = scmp.ne.s32.totalorder %s107, %s108
    %p117 = scmp.eq.s32.totalorder %s15, 0
    %p118 = por %p116, %p117
    %p119 = scmp.ne.s32.totalorder %s107, %s108
    %p120 = scmp.eq.s32.totalorder %s16, 1
    %p121 = por %p119, %p120
    %p123 = scmp.ne.s32.totalorder %s108, %s122
    %p124 = scmp.eq.s32.totalorder %s16, 0
    %p125 = por %p123, %p124
    %s126 = ssub.s32 %s17, %s29
    %p127 = scmp.eq.s32.totalorder %s126, 0
    %s129 = sadd.s32 %s128, 1
    %s130 = scalar_select %p127, %s128, %s129
    %p133 = pneg %p127
    %p134 = scmp.eq.s32.totalorder %s10, 1
    %p135 = por %p133, %p134
    %p136 = scmp.ne.s32.totalorder %s128, %s131
    %p137 = scmp.eq.s32.totalorder %s10, 0
    %p138 = por %p136, %p137
    %p139 = scmp.ne.s32.totalorder %s128, %s131
    %p140 = scmp.eq.s32.totalorder %s15, 1
    %p141 = por %p139, %p140
    %p142 = scmp.ne.s32.totalorder %s131, %s132
    %p143 = scmp.eq.s32.totalorder %s15, 0
    %p144 = por %p142, %p143
    %p145 = scmp.ne.s32.totalorder %s131, %s132
    %p146 = scmp.eq.s32.totalorder %s16, 1
    %p147 = por %p145, %p146
    %p149 = scmp.ne.s32.totalorder %s132, %s148
    %p150 = scmp.eq.s32.totalorder %s16, 0
    %p151 = por %p149, %p150
    %p152 = scmp.le.s32.totalorder 1, %s10
    %p153 = scmp.lt.s32.totalorder %s10, 3
    %p154 = pnand %p152, %p153
    %p155 = pneg %p154
    // Predicated region
    $region9: #{decoder_forward.10} parent=5 // pred_check
      _
    $region10: #{decoder_forward.10} parent=5 // pred_check_branch
      %157 = sbr.rel (%p154) target = $region12
    $region11: #{decoder_forward.10} parent=5 // pred_region
      %s158 = ssub.s32 %s10, 1
      // Predicated region
      $region13: #{decoder_forward.10} parent=11 // pred_check
        %p159 = pneg %p76
      $region14: #{decoder_forward.10} parent=11 // pred_check_branch
        %161 = sbr.rel (%p159) target = $region16
      $region15: #{decoder_forward.10} parent=11 // pred_region
        %s162 = smul.u32 9, %s20
        %p163 = scmp.lt.s32.totalorder %s162, 8
        %s164 = scalar_select %p163, %s162, 8
        %s165 = smul.addr %s164, 4
        %s166 = scalar_lea.vmem %s1, %s165
        %s167 = smul.u32 9, %s20
      $region16: #{decoder_forward.10} parent=11 // pred_fallthru
        _
      // Predicated region
      $region17: #{decoder_forward.10} parent=11 // pred_check
        %p168 = pneg %p97
      $region18: #{decoder_forward.10} parent=11 // pred_check_branch
        %170 = sbr.rel (%p168) target = $region20
      $region19: #{decoder_forward.10} parent=11 // pred_region
        _
      $region20: #{decoder_forward.10} parent=11 // pred_fallthru
        _
      // Predicated region
      $region21: #{decoder_forward.10} parent=11 // pred_check
        %p171 = pneg %p118
      $region22: #{decoder_forward.10} parent=11 // pred_check_branch
        %173 = sbr.rel (%p171) target = $region24
      $region23: #{decoder_forward.10} parent=11 // pred_region
        _
      $region24: #{decoder_forward.10} parent=11 // pred_fallthru
        _
    $region12: #{decoder_forward.10} parent=5 // pred_fallthru
      _
    %p174 = scmp.lt.s32.totalorder %s10, 2
    // Predicated region
    $region25: #{decoder_forward.10} parent=5 // pred_check
      %p175 = pneg %p174
    $region26: #{decoder_forward.10} parent=5 // pred_check_branch
      %177 = sbr.rel (%p175) target = $region28
    $region27: #{decoder_forward.10} parent=5 // pred_region
      // Predicated region
      $region29: #{decoder_forward.10} parent=27 // pred_check
        %p178 = pneg %p44
      $region30: #{decoder_forward.10} parent=27 // pred_check_branch
        %180 = sbr.rel (%p178) target = $region32
      $region31: #{decoder_forward.10} parent=27 // pred_region
        %s181 = smul.u32 8, %s17
        %p182 = scmp.lt.s32.totalorder %s181, 15
        %s183 = scalar_select %p182, %s181, 15
        %p184 = scmp.lt.s32.totalorder %s18, 0
        %s185 = scalar_select %p184, %s18, 0
        %s186 = sadd.s32 %s185, %s183
        %s187 = smul.addr %s186, 4
        %s188 = scalar_lea.vmem %s0, %s187
        %s189 = smul.u32 8, %s17
      $region32: #{decoder_forward.10} parent=27 // pred_fallthru
        _
    $region28: #{decoder_forward.10} parent=5 // pred_fallthru
      _
    %p190 = scmp.le.s32.totalorder 1, %s10
    %p191 = scmp.lt.s32.totalorder %s10, 3
    %p192 = pnand %p190, %p191
    %p193 = pneg %p192
    // Predicated region
    $region33: #{decoder_forward.10} parent=5 // pred_check
      _
    $region34: #{decoder_forward.10} parent=5 // pred_check_branch
      %195 = sbr.rel (%p192) target = $region36
    $region35: #{decoder_forward.10} parent=5 // pred_region
      %s196 = ssub.s32 %s10, 1
      %s197 = smul.u32 8, %s19
      %p198 = scmp.lt.s32.totalorder %s197, 15
      %s199 = scalar_select %p198, %s197, 15
      %p200 = scmp.lt.s32.totalorder %s20, 0
      %s201 = scalar_select %p200, %s20, 0
      %s202 = sadd.s32 %s201, %s199
      %s203 = smul.addr %s202, 4
      %s204 = scalar_lea.vmem %s0, %s203
      %p205 = pneg %p50
      %p206 = pneg %p47
      %s207 = smul.u32 9, %s20
      %p208 = scmp.lt.s32.totalorder %s207, 8
      %s209 = scalar_select %p208, %s207, 8
      %s210 = smul.addr %s209, 4
      %s211 = scalar_lea.vmem %s1, %s210
      %p212 = pneg %p76
      %p213 = pneg %p73
      %p214 = pneg %p97
      %p215 = pneg %p94
      %p216 = pneg %p118
      %p217 = pneg %p115
      %p218 = pneg %p144
      %p219 = pneg %p141
      %s220 = smul.u32 8, %s19
      %p221 = scmp.lt.s32.totalorder %s220, 15
      %s222 = scalar_select %p221, %s220, 15
      %s223 = smul.addr %s222, 4
      %s224 = scalar_lea.vmem %s4, %s223
      %s225 = smul.u32 8, %s19
      %p226 = scmp.lt.s32.totalorder %s225, 15
      %s227 = scalar_select %p226, %s225, 15
      %p228 = scmp.lt.s32.totalorder %s20, 0
      %s229 = scalar_select %p228, %s20, 0
      %s230 = sadd.s32 %s229, %s227
      %s231 = smul.addr %s230, 4
      %s232 = scalar_lea.vmem %s0, %s231
      %s233 = smul.u32 8, %s19
      %s234 = smul.u32 9, %s20
      %p235 = scmp.lt.s32.totalorder %s234, 8
      %s236 = scalar_select %p235, %s234, 8
      %s237 = smul.addr %s236, 4
      %s238 = scalar_lea.vmem %s1, %s237
      %s239 = smul.u32 9, %s20
      %s240 = smul.u32 8, %s19
      %p241 = scmp.lt.s32.totalorder %s240, 15
      %s242 = scalar_select %p241, %s240, 15
      %s243 = smul.addr %s242, 4
      %s244 = scalar_lea.vmem %s4, %s243
      %s245 = smul.u32 8, %s19
      %p247 = scmp.eq.s32.totalorder %s20, 0
      // Predicated region
      $region37: #{decoder_forward.10} parent=35 // pred_check
        %p248 = pneg %p247
      $region38: #{decoder_forward.10} parent=35 // pred_check_branch
        %250 = sbr.rel (%p248) target = $region40
      $region39: #{decoder_forward.10} parent=35 // pred_region
        %vm251 = vcmask 130048
        %252 = vst.msk [vmem:[#allocation2] sm:$0xff] %vm251, 0.0
        %253 = vst.msk [vmem:[#allocation2 + $0x8] sm:$0xff] %vm251, 0.0
        %254 = vst.msk [vmem:[#allocation2 + $0x10] sm:$0xff] %vm251, 0.0
        %255 = vst.msk [vmem:[#allocation2 + $0x18] sm:$0xff] %vm251, 0.0
        %256 = vst.msk [vmem:[#allocation2 + $0x20] sm:$0xff] %vm251, 0.0
        %257 = vst.msk [vmem:[#allocation2 + $0x28] sm:$0xff] %vm251, 0.0
        %258 = vst.msk [vmem:[#allocation2 + $0x30] sm:$0xff] %vm251, 0.0
        %259 = vst.msk [vmem:[#allocation2 + $0x38] sm:$0xff] %vm251, 0.0
      $region40: #{decoder_forward.10} parent=35 // pred_fallthru
        _
      %v260 = vld [vmem:[#allocation2] sm:$0xff]
      %v261 = vld [vmem:[#allocation2 + $0x8] sm:$0xff]
      %v262 = vld [vmem:[#allocation2 + $0x10] sm:$0xff]
      %v263 = vld [vmem:[#allocation2 + $0x18] sm:$0xff]
      %v264 = vld [vmem:[#allocation2 + $0x20] sm:$0xff]
      %v265 = vld [vmem:[#allocation2 + $0x28] sm:$0xff]
      %v266 = vld [vmem:[#allocation2 + $0x30] sm:$0xff]
      %v267 = vld [vmem:[#allocation2 + $0x38] sm:$0xff]
      %v268 = vld [vmem:[%s232] sm:$0xf]
      %v269 = vld [vmem:[%s232 + $0x4] sm:$0xf]
      %v270 = vld [vmem:[%s232 + $0x8] sm:$0xf]
      %v271 = vld [vmem:[%s232 + $0xc] sm:$0xf]
      %v272 = vld [vmem:[%s232 + $0x10] sm:$0xf]
      %v273 = vld [vmem:[%s232 + $0x14] sm:$0xf]
      %v274 = vld [vmem:[%s232 + $0x18] sm:$0xf]
      %v275 = vld [vmem:[%s232 + $0x1c] sm:$0xf]
      %v276 = vld [vmem:[%s238] sm:$0xf]
      %v277 = vld [vmem:[%s238 + $0x4] sm:$0xf]
      %v278 = vld [vmem:[%s238 + $0x8] sm:$0xf]
      %v279 = vld [vmem:[%s238 + $0xc] sm:$0xf]
      %v280 = vld [vmem:[%s238 + $0x10] sm:$0xf]
      %v281 = vld [vmem:[%s238 + $0x14] sm:$0xf]
      %v282 = vld [vmem:[%s238 + $0x18] sm:$0xf]
      %v283 = vld [vmem:[%s238 + $0x1c] sm:$0xf]
      %v284 = vld [vmem:[%s238 + $0x20] sm:$0xf]
      %v293 = vunpack.c.l.b16 %v268
      %v294 = vunpack.c.l.b16 %v269
      %v295 = vunpack.c.l.b16 %v270
      %v296 = vunpack.c.l.b16 %v271
      %v297 = vunpack.c.l.b16 %v272
      %v298 = vunpack.c.l.b16 %v273
      %v299 = vunpack.c.l.b16 %v274
      %v300 = vunpack.c.l.b16 %v275
      %v301 = vpack.c.b16 %v294, %v293
      %v302 = vpack.c.b16 %v296, %v295
      %v303 = vpack.c.b16 %v298, %v297
      %v304 = vpack.c.b16 %v300, %v299
      %v314 = vunpack.c.l.b16 %v276
      %v315 = vunpack.c.l.b16 %v277
      %v316 = vunpack.c.l.b16 %v278
      %v317 = vunpack.c.l.b16 %v279
      %v318 = vunpack.c.l.b16 %v280
      %v319 = vunpack.c.l.b16 %v281
      %v320 = vunpack.c.l.b16 %v282
      %v321 = vunpack.c.l.b16 %v283
      %v322 = vunpack.c.l.b16 %v284
      %v323 = vpack.c.b16 %v315, %v314
      %v324 = vpack.c.b16 %v317, %v316
      %v325 = vpack.c.b16 %v319, %v318
      %v326 = vpack.c.b16 %v321, %v320
      %v327 = vpack.c.b16 %v322, %v322
      %vm332 = vcmask 588800
      %v334 = vsel %vm332, %v301, 0
      %v337 = vsel %vm332, %v302, 0
      %v340 = vsel %vm332, %v303, 0
      %v343 = vsel %vm332, %v304, 0
      %vm345 = vcmask 1043456
      %v347 = vsel %vm345, %v327, 0
      %349 = vmatprep.subr.bf16.mxu0 0
      %350 = vmatpush1.bf16.msra.mxu0 %v323
      %351 = vmatprep.subr.bf16.mxu0 0
      %352 = vmatpush1.bf16.msra.mxu0 %v324
      %353 = vmatprep.subr.bf16.mxu0 0
      %354 = vmatpush1.bf16.msra.mxu0 %v325
      %355 = vmatprep.subr.bf16.mxu0 0
      %356 = vmatpush1.bf16.msra.mxu0 %v326
      %357 = vmatprep.subr.bf16.mxu0 0
      %358 = vmatpush1.bf16.msra.mxu0 %v347
      %359 = vmatprep.subr.bf16.mxu0 0
      %360 = vmatpush1.bf16.msra.mxu0 0
      %361 = vmatprep.subr.bf16.mxu0 0
      %362 = vmatpush1.bf16.msra.mxu0 0
      %363 = vmatprep.subr.bf16.mxu0 0
      %364 = vmatpush1.bf16.msra.mxu0 0
      %365 = vmatprep.subr.bf16.mxu0 0
      %366 = vmatpush1.bf16.msra.mxu0 0
      %367 = vmatprep.subr.bf16.mxu0 0
      %368 = vmatpush1.bf16.msra.mxu0 0
      %369 = vmatprep.subr.bf16.mxu0 0
      %370 = vmatpush1.bf16.msra.mxu0 0
      %371 = vmatprep.subr.bf16.mxu0 0
      %372 = vmatpush1.bf16.msra.mxu0 0
      %373 = vmatprep.subr.bf16.mxu0 0
      %374 = vmatpush1.bf16.msra.mxu0 0
      %375 = vmatprep.subr.bf16.mxu0 0
      %376 = vmatpush1.bf16.msra.mxu0 0
      %377 = vmatprep.subr.bf16.mxu0 0
      %378 = vmatpush1.bf16.msra.mxu0 0
      %379 = vmatprep.subr.bf16.mxu0 0
      %380 = vmatpush1.bf16.msra.mxu0 0
      %381 = vmatprep.mubr.bf16.mxu0 0
      %382 = vmatmul.mubr.bf16.gmra.mrb[0].mxu0 %v334
      %v383 = vpop.f32.mrb[0].mxu0
      %v384 = vadd.f32 0.0, %v383
      %v385 = vpop.f32.mrb[0].mxu0
      %v386 = vpop.f32.mrb[0].mxu0
      %v387 = vadd.f32 0.0, %v386
      %v388 = vpop.f32.mrb[0].mxu0
      %389 = vmatprep.mubr.bf16.mxu0 0
      %390 = vmatmul.mubr.bf16.gmra.mrb[0].mxu0 %v337
      %v391 = vpop.f32.mrb[0].mxu0
      %v392 = vadd.f32 0.0, %v391
      %v393 = vpop.f32.mrb[0].mxu0
      %v394 = vpop.f32.mrb[0].mxu0
      %v395 = vadd.f32 0.0, %v394
      %v396 = vpop.f32.mrb[0].mxu0
      %397 = vmatprep.mubr.bf16.mxu0 0
      %398 = vmatmul.mubr.bf16.gmra.mrb[0].mxu0 %v340
      %v399 = vpop.f32.mrb[0].mxu0
      %v400 = vadd.f32 0.0, %v399
      %v401 = vpop.f32.mrb[0].mxu0
      %v402 = vpop.f32.mrb[0].mxu0
      %v403 = vadd.f32 0.0, %v402
      %v404 = vpop.f32.mrb[0].mxu0
      %405 = vmatprep.mubr.bf16.mxu0 0
      %406 = vmatmul.mubr.bf16.gmra.mrb[0].mxu0 %v343
      %v407 = vpop.f32.mrb[0].mxu0
      %v408 = vadd.f32 0.0, %v407
      %v409 = vpop.f32.mrb[0].mxu0
      %v410 = vpop.f32.mrb[0].mxu0
      %v411 = vadd.f32 0.0, %v410
      %v412 = vpop.f32.mrb[0].mxu0
      %413 = vdwg.mxu0
      %v414 = vadd.f32 %v260, %v384
      %v415 = vadd.f32 %v261, %v387
      %v416 = vadd.f32 %v262, %v392
      %v417 = vadd.f32 %v263, %v395
      %v418 = vadd.f32 %v264, %v400
      %v419 = vadd.f32 %v265, %v403
      %v420 = vadd.f32 %v266, %v408
      %v421 = vadd.f32 %v267, %v411
      %vm422 = vcmask 130048
      %423 = vst.msk [vmem:[#allocation2] sm:$0xff] %vm422, %v414
      %424 = vst.msk [vmem:[#allocation2 + $0x8] sm:$0xff] %vm422, %v415
      %425 = vst.msk [vmem:[#allocation2 + $0x10] sm:$0xff] %vm422, %v416
      %426 = vst.msk [vmem:[#allocation2 + $0x18] sm:$0xff] %vm422, %v417
      %427 = vst.msk [vmem:[#allocation2 + $0x20] sm:$0xff] %vm422, %v418
      %428 = vst.msk [vmem:[#allocation2 + $0x28] sm:$0xff] %vm422, %v419
      %429 = vst.msk [vmem:[#allocation2 + $0x30] sm:$0xff] %vm422, %v420
      %430 = vst.msk [vmem:[#allocation2 + $0x38] sm:$0xff] %vm422, %v421
      // Predicated region
      $region41: #{decoder_forward.10} parent=35 // pred_check
        %p431 = pneg %p247
      $region42: #{decoder_forward.10} parent=35 // pred_check_branch
        %433 = sbr.rel (%p431) target = $region44
      $region43: #{decoder_forward.10} parent=35 // pred_region
        %v434 = vld [vmem:[#allocation2] sm:$0xff]
        %v435 = vld [vmem:[#allocation2 + $0x8] sm:$0xff]
        %v436 = vld [vmem:[#allocation2 + $0x10] sm:$0xff]
        %v437 = vld [vmem:[#allocation2 + $0x18] sm:$0xff]
        %v438 = vld [vmem:[#allocation2 + $0x20] sm:$0xff]
        %v439 = vld [vmem:[#allocation2 + $0x28] sm:$0xff]
        %v440 = vld [vmem:[#allocation2 + $0x30] sm:$0xff]
        %v441 = vld [vmem:[#allocation2 + $0x38] sm:$0xff]
        %v442 = vld [vmem:[%s2] sm:$0x1]
        %v444 = vlaneseq
        %v445 = vshrl.u32 %v444, 7
        %v446 = vsub.s32 0, %v445
        %v447 = vrot.slane %v442, %v446
        %v449 = vmul.f32 %v434, %v447
        %v450 = vmul.f32 %v435, %v447
        %v451 = vmul.f32 %v436, %v447
        %v452 = vmul.f32 %v437, %v447
        %v453 = vmul.f32 %v438, %v447
        %v454 = vmul.f32 %v439, %v447
        %v455 = vmul.f32 %v440, %v447
        %v456 = vmul.f32 %v441, %v447
        %v457 = vld [vmem:[%s3] sm:$0x1]
        %v459 = vlaneseq
        %v460 = vshrl.u32 %v459, 7
        %v461 = vsub.s32 0, %v460
        %v462 = vrot.slane %v457, %v461
        %v464 = vadd.f32 %v449, %v462
        %v465 = vadd.f32 %v450, %v462
        %v466 = vadd.f32 %v451, %v462
        %v467 = vadd.f32 %v452, %v462
        %v468 = vadd.f32 %v453, %v462
        %v469 = vadd.f32 %v454, %v462
        %v470 = vadd.f32 %v455, %v462
        %v471 = vadd.f32 %v456, %v462
        %v472 = vmax.f32 %v464, 0.0
        %v473 = vmax.f32 %v465, 0.0
        %v474 = vmax.f32 %v466, 0.0
        %v475 = vmax.f32 %v467, 0.0
        %v476 = vmax.f32 %v468, 0.0
        %v477 = vmax.f32 %v469, 0.0
        %v478 = vmax.f32 %v470, 0.0
        %v479 = vmax.f32 %v471, 0.0
        %v480 = vpack.c.bf16 %v473, %v472
        %v481 = vpack.c.bf16 %v475, %v474
        %v482 = vpack.c.bf16 %v477, %v476
        %v483 = vpack.c.bf16 %v479, %v478
        %v488 = vunpack.c.l.b16 %v480
        %v489 = vunpack.c.h.b16 %v480
        %v490 = vunpack.c.l.b16 %v481
        %v491 = vunpack.c.h.b16 %v481
        %v492 = vunpack.c.l.b16 %v482
        %v493 = vunpack.c.h.b16 %v482
        %v494 = vunpack.c.l.b16 %v483
        %v495 = vunpack.c.h.b16 %v483
        %v496 = vpack.c.b16 %v488, %v488
        %v497 = vpack.c.b16 %v489, %v489
        %v498 = vpack.c.b16 %v490, %v490
        %v499 = vpack.c.b16 %v491, %v491
        %v500 = vpack.c.b16 %v492, %v492
        %v501 = vpack.c.b16 %v493, %v493
        %v502 = vpack.c.b16 %v494, %v494
        %v503 = vpack.c.b16 %v495, %v495
        %vm512 = vcmask 125952
        %513 = vst.msk [vmem:[%s244] sm:$0xf] %vm512, %v496
        %514 = vst.msk [vmem:[%s244 + $0x4] sm:$0xf] %vm512, %v497
        %515 = vst.msk [vmem:[%s244 + $0x8] sm:$0xf] %vm512, %v498
        %516 = vst.msk [vmem:[%s244 + $0xc] sm:$0xf] %vm512, %v499
        %517 = vst.msk [vmem:[%s244 + $0x10] sm:$0xf] %vm512, %v500
        %518 = vst.msk [vmem:[%s244 + $0x14] sm:$0xf] %vm512, %v501
        %519 = vst.msk [vmem:[%s244 + $0x18] sm:$0xf] %vm512, %v502
        %520 = vst.msk [vmem:[%s244 + $0x1c] sm:$0xf] %vm512, %v503
      $region44: #{decoder_forward.10} parent=35 // pred_fallthru
        _
      %s521 = smul.u32 8, %s19
      %p522 = scmp.lt.s32.totalorder %s521, 15
      %s523 = scalar_select %p522, %s521, 15
      %s524 = smul.addr %s523, 4
      %s525 = scalar_lea.vmem %s4, %s524
      // Predicated region
      $region45: #{decoder_forward.10} parent=35 // pred_check
        %p526 = pneg %p141
      $region46: #{decoder_forward.10} parent=35 // pred_check_branch
        %528 = sbr.rel (%p526) target = $region48
      $region47: #{decoder_forward.10} parent=35 // pred_region
        %s529 = smul.u32 8, %s19
      $region48: #{decoder_forward.10} parent=35 // pred_fallthru
        _
    $region36: #{decoder_forward.10} parent=5 // pred_fallthru
      _
    %p530 = scmp.le.s32.totalorder 2, %s10
    // Predicated region
    $region49: #{decoder_forward.10} parent=5 // pred_check
      %p531 = pneg %p530
    $region50: #{decoder_forward.10} parent=5 // pred_check_branch
      %533 = sbr.rel (%p531) target = $region52
    $region51: #{decoder_forward.10} parent=5 // pred_region
      %s534 = ssub.s32 %s10, 2
      // Predicated region
      $region53: #{decoder_forward.10} parent=51 // pred_check
        %p535 = pneg %p147
      $region54: #{decoder_forward.10} parent=51 // pred_check_branch
        %537 = sbr.rel (%p535) target = $region56
      $region55: #{decoder_forward.10} parent=51 // pred_region
        %s538 = smul.u32 8, %s21
        %p539 = scmp.lt.s32.totalorder %s538, 15
        %s540 = scalar_select %p539, %s538, 15
        %s541 = smul.addr %s540, 4
        %s542 = scalar_lea.vmem %s4, %s541
      $region56: #{decoder_forward.10} parent=51 // pred_fallthru
        _
    $region52: #{decoder_forward.10} parent=5 // pred_fallthru
      _
  $region6: #{decoder_forward.10} parent=0 // loop_footer
    %s14 = sadd.s32 1, %s10
  $region7: #{decoder_forward.10} parent=0 // loop_footer_branch
    %9 = sbr.rel target = $region3
  $region8: #{decoder_forward.10} parent=0 // loop_exit
    _

// kernel: decoder_forward.11
$region0: #{decoder_forward.11}
  #allocation0 [shape = 'u32[]', space=smem, size = 0x4, offset = 0x4, fixed_abs, tag = 'smem constant byte address 0x4 - core index']
  #allocation1 [shape = 'u32[144,128]{1,0:T(1,128)}', space=vmem, size = 0x12000, scoped, tag = 'internal scratch']
  #allocation2 [shape = 'f32[256,12]{1,0:T(8,128)}', space=vmem, size = 0x20000, scoped, tag = 'scratch operand']
  %s0 = inlined_call_operand.vmem [shape: bf16[512,36], index: 0, kind: input, shape index: {}]
  %s1 = inlined_call_operand.vmem [shape: bf16[36,12], index: 1, kind: input, shape index: {}]
  %s2 = inlined_call_operand.vmem [shape: f32[1,12], index: 2, kind: input, shape index: {}]
  %s3 = inlined_call_operand.vmem [shape: f32[1,12], index: 3, kind: input, shape index: {}]
  %s4 = inlined_call_operand.vmem [shape: f32[512,12], index: 4, kind: output, shape index: {}]
  %s5 = sld [smem:[#allocation0]]
  $region57: #{decoder_forward.11} parent=0
    _
  %s7 = ssub.s32 1, %s5
  %s8 = scalar_select 0, %s7, %s5
  loop: start=0, step=1, limit=4
  $region2: #{decoder_forward.11} parent=0 // loop_pre_header
    _
  $region3: #{decoder_forward.11} parent=0 // loop_header
    %s10 = sphi 0, %s14
    %p11 = scmp.ge.s32.totalorder %s10, 4
    %s17 = sphi 0, %s29
    %s18 = sphi 0, %s25
    %s19 = sphi 0, %s17
    %s20 = sphi 0, %s18
    %s21 = sphi 0, %s19
    %s22 = sphi 0, %s20
    %s34 = sphi 0, %s36
    %s37 = sphi 0, %s34
    %s38 = sphi 0, %s37
    %s54 = sphi 0, %s38
    %s60 = sphi 0, %s62
    %s63 = sphi 0, %s60
    %s64 = sphi 0, %s63
    %s80 = sphi 0, %s64
    %s84 = sphi 0, %s84
    %s86 = sphi 0, %s84
    %s87 = sphi 0, %s86
    %s101 = sphi 0, %s87
    %s105 = sphi 0, %s105
    %s107 = sphi 0, %s105
    %s108 = sphi 0, %s107
    %s122 = sphi 0, %s108
    %s128 = sphi 0, %s130
    %s131 = sphi 0, %s128
    %s132 = sphi 0, %s131
    %s148 = sphi 0, %s132
  $region4: #{decoder_forward.11} parent=0 // loop_header_branch
    %13 = sbr.rel (%p11) target = $region8
  $region5: #{decoder_forward.11} parent=0 // loop_body
    %s15 = ssub.s32 %s10, 1
    %s16 = ssub.s32 %s10, 2
    %s23 = sadd.s32 1, %s18
    %p24 = scmp.ge.s32.totalorder %s23, 1
    %s25 = scalar_select %p24, 0, %s23
    %s26 = sadd.s32 1, %s17
    %s27 = scalar_select %p24, %s26, %s17
    %p28 = scmp.ge.s32.totalorder %s27, 2
    %s29 = scalar_select %p28, 0, %s27
    %s30 = ssub.s32 %s17, %s29
    %s31 = ssub.s32 %s18, %s25
    %s32 = sor.u32 %s30, %s31
    %p33 = scmp.eq.s32.totalorder %s32, 0
    %s35 = sadd.s32 %s34, 1
    %s36 = scalar_select %p33, %s34, %s35
    %p39 = pneg %p33
    %p40 = scmp.eq.s32.totalorder %s10, 1
    %p41 = por %p39, %p40
    %p42 = scmp.ne.s32.totalorder %s34, %s37
    %p43 = scmp.eq.s32.totalorder %s10, 0
    %p44 = por %p42, %p43
    %p45 = scmp.ne.s32.totalorder %s34, %s37
    %p46 = scmp.eq.s32.totalorder %s15, 1
    %p47 = por %p45, %p46
    %p48 = scmp.ne.s32.totalorder %s37, %s38
    %p49 = scmp.eq.s32.totalorder %s15, 0
    %p50 = por %p48, %p49
    %p51 = scmp.ne.s32.totalorder %s37, %s38
    %p52 = scmp.eq.s32.totalorder %s16, 1
    %p53 = por %p51, %p52
    %p55 = scmp.ne.s32.totalorder %s38, %s54
    %p56 = scmp.eq.s32.totalorder %s16, 0
    %p57 = por %p55, %p56
    %s58 = ssub.s32 %s18, %s25
    %p59 = scmp.eq.s32.totalorder %s58, 0
    %s61 = sadd.s32 %s60, 1
    %s62 = scalar_select %p59, %s60, %s61
    %p65 = pneg %p59
    %p66 = scmp.eq.s32.totalorder %s10, 1
    %p67 = por %p65, %p66
    %p68 = scmp.ne.s32.totalorder %s60, %s63
    %p69 = scmp.eq.s32.totalorder %s10, 0
    %p70 = por %p68, %p69
    %p71 = scmp.ne.s32.totalorder %s60, %s63
    %p72 = scmp.eq.s32.totalorder %s15, 1
    %p73 = por %p71, %p72
    %p74 = scmp.ne.s32.totalorder %s63, %s64
    %p75 = scmp.eq.s32.totalorder %s15, 0
    %p76 = por %p74, %p75
    %p77 = scmp.ne.s32.totalorder %s63, %s64
    %p78 = scmp.eq.s32.totalorder %s16, 1
    %p79 = por %p77, %p78
    %p81 = scmp.ne.s32.totalorder %s64, %s80
    %p82 = scmp.eq.s32.totalorder %s16, 0
    %p83 = por %p81, %p82
    %s85 = sadd.s32 %s84, 1
    %p88 = scmp.eq.s32.totalorder %s10, 1
    %p89 = scmp.ne.s32.totalorder %s84, %s86
    %p90 = scmp.eq.s32.totalorder %s10, 0
    %p91 = por %p89, %p90
    %p92 = scmp.ne.s32.totalorder %s84, %s86
    %p93 = scmp.eq.s32.totalorder %s15, 1
    %p94 = por %p92, %p93
    %p95 = scmp.ne.s32.totalorder %s86, %s87
    %p96 = scmp.eq.s32.totalorder %s15, 0
    %p97 = por %p95, %p96
    %p98 = scmp.ne.s32.totalorder %s86, %s87
    %p99 = scmp.eq.s32.totalorder %s16, 1
    %p100 = por %p98, %p99
    %p102 = scmp.ne.s32.totalorder %s87, %s101
    %p103 = scmp.eq.s32.totalorder %s16, 0
    %p104 = por %p102, %p103
    %s106 = sadd.s32 %s105, 1
    %p109 = scmp.eq.s32.totalorder %s10, 1
    %p110 = scmp.ne.s32.totalorder %s105, %s107
    %p111 = scmp.eq.s32.totalorder %s10, 0
    %p112 = por %p110, %p111
    %p113 = scmp.ne.s32.totalorder %s105, %s107
    %p114 = scmp.eq.s32.totalorder %s15, 1
    %p115 = por %p113, %p114
    %p116 = scmp.ne.s32.totalorder %s107, %s108
    %p117 = scmp.eq.s32.totalorder %s15, 0
    %p118 = por %p116, %p117
    %p119 = scmp.ne.s32.totalorder %s107, %s108
    %p120 = scmp.eq.s32.totalorder %s16, 1
    %p121 = por %p119, %p120
    %p123 = scmp.ne.s32.totalorder %s108, %s122
    %p124 = scmp.eq.s32.totalorder %s16, 0
    %p125 = por %p123, %p124
    %s126 = ssub.s32 %s17, %s29
    %p127 = scmp.eq.s32.totalorder %s126, 0
    %s129 = sadd.s32 %s128, 1
    %s130 = scalar_select %p127, %s128, %s129
    %p133 = pneg %p127
    %p134 = scmp.eq.s32.totalorder %s10, 1
    %p135 = por %p133, %p134
    %p136 = scmp.ne.s32.totalorder %s128, %s131
    %p137 = scmp.eq.s32.totalorder %s10, 0
    %p138 = por %p136, %p137
    %p139 = scmp.ne.s32.totalorder %s128, %s131
    %p140 = scmp.eq.s32.totalorder %s15, 1
    %p141 = por %p139, %p140
    %p142 = scmp.ne.s32.totalorder %s131, %s132
    %p143 = scmp.eq.s32.totalorder %s15, 0
    %p144 = por %p142, %p143
    %p145 = scmp.ne.s32.totalorder %s131, %s132
    %p146 = scmp.eq.s32.totalorder %s16, 1
    %p147 = por %p145, %p146
    %p149 = scmp.ne.s32.totalorder %s132, %s148
    %p150 = scmp.eq.s32.totalorder %s16, 0
    %p151 = por %p149, %p150
    %p152 = scmp.le.s32.totalorder 1, %s10
    %p153 = scmp.lt.s32.totalorder %s10, 3
    %p154 = pnand %p152, %p153
    %p155 = pneg %p154
    // Predicated region
    $region9: #{decoder_forward.11} parent=5 // pred_check
      _
    $region10: #{decoder_forward.11} parent=5 // pred_check_branch
      %157 = sbr.rel (%p154) target = $region12
    $region11: #{decoder_forward.11} parent=5 // pred_region
      %s158 = ssub.s32 %s10, 1
      // Predicated region
      $region13: #{decoder_forward.11} parent=11 // pred_check
        %p159 = pneg %p76
      $region14: #{decoder_forward.11} parent=11 // pred_check_branch
        %161 = sbr.rel (%p159) target = $region16
      $region15: #{decoder_forward.11} parent=11 // pred_region
        %s162 = smul.u32 5, %s20
        %p163 = scmp.lt.s32.totalorder %s162, 4
        %s164 = scalar_select %p163, %s162, 4
        %s165 = smul.addr %s164, 4
        %s166 = scalar_lea.vmem %s1, %s165
        %s167 = smul.u32 5, %s20
      $region16: #{decoder_forward.11} parent=11 // pred_fallthru
        _
      // Predicated region
      $region17: #{decoder_forward.11} parent=11 // pred_check
        %p168 = pneg %p97
      $region18: #{decoder_forward.11} parent=11 // pred_check_branch
        %170 = sbr.rel (%p168) target = $region20
      $region19: #{decoder_forward.11} parent=11 // pred_region
        _
      $region20: #{decoder_forward.11} parent=11 // pred_fallthru
        _
      // Predicated region
      $region21: #{decoder_forward.11} parent=11 // pred_check
        %p171 = pneg %p118
      $region22: #{decoder_forward.11} parent=11 // pred_check_branch
        %173 = sbr.rel (%p171) target = $region24
      $region23: #{decoder_forward.11} parent=11 // pred_region
        _
      $region24: #{decoder_forward.11} parent=11 // pred_fallthru
        _
    $region12: #{decoder_forward.11} parent=5 // pred_fallthru
      _
    %p174 = scmp.lt.s32.totalorder %s10, 2
    // Predicated region
    $region25: #{decoder_forward.11} parent=5 // pred_check
      %p175 = pneg %p174
    $region26: #{decoder_forward.11} parent=5 // pred_check_branch
      %177 = sbr.rel (%p175) target = $region28
    $region27: #{decoder_forward.11} parent=5 // pred_region
      // Predicated region
      $region29: #{decoder_forward.11} parent=27 // pred_check
        %p178 = pneg %p44
      $region30: #{decoder_forward.11} parent=27 // pred_check_branch
        %180 = sbr.rel (%p178) target = $region32
      $region31: #{decoder_forward.11} parent=27 // pred_region
        %s181 = smul.u32 32, %s17
        %p182 = scmp.lt.s32.totalorder %s181, 63
        %s183 = scalar_select %p182, %s181, 63
        %p184 = scmp.lt.s32.totalorder %s18, 0
        %s185 = scalar_select %p184, %s18, 0
        %s186 = sadd.s32 %s185, %s183
        %s187 = smul.addr %s186, 4
        %s188 = scalar_lea.vmem %s0, %s187
        %s189 = smul.u32 32, %s17
      $region32: #{decoder_forward.11} parent=27 // pred_fallthru
        _
    $region28: #{decoder_forward.11} parent=5 // pred_fallthru
      _
    %p190 = scmp.le.s32.totalorder 1, %s10
    %p191 = scmp.lt.s32.totalorder %s10, 3
    %p192 = pnand %p190, %p191
    %p193 = pneg %p192
    // Predicated region
    $region33: #{decoder_forward.11} parent=5 // pred_check
      _
    $region34: #{decoder_forward.11} parent=5 // pred_check_branch
      %195 = sbr.rel (%p192) target = $region36
    $region35: #{decoder_forward.11} parent=5 // pred_region
      %s196 = ssub.s32 %s10, 1
      %s197 = smul.u32 32, %s19
      %p198 = scmp.lt.s32.totalorder %s197, 63
      %s199 = scalar_select %p198, %s197, 63
      %p200 = scmp.lt.s32.totalorder %s20, 0
      %s201 = scalar_select %p200, %s20, 0
      %s202 = sadd.s32 %s201, %s199
      %s203 = smul.addr %s202, 4
      %s204 = scalar_lea.vmem %s0, %s203
      %p205 = pneg %p50
      %p206 = pneg %p47
      %s207 = smul.u32 5, %s20
      %p208 = scmp.lt.s32.totalorder %s207, 4
      %s209 = scalar_select %p208, %s207, 4
      %s210 = smul.addr %s209, 4
      %s211 = scalar_lea.vmem %s1, %s210
      %p212 = pneg %p76
      %p213 = pneg %p73
      %p214 = pneg %p97
      %p215 = pneg %p94
      %p216 = pneg %p118
      %p217 = pneg %p115
      %p218 = pneg %p144
      %p219 = pneg %p141
      %s220 = smul.u32 32, %s19
      %p221 = scmp.lt.s32.totalorder %s220, 63
      %s222 = scalar_select %p221, %s220, 63
      %s223 = smul.addr %s222, 8
      %s224 = scalar_lea.vmem %s4, %s223
      %s225 = smul.u32 32, %s19
      %p226 = scmp.lt.s32.totalorder %s225, 63
      %s227 = scalar_select %p226, %s225, 63
      %p228 = scmp.lt.s32.totalorder %s20, 0
      %s229 = scalar_select %p228, %s20, 0
      %s230 = sadd.s32 %s229, %s227
      %s231 = smul.addr %s230, 4
      %s232 = scalar_lea.vmem %s0, %s231
      %s233 = smul.u32 32, %s19
      %s234 = smul.u32 5, %s20
      %p235 = scmp.lt.s32.totalorder %s234, 4
      %s236 = scalar_select %p235, %s234, 4
      %s237 = smul.addr %s236, 4
      %s238 = scalar_lea.vmem %s1, %s237
      %s239 = smul.u32 5, %s20
      %s240 = smul.u32 32, %s19
      %p241 = scmp.lt.s32.totalorder %s240, 63
      %s242 = scalar_select %p241, %s240, 63
      %s243 = smul.addr %s242, 8
      %s244 = scalar_lea.vmem %s4, %s243
      %s245 = smul.u32 32, %s19
      %p247 = scmp.eq.s32.totalorder %s20, 0
      // Predicated region
      $region37: #{decoder_forward.11} parent=35 // pred_check
        %p248 = pneg %p247
      $region38: #{decoder_forward.11} parent=35 // pred_check_branch
        %250 = sbr.rel (%p248) target = $region40
      $region39: #{decoder_forward.11} parent=35 // pred_region
        %vm251 = vcmask 97280
        %252 = vst.msk [vmem:[#allocation2] sm:$0xff] %vm251, 0.0
        %253 = vst.msk [vmem:[#allocation2 + $0x8] sm:$0xff] %vm251, 0.0
        %254 = vst.msk [vmem:[#allocation2 + $0x10] sm:$0xff] %vm251, 0.0
        %255 = vst.msk [vmem:[#allocation2 + $0x18] sm:$0xff] %vm251, 0.0
        %256 = vst.msk [vmem:[#allocation2 + $0x20] sm:$0xff] %vm251, 0.0
        %257 = vst.msk [vmem:[#allocation2 + $0x28] sm:$0xff] %vm251, 0.0
        %258 = vst.msk [vmem:[#allocation2 + $0x30] sm:$0xff] %vm251, 0.0
        %259 = vst.msk [vmem:[#allocation2 + $0x38] sm:$0xff] %vm251, 0.0
        %260 = vst.msk [vmem:[#allocation2 + $0x40] sm:$0xff] %vm251, 0.0
        %261 = vst.msk [vmem:[#allocation2 + $0x48] sm:$0xff] %vm251, 0.0
        %262 = vst.msk [vmem:[#allocation2 + $0x50] sm:$0xff] %vm251, 0.0
        %263 = vst.msk [vmem:[#allocation2 + $0x58] sm:$0xff] %vm251, 0.0
        %264 = vst.msk [vmem:[#allocation2 + $0x60] sm:$0xff] %vm251, 0.0
        %265 = vst.msk [vmem:[#allocation2 + $0x68] sm:$0xff] %vm251, 0.0
        %266 = vst.msk [vmem:[#allocation2 + $0x70] sm:$0xff] %vm251, 0.0
        %267 = vst.msk [vmem:[#allocation2 + $0x78] sm:$0xff] %vm251, 0.0
        %268 = vst.msk [vmem:[#allocation2 + $0x80] sm:$0xff] %vm251, 0.0
        %269 = vst.msk [vmem:[#allocation2 + $0x88] sm:$0xff] %vm251, 0.0
        %270 = vst.msk [vmem:[#allocation2 + $0x90] sm:$0xff] %vm251, 0.0
        %271 = vst.msk [vmem:[#allocation2 + $0x98] sm:$0xff] %vm251, 0.0
        %272 = vst.msk [vmem:[#allocation2 + $0xa0] sm:$0xff] %vm251, 0.0
        %273 = vst.msk [vmem:[#allocation2 + $0xa8] sm:$0xff] %vm251, 0.0
        %274 = vst.msk [vmem:[#allocation2 + $0xb0] sm:$0xff] %vm251, 0.0
        %275 = vst.msk [vmem:[#allocation2 + $0xb8] sm:$0xff] %vm251, 0.0
        %276 = vst.msk [vmem:[#allocation2 + $0xc0] sm:$0xff] %vm251, 0.0
        %277 = vst.msk [vmem:[#allocation2 + $0xc8] sm:$0xff] %vm251, 0.0
        %278 = vst.msk [vmem:[#allocation2 + $0xd0] sm:$0xff] %vm251, 0.0
        %279 = vst.msk [vmem:[#allocation2 + $0xd8] sm:$0xff] %vm251, 0.0
        %280 = vst.msk [vmem:[#allocation2 + $0xe0] sm:$0xff] %vm251, 0.0
        %281 = vst.msk [vmem:[#allocation2 + $0xe8] sm:$0xff] %vm251, 0.0
        %282 = vst.msk [vmem:[#allocation2 + $0xf0] sm:$0xff] %vm251, 0.0
        %283 = vst.msk [vmem:[#allocation2 + $0xf8] sm:$0xff] %vm251, 0.0
      $region40: #{decoder_forward.11} parent=35 // pred_fallthru
        _
      %v284 = vld [vmem:[#allocation2] sm:$0xff]
      %v285 = vld [vmem:[#allocation2 + $0x8] sm:$0xff]
      %v286 = vld [vmem:[#allocation2 + $0x10] sm:$0xff]
      %v287 = vld [vmem:[#allocation2 + $0x18] sm:$0xff]
      %v288 = vld [vmem:[#allocation2 + $0x20] sm:$0xff]
      %v289 = vld [vmem:[#allocation2 + $0x28] sm:$0xff]
      %v290 = vld [vmem:[#allocation2 + $0x30] sm:$0xff]
      %v291 = vld [vmem:[#allocation2 + $0x38] sm:$0xff]
      %v292 = vld [vmem:[#allocation2 + $0x40] sm:$0xff]
      %v293 = vld [vmem:[#allocation2 + $0x48] sm:$0xff]
      %v294 = vld [vmem:[#allocation2 + $0x50] sm:$0xff]
      %v295 = vld [vmem:[#allocation2 + $0x58] sm:$0xff]
      %v296 = vld [vmem:[#allocation2 + $0x60] sm:$0xff]
      %v297 = vld [vmem:[#allocation2 + $0x68] sm:$0xff]
      %v298 = vld [vmem:[#allocation2 + $0x70] sm:$0xff]
      %v299 = vld [vmem:[#allocation2 + $0x78] sm:$0xff]
      %v300 = vld [vmem:[#allocation2 + $0x80] sm:$0xff]
      %v301 = vld [vmem:[#allocation2 + $0x88] sm:$0xff]
      %v302 = vld [vmem:[#allocation2 + $0x90] sm:$0xff]
      %v303 = vld [vmem:[#allocation2 + $0x98] sm:$0xff]
      %v304 = vld [vmem:[#allocation2 + $0xa0] sm:$0xff]
      %v305 = vld [vmem:[#allocation2 + $0xa8] sm:$0xff]
      %v306 = vld [vmem:[#allocation2 + $0xb0] sm:$0xff]
      %v307 = vld [vmem:[#allocation2 + $0xb8] sm:$0xff]
      %v308 = vld [vmem:[#allocation2 + $0xc0] sm:$0xff]
      %v309 = vld [vmem:[#allocation2 + $0xc8] sm:$0xff]
      %v310 = vld [vmem:[#allocation2 + $0xd0] sm:$0xff]
      %v311 = vld [vmem:[#allocation2 + $0xd8] sm:$0xff]
      %v312 = vld [vmem:[#allocation2 + $0xe0] sm:$0xff]
      %v313 = vld [vmem:[#allocation2 + $0xe8] sm:$0xff]
      %v314 = vld [vmem:[#allocation2 + $0xf0] sm:$0xff]
      %v315 = vld [vmem:[#allocation2 + $0xf8] sm:$0xff]
      %v316 = vld [vmem:[%s232] sm:$0xf]
      %v317 = vld [vmem:[%s232 + $0x4] sm:$0xf]
      %v318 = vld [vmem:[%s232 + $0x8] sm:$0xf]
      %v319 = vld [vmem:[%s232 + $0xc] sm:$0xf]
      %v320 = vld [vmem:[%s232 + $0x10] sm:$0xf]
      %v321 = vld [vmem:[%s232 + $0x14] sm:$0xf]
      %v322 = vld [vmem:[%s232 + $0x18] sm:$0xf]
      %v323 = vld [vmem:[%s232 + $0x1c] sm:$0xf]
      %v324 = vld [vmem:[%s232 + $0x20] sm:$0xf]
      %v325 = vld [vmem:[%s232 + $0x24] sm:$0xf]
      %v326 = vld [vmem:[%s232 + $0x28] sm:$0xf]
      %v327 = vld [vmem:[%s232 + $0x2c] sm:$0xf]
      %v328 = vld [vmem:[%s232 + $0x30] sm:$0xf]
      %v329 = vld [vmem:[%s232 + $0x34] sm:$0xf]
      %v330 = vld [vmem:[%s232 + $0x38] sm:$0xf]
      %v331 = vld [vmem:[%s232 + $0x3c] sm:$0xf]
      %v332 = vld [vmem:[%s232 + $0x40] sm:$0xf]
      %v333 = vld [vmem:[%s232 + $0x44] sm:$0xf]
      %v334 = vld [vmem:[%s232 + $0x48] sm:$0xf]
      %v335 = vld [vmem:[%s232 + $0x4c] sm:$0xf]
      %v336 = vld [vmem:[%s232 + $0x50] sm:$0xf]
      %v337 = vld [vmem:[%s232 + $0x54] sm:$0xf]
      %v338 = vld [vmem:[%s232 + $0x58] sm:$0xf]
      %v339 = vld [vmem:[%s232 + $0x5c] sm:$0xf]
      %v340 = vld [vmem:[%s232 + $0x60] sm:$0xf]
      %v341 = vld [vmem:[%s232 + $0x64] sm:$0xf]
      %v342 = vld [vmem:[%s232 + $0x68] sm:$0xf]
      %v343 = vld [vmem:[%s232 + $0x6c] sm:$0xf]
      %v344 = vld [vmem:[%s232 + $0x70] sm:$0xf]
      %v345 = vld [vmem:[%s232 + $0x74] sm:$0xf]
      %v346 = vld [vmem:[%s232 + $0x78] sm:$0xf]
      %v347 = vld [vmem:[%s232 + $0x7c] sm:$0xf]
      %v348 = vld [vmem:[%s238] sm:$0xf]
      %v349 = vld [vmem:[%s238 + $0x4] sm:$0xf]
      %v350 = vld [vmem:[%s238 + $0x8] sm:$0xf]
      %v351 = vld [vmem:[%s238 + $0xc] sm:$0xf]
      %v352 = vld [vmem:[%s238 + $0x10] sm:$0x3]
      %v385 = vunpack.c.l.b16 %v316
      %v386 = vunpack.c.l.b16 %v317
      %v387 = vunpack.c.l.b16 %v318
      %v388 = vunpack.c.l.b16 %v319
      %v389 = vunpack.c.l.b16 %v320
      %v390 = vunpack.c.l.b16 %v321
      %v391 = vunpack.c.l.b16 %v322
      %v392 = vunpack.c.l.b16 %v323
      %v393 = vunpack.c.l.b16 %v324
      %v394 = vunpack.c.l.b16 %v325
      %v395 = vunpack.c.l.b16 %v326
      %v396 = vunpack.c.l.b16 %v327
      %v397 = vunpack.c.l.b16 %v328
      %v398 = vunpack.c.l.b16 %v329
      %v399 = vunpack.c.l.b16 %v330
      %v400 = vunpack.c.l.b16 %v331
      %v401 = vunpack.c.l.b16 %v332
      %v402 = vunpack.c.l.b16 %v333
      %v403 = vunpack.c.l.b16 %v334
      %v404 = vunpack.c.l.b16 %v335
      %v405 = vunpack.c.l.b16 %v336
      %v406 = vunpack.c.l.b16 %v337
      %v407 = vunpack.c.l.b16 %v338
      %v408 = vunpack.c.l.b16 %v339
      %v409 = vunpack.c.l.b16 %v340
      %v410 = vunpack.c.l.b16 %v341
      %v411 = vunpack.c.l.b16 %v342
      %v412 = vunpack.c.l.b16 %v343
      %v413 = vunpack.c.l.b16 %v344
      %v414 = vunpack.c.l.b16 %v345
      %v415 = vunpack.c.l.b16 %v346
      %v416 = vunpack.c.l.b16 %v347
      %v417 = vpack.c.b16 %v386, %v385
      %v418 = vpack.c.b16 %v388, %v387
      %v419 = vpack.c.b16 %v390, %v389
      %v420 = vpack.c.b16 %v392, %v391
      %v421 = vpack.c.b16 %v394, %v393
      %v422 = vpack.c.b16 %v396, %v395
      %v423 = vpack.c.b16 %v398, %v397
      %v424 = vpack.c.b16 %v400, %v399
      %v425 = vpack.c.b16 %v402, %v401
      %v426 = vpack.c.b16 %v404, %v403
      %v427 = vpack.c.b16 %v406, %v405
      %v428 = vpack.c.b16 %v408, %v407
      %v429 = vpack.c.b16 %v410, %v409
      %v430 = vpack.c.b16 %v412, %v411
      %v431 = vpack.c.b16 %v414, %v413
      %v432 = vpack.c.b16 %v416, %v415
      %v438 = vunpack.c.l.b16 %v348
      %v439 = vunpack.c.l.b16 %v349
      %v440 = vunpack.c.l.b16 %v350
      %v441 = vunpack.c.l.b16 %v351
      %v442 = vunpack.c.l.b16 %v352
      %v443 = vpack.c.b16 %v439, %v438
      %v444 = vpack.c.b16 %v441, %v440
      %v445 = vpack.c.b16 %v442, %v442
      %vm448 = vcmask 293888
      %v450 = vsel %vm448, %v417, 0
      %v453 = vsel %vm448, %v418, 0
      %v456 = vsel %vm448, %v419, 0
      %v459 = vsel %vm448, %v420, 0
      %v462 = vsel %vm448, %v421, 0
      %v465 = vsel %vm448, %v422, 0
      %v468 = vsel %vm448, %v423, 0
      %v471 = vsel %vm448, %v424, 0
      %v474 = vsel %vm448, %v425, 0
      %v477 = vsel %vm448, %v426, 0
      %v480 = vsel %vm448, %v427, 0
      %v483 = vsel %vm448, %v428, 0
      %v486 = vsel %vm448, %v429, 0
      %v489 = vsel %vm448, %v430, 0
      %v492 = vsel %vm448, %v431, 0
      %v495 = vsel %vm448, %v432, 0
      %vm497 = vcmask 1041408
      %v499 = vsel %vm497, %v445, 0
      %501 = vmatprep.subr.bf16.mxu0 0
      %502 = vmatpush1.bf16.msra.mxu0 %v443
      %503 = vmatprep.subr.bf16.mxu0 0
      %504 = vmatpush1.bf16.msra.mxu0 %v444
      %505 = vmatprep.subr.bf16.mxu0 0
      %506 = vmatpush1.bf16.msra.mxu0 %v499
      %507 = vmatprep.subr.bf16.mxu0 0
      %508 = vmatpush1.bf16.msra.mxu0 0
      %509 = vmatprep.subr.bf16.mxu0 0
      %510 = vmatpush1.bf16.msra.mxu0 0
      %511 = vmatprep.subr.bf16.mxu0 0
      %512 = vmatpush1.bf16.msra.mxu0 0
      %513 = vmatprep.subr.bf16.mxu0 0
      %514 = vmatpush1.bf16.msra.mxu0 0
      %515 = vmatprep.subr.bf16.mxu0 0
      %516 = vmatpush1.bf16.msra.mxu0 0
      %517 = vmatprep.subr.bf16.mxu0 0
      %518 = vmatpush1.bf16.msra.mxu0 0
      %519 = vmatprep.subr.bf16.mxu0 0
      %520 = vmatpush1.bf16.msra.mxu0 0
      %521 = vmatprep.subr.bf16.mxu0 0
      %522 = vmatpush1.bf16.msra.mxu0 0
      %523 = vmatprep.subr.bf16.mxu0 0
      %524 = vmatpush1.bf16.msra.mxu0 0
      %525 = vmatprep.subr.bf16.mxu0 0
      %526 = vmatpush1.bf16.msra.mxu0 0
      %527 = vmatprep.subr.bf16.mxu0 0
      %528 = vmatpush1.bf16.msra.mxu0 0
      %529 = vmatprep.subr.bf16.mxu0 0
      %530 = vmatpush1.bf16.msra.mxu0 0
      %531 = vmatprep.subr.bf16.mxu0 0
      %532 = vmatpush1.bf16.msra.mxu0 0
      %533 = vmatprep.mubr.bf16.mxu0 0
      %534 = vmatmul.mubr.bf16.gmra.mrb[0].mxu0 %v450
      %v535 = vpop.f32.mrb[0].mxu0
      %v536 = vadd.f32 0.0, %v535
      %v537 = vpop.f32.mrb[0].mxu0
      %v538 = vpop.f32.mrb[0].mxu0
      %v539 = vadd.f32 0.0, %v538
      %v540 = vpop.f32.mrb[0].mxu0
      %541 = vmatprep.mubr.bf16.mxu0 0
      %542 = vmatmul.mubr.bf16.gmra.mrb[0].mxu0 %v453
      %v543 = vpop.f32.mrb[0].mxu0
      %v544 = vadd.f32 0.0, %v543
      %v545 = vpop.f32.mrb[0].mxu0
      %v546 = vpop.f32.mrb[0].mxu0
      %v547 = vadd.f32 0.0, %v546
      %v548 = vpop.f32.mrb[0].mxu0
      %549 = vmatprep.mubr.bf16.mxu0 0
      %550 = vmatmul.mubr.bf16.gmra.mrb[0].mxu0 %v456
      %v551 = vpop.f32.mrb[0].mxu0
      %v552 = vadd.f32 0.0, %v551
      %v553 = vpop.f32.mrb[0].mxu0
      %v554 = vpop.f32.mrb[0].mxu0
      %v555 = vadd.f32 0.0, %v554
      %v556 = vpop.f32.mrb[0].mxu0
      %557 = vmatprep.mubr.bf16.mxu0 0
      %558 = vmatmul.mubr.bf16.gmra.mrb[0].mxu0 %v459
      %v559 = vpop.f32.mrb[0].mxu0
      %v560 = vadd.f32 0.0, %v559
      %v561 = vpop.f32.mrb[0].mxu0
      %v562 = vpop.f32.mrb[0].mxu0
      %v563 = vadd.f32 0.0, %v562
      %v564 = vpop.f32.mrb[0].mxu0
      %565 = vmatprep.mubr.bf16.mxu0 0
      %566 = vmatmul.mubr.bf16.gmra.mrb[0].mxu0 %v462
      %v567 = vpop.f32.mrb[0].mxu0
      %v568 = vadd.f32 0.0, %v567
      %v569 = vpop.f32.mrb[0].mxu0
      %v570 = vpop.f32.mrb[0].mxu0
      %v571 = vadd.f32 0.0, %v570
      %v572 = vpop.f32.mrb[0].mxu0
      %573 = vmatprep.mubr.bf16.mxu0 0
      %574 = vmatmul.mubr.bf16.gmra.mrb[0].mxu0 %v465
      %v575 = vpop.f32.mrb[0].mxu0
      %v576 = vadd.f32 0.0, %v575
      %v577 = vpop.f32.mrb[0].mxu0
      %v578 = vpop.f32.mrb[0].mxu0
      %v579 = vadd.f32 0.0, %v578
      %v580 = vpop.f32.mrb[0].mxu0
      %581 = vmatprep.mubr.bf16.mxu0 0
      %582 = vmatmul.mubr.bf16.gmra.mrb[0].mxu0 %v468
      %v583 = vpop.f32.mrb[0].mxu0
      %v584 = vadd.f32 0.0, %v583
      %v585 = vpop.f32.mrb[0].mxu0
      %v586 = vpop.f32.mrb[0].mxu0
      %v587 = vadd.f32 0.0, %v586
      %v588 = vpop.f32.mrb[0].mxu0
      %589 = vmatprep.mubr.bf16.mxu0 0
      %590 = vmatmul.mubr.bf16.gmra.mrb[0].mxu0 %v471
      %v591 = vpop.f32.mrb[0].mxu0
      %v592 = vadd.f32 0.0, %v591
      %v593 = vpop.f32.mrb[0].mxu0
      %v594 = vpop.f32.mrb[0].mxu0
      %v595 = vadd.f32 0.0, %v594
      %v596 = vpop.f32.mrb[0].mxu0
      %597 = vmatprep.mubr.bf16.mxu0 0
      %598 = vmatmul.mubr.bf16.gmra.mrb[0].mxu0 %v474
      %v599 = vpop.f32.mrb[0].mxu0
      %v600 = vadd.f32 0.0, %v599
      %v601 = vpop.f32.mrb[0].mxu0
      %v602 = vpop.f32.mrb[0].mxu0
      %v603 = vadd.f32 0.0, %v602
      %v604 = vpop.f32.mrb[0].mxu0
      %605 = vmatprep.mubr.bf16.mxu0 0
      %606 = vmatmul.mubr.bf16.gmra.mrb[0].mxu0 %v477
      %v607 = vpop.f32.mrb[0].mxu0
      %v608 = vadd.f32 0.0, %v607
      %v609 = vpop.f32.mrb[0].mxu0
      %v610 = vpop.f32.mrb[0].mxu0
      %v611 = vadd.f32 0.0, %v610
      %v612 = vpop.f32.mrb[0].mxu0
      %613 = vmatprep.mubr.bf16.mxu0 0
      %614 = vmatmul.mubr.bf16.gmra.mrb[0].mxu0 %v480
      %v615 = vpop.f32.mrb[0].mxu0
      %v616 = vadd.f32 0.0, %v615
      %v617 = vpop.f32.mrb[0].mxu0
      %v618 = vpop.f32.mrb[0].mxu0
      %v619 = vadd.f32 0.0, %v618
      %v620 = vpop.f32.mrb[0].mxu0
      %621 = vmatprep.mubr.bf16.mxu0 0
      %622 = vmatmul.mubr.bf16.gmra.mrb[0].mxu0 %v483
      %v623 = vpop.f32.mrb[0].mxu0
      %v624 = vadd.f32 0.0, %v623
      %v625 = vpop.f32.mrb[0].mxu0
      %v626 = vpop.f32.mrb[0].mxu0
      %v627 = vadd.f32 0.0, %v626
      %v628 = vpop.f32.mrb[0].mxu0
      %629 = vmatprep.mubr.bf16.mxu0 0
      %630 = vmatmul.mubr.bf16.gmra.mrb[0].mxu0 %v486
      %v631 = vpop.f32.mrb[0].mxu0
      %v632 = vadd.f32 0.0, %v631
      %v633 = vpop.f32.mrb[0].mxu0
      %v634 = vpop.f32.mrb[0].mxu0
      %v635 = vadd.f32 0.0, %v634
      %v636 = vpop.f32.mrb[0].mxu0
      %637 = vmatprep.mubr.bf16.mxu0 0
      %638 = vmatmul.mubr.bf16.gmra.mrb[0].mxu0 %v489
      %v639 = vpop.f32.mrb[0].mxu0
      %v640 = vadd.f32 0.0, %v639
      %v641 = vpop.f32.mrb[0].mxu0
      %v642 = vpop.f32.mrb[0].mxu0
      %v643 = vadd.f32 0.0, %v642
      %v644 = vpop.f32.mrb[0].mxu0
      %645 = vmatprep.mubr.bf16.mxu0 0
      %646 = vmatmul.mubr.bf16.gmra.mrb[0].mxu0 %v492
      %v647 = vpop.f32.mrb[0].mxu0
      %v648 = vadd.f32 0.0, %v647
      %v649 = vpop.f32.mrb[0].mxu0
      %v650 = vpop.f32.mrb[0].mxu0
      %v651 = vadd.f32 0.0, %v650
      %v652 = vpop.f32.mrb[0].mxu0
      %653 = vmatprep.mubr.bf16.mxu0 0
      %654 = vmatmul.mubr.bf16.gmra.mrb[0].mxu0 %v495
      %v655 = vpop.f32.mrb[0].mxu0
      %v656 = vadd.f32 0.0, %v655
      %v657 = vpop.f32.mrb[0].mxu0
      %v658 = vpop.f32.mrb[0].mxu0
      %v659 = vadd.f32 0.0, %v658
      %v660 = vpop.f32.mrb[0].mxu0
      %661 = vdwg.mxu0
      %v662 = vadd.f32 %v284, %v536
      %v663 = vadd.f32 %v285, %v539
      %v664 = vadd.f32 %v286, %v544
      %v665 = vadd.f32 %v287, %v547
      %v666 = vadd.f32 %v288, %v552
      %v667 = vadd.f32 %v289, %v555
      %v668 = vadd.f32 %v290, %v560
      %v669 = vadd.f32 %v291, %v563
      %v670 = vadd.f32 %v292, %v568
      %v671 = vadd.f32 %v293, %v571
      %v672 = vadd.f32 %v294, %v576
      %v673 = vadd.f32 %v295, %v579
      %v674 = vadd.f32 %v296, %v584
      %v675 = vadd.f32 %v297, %v587
      %v676 = vadd.f32 %v298, %v592
      %v677 = vadd.f32 %v299, %v595
      %v678 = vadd.f32 %v300, %v600
      %v679 = vadd.f32 %v301, %v603
      %v680 = vadd.f32 %v302, %v608
      %v681 = vadd.f32 %v303, %v611
      %v682 = vadd.f32 %v304, %v616
      %v683 = vadd.f32 %v305, %v619
      %v684 = vadd.f32 %v306, %v624
      %v685 = vadd.f32 %v307, %v627
      %v686 = vadd.f32 %v308, %v632
      %v687 = vadd.f32 %v309, %v635
      %v688 = vadd.f32 %v310, %v640
      %v689 = vadd.f32 %v311, %v643
      %v690 = vadd.f32 %v312, %v648
      %v691 = vadd.f32 %v313, %v651
      %v692 = vadd.f32 %v314, %v656
      %v693 = vadd.f32 %v315, %v659
      %vm694 = vcmask 97280
      %695 = vst.msk [vmem:[#allocation2] sm:$0xff] %vm694, %v662
      %696 = vst.msk [vmem:[#allocation2 + $0x8] sm:$0xff] %vm694, %v663
      %697 = vst.msk [vmem:[#allocation2 + $0x10] sm:$0xff] %vm694, %v664
      %698 = vst.msk [vmem:[#allocation2 + $0x18] sm:$0xff] %vm694, %v665
      %699 = vst.msk [vmem:[#allocation2 + $0x20] sm:$0xff] %vm694, %v666
      %700 = vst.msk [vmem:[#allocation2 + $0x28] sm:$0xff] %vm694, %v667
      %701 = vst.msk [vmem:[#allocation2 + $0x30] sm:$0xff] %vm694, %v668
      %702 = vst.msk [vmem:[#allocation2 + $0x38] sm:$0xff] %vm694, %v669
      %703 = vst.msk [vmem:[#allocation2 + $0x40] sm:$0xff] %vm694, %v670
      %704 = vst.msk [vmem:[#allocation2 + $0x48] sm:$0xff] %vm694, %v671
      %705 = vst.msk [vmem:[#allocation2 + $0x50] sm:$0xff] %vm694, %v672
      %706 = vst.msk [vmem:[#allocation2 + $0x58] sm:$0xff] %vm694, %v673
      %707 = vst.msk [vmem:[#allocation2 + $0x60] sm:$0xff] %vm694, %v674
      %708 = vst.msk [vmem:[#allocation2 + $0x68] sm:$0xff] %vm694, %v675
      %709 = vst.msk [vmem:[#allocation2 + $0x70] sm:$0xff] %vm694, %v676
      %710 = vst.msk [vmem:[#allocation2 + $0x78] sm:$0xff] %vm694, %v677
      %711 = vst.msk [vmem:[#allocation2 + $0x80] sm:$0xff] %vm694, %v678
      %712 = vst.msk [vmem:[#allocation2 + $0x88] sm:$0xff] %vm694, %v679
      %713 = vst.msk [vmem:[#allocation2 + $0x90] sm:$0xff] %vm694, %v680
      %714 = vst.msk [vmem:[#allocation2 + $0x98] sm:$0xff] %vm694, %v681
      %715 = vst.msk [vmem:[#allocation2 + $0xa0] sm:$0xff] %vm694, %v682
      %716 = vst.msk [vmem:[#allocation2 + $0xa8] sm:$0xff] %vm694, %v683
      %717 = vst.msk [vmem:[#allocation2 + $0xb0] sm:$0xff] %vm694, %v684
      %718 = vst.msk [vmem:[#allocation2 + $0xb8] sm:$0xff] %vm694, %v685
      %719 = vst.msk [vmem:[#allocation2 + $0xc0] sm:$0xff] %vm694, %v686
      %720 = vst.msk [vmem:[#allocation2 + $0xc8] sm:$0xff] %vm694, %v687
      %721 = vst.msk [vmem:[#allocation2 + $0xd0] sm:$0xff] %vm694, %v688
      %722 = vst.msk [vmem:[#allocation2 + $0xd8] sm:$0xff] %vm694, %v689
      %723 = vst.msk [vmem:[#allocation2 + $0xe0] sm:$0xff] %vm694, %v690
      %724 = vst.msk [vmem:[#allocation2 + $0xe8] sm:$0xff] %vm694, %v691
      %725 = vst.msk [vmem:[#allocation2 + $0xf0] sm:$0xff] %vm694, %v692
      %726 = vst.msk [vmem:[#allocation2 + $0xf8] sm:$0xff] %vm694, %v693
      // Predicated region
      $region41: #{decoder_forward.11} parent=35 // pred_check
        %p727 = pneg %p247
      $region42: #{decoder_forward.11} parent=35 // pred_check_branch
        %729 = sbr.rel (%p727) target = $region44
      $region43: #{decoder_forward.11} parent=35 // pred_region
        %v730 = vld [vmem:[#allocation2] sm:$0xff]
        %v731 = vld [vmem:[#allocation2 + $0x8] sm:$0xff]
        %v732 = vld [vmem:[#allocation2 + $0x10] sm:$0xff]
        %v733 = vld [vmem:[#allocation2 + $0x18] sm:$0xff]
        %v734 = vld [vmem:[#allocation2 + $0x20] sm:$0xff]
        %v735 = vld [vmem:[#allocation2 + $0x28] sm:$0xff]
        %v736 = vld [vmem:[#allocation2 + $0x30] sm:$0xff]
        %v737 = vld [vmem:[#allocation2 + $0x38] sm:$0xff]
        %v738 = vld [vmem:[#allocation2 + $0x40] sm:$0xff]
        %v739 = vld [vmem:[#allocation2 + $0x48] sm:$0xff]
        %v740 = vld [vmem:[#allocation2 + $0x50] sm:$0xff]
        %v741 = vld [vmem:[#allocation2 + $0x58] sm:$0xff]
        %v742 = vld [vmem:[#allocation2 + $0x60] sm:$0xff]
        %v743 = vld [vmem:[#allocation2 + $0x68] sm:$0xff]
        %v744 = vld [vmem:[#allocation2 + $0x70] sm:$0xff]
        %v745 = vld [vmem:[#allocation2 + $0x78] sm:$0xff]
        %v746 = vld [vmem:[#allocation2 + $0x80] sm:$0xff]
        %v747 = vld [vmem:[#allocation2 + $0x88] sm:$0xff]
        %v748 = vld [vmem:[#allocation2 + $0x90] sm:$0xff]
        %v749 = vld [vmem:[#allocation2 + $0x98] sm:$0xff]
        %v750 = vld [vmem:[#allocation2 + $0xa0] sm:$0xff]
        %v751 = vld [vmem:[#allocation2 + $0xa8] sm:$0xff]
        %v752 = vld [vmem:[#allocation2 + $0xb0] sm:$0xff]
        %v753 = vld [vmem:[#allocation2 + $0xb8] sm:$0xff]
        %v754 = vld [vmem:[#allocation2 + $0xc0] sm:$0xff]
        %v755 = vld [vmem:[#allocation2 + $0xc8] sm:$0xff]
        %v756 = vld [vmem:[#allocation2 + $0xd0] sm:$0xff]
        %v757 = vld [vmem:[#allocation2 + $0xd8] sm:$0xff]
        %v758 = vld [vmem:[#allocation2 + $0xe0] sm:$0xff]
        %v759 = vld [vmem:[#allocation2 + $0xe8] sm:$0xff]
        %v760 = vld [vmem:[#allocation2 + $0xf0] sm:$0xff]
        %v761 = vld [vmem:[#allocation2 + $0xf8] sm:$0xff]
        %v762 = vld [vmem:[%s2] sm:$0x1]
        %v764 = vlaneseq
        %v765 = vshrl.u32 %v764, 7
        %v766 = vsub.s32 0, %v765
        %v767 = vrot.slane %v762, %v766
        %v769 = vmul.f32 %v730, %v767
        %v770 = vmul.f32 %v731, %v767
        %v771 = vmul.f32 %v732, %v767
        %v772 = vmul.f32 %v733, %v767
        %v773 = vmul.f32 %v734, %v767
        %v774 = vmul.f32 %v735, %v767
        %v775 = vmul.f32 %v736, %v767
        %v776 = vmul.f32 %v737, %v767
        %v777 = vmul.f32 %v738, %v767
        %v778 = vmul.f32 %v739, %v767
        %v779 = vmul.f32 %v740, %v767
        %v780 = vmul.f32 %v741, %v767
        %v781 = vmul.f32 %v742, %v767
        %v782 = vmul.f32 %v743, %v767
        %v783 = vmul.f32 %v744, %v767
        %v784 = vmul.f32 %v745, %v767
        %v785 = vmul.f32 %v746, %v767
        %v786 = vmul.f32 %v747, %v767
        %v787 = vmul.f32 %v748, %v767
        %v788 = vmul.f32 %v749, %v767
        %v789 = vmul.f32 %v750, %v767
        %v790 = vmul.f32 %v751, %v767
        %v791 = vmul.f32 %v752, %v767
        %v792 = vmul.f32 %v753, %v767
        %v793 = vmul.f32 %v754, %v767
        %v794 = vmul.f32 %v755, %v767
        %v795 = vmul.f32 %v756, %v767
        %v796 = vmul.f32 %v757, %v767
        %v797 = vmul.f32 %v758, %v767
        %v798 = vmul.f32 %v759, %v767
        %v799 = vmul.f32 %v760, %v767
        %v800 = vmul.f32 %v761, %v767
        %v801 = vld [vmem:[%s3] sm:$0x1]
        %v803 = vlaneseq
        %v804 = vshrl.u32 %v803, 7
        %v805 = vsub.s32 0, %v804
        %v806 = vrot.slane %v801, %v805
        %v808 = vadd.f32 %v769, %v806
        %v809 = vadd.f32 %v770, %v806
        %v810 = vadd.f32 %v771, %v806
        %v811 = vadd.f32 %v772, %v806
        %v812 = vadd.f32 %v773, %v806
        %v813 = vadd.f32 %v774, %v806
        %v814 = vadd.f32 %v775, %v806
        %v815 = vadd.f32 %v776, %v806
        %v816 = vadd.f32 %v777, %v806
        %v817 = vadd.f32 %v778, %v806
        %v818 = vadd.f32 %v779, %v806
        %v819 = vadd.f32 %v780, %v806
        %v820 = vadd.f32 %v781, %v806
        %v821 = vadd.f32 %v782, %v806
        %v822 = vadd.f32 %v783, %v806
        %v823 = vadd.f32 %v784, %v806
        %v824 = vadd.f32 %v785, %v806
        %v825 = vadd.f32 %v786, %v806
        %v826 = vadd.f32 %v787, %v806
        %v827 = vadd.f32 %v788, %v806
        %v828 = vadd.f32 %v789, %v806
        %v829 = vadd.f32 %v790, %v806
        %v830 = vadd.f32 %v791, %v806
        %v831 = vadd.f32 %v792, %v806
        %v832 = vadd.f32 %v793, %v806
        %v833 = vadd.f32 %v794, %v806
        %v834 = vadd.f32 %v795, %v806
        %v835 = vadd.f32 %v796, %v806
        %v836 = vadd.f32 %v797, %v806
        %v837 = vadd.f32 %v798, %v806
        %v838 = vadd.f32 %v799, %v806
        %v839 = vadd.f32 %v800, %v806
        %840 = vst.msk [vmem:[%s244] sm:$0xff] %vm694, %v808
        %841 = vst.msk [vmem:[%s244 + $0x8] sm:$0xff] %vm694, %v809
        %842 = vst.msk [vmem:[%s244 + $0x10] sm:$0xff] %vm694, %v810
        %843 = vst.msk [vmem:[%s244 + $0x18] sm:$0xff] %vm694, %v811
        %844 = vst.msk [vmem:[%s244 + $0x20] sm:$0xff] %vm694, %v812
        %845 = vst.msk [vmem:[%s244 + $0x28] sm:$0xff] %vm694, %v813
        %846 = vst.msk [vmem:[%s244 + $0x30] sm:$0xff] %vm694, %v814
        %847 = vst.msk [vmem:[%s244 + $0x38] sm:$0xff] %vm694, %v815
        %848 = vst.msk [vmem:[%s244 + $0x40] sm:$0xff] %vm694, %v816
        %849 = vst.msk [vmem:[%s244 + $0x48] sm:$0xff] %vm694, %v817
        %850 = vst.msk [vmem:[%s244 + $0x50] sm:$0xff] %vm694, %v818
        %851 = vst.msk [vmem:[%s244 + $0x58] sm:$0xff] %vm694, %v819
        %852 = vst.msk [vmem:[%s244 + $0x60] sm:$0xff] %vm694, %v820
        %853 = vst.msk [vmem:[%s244 + $0x68] sm:$0xff] %vm694, %v821
        %854 = vst.msk [vmem:[%s244 + $0x70] sm:$0xff] %vm694, %v822
        %855 = vst.msk [vmem:[%s244 + $0x78] sm:$0xff] %vm694, %v823
        %856 = vst.msk [vmem:[%s244 + $0x80] sm:$0xff] %vm694, %v824
        %857 = vst.msk [vmem:[%s244 + $0x88] sm:$0xff] %vm694, %v825
        %858 = vst.msk [vmem:[%s244 + $0x90] sm:$0xff] %vm694, %v826
        %859 = vst.msk [vmem:[%s244 + $0x98] sm:$0xff] %vm694, %v827
        %860 = vst.msk [vmem:[%s244 + $0xa0] sm:$0xff] %vm694, %v828
        %861 = vst.msk [vmem:[%s244 + $0xa8] sm:$0xff] %vm694, %v829
        %862 = vst.msk [vmem:[%s244 + $0xb0] sm:$0xff] %vm694, %v830
        %863 = vst.msk [vmem:[%s244 + $0xb8] sm:$0xff] %vm694, %v831
        %864 = vst.msk [vmem:[%s244 + $0xc0] sm:$0xff] %vm694, %v832
        %865 = vst.msk [vmem:[%s244 + $0xc8] sm:$0xff] %vm694, %v833
        %866 = vst.msk [vmem:[%s244 + $0xd0] sm:$0xff] %vm694, %v834
        %867 = vst.msk [vmem:[%s244 + $0xd8] sm:$0xff] %vm694, %v835
        %868 = vst.msk [vmem:[%s244 + $0xe0] sm:$0xff] %vm694, %v836
        %869 = vst.msk [vmem:[%s244 + $0xe8] sm:$0xff] %vm694, %v837
        %870 = vst.msk [vmem:[%s244 + $0xf0] sm:$0xff] %vm694, %v838
        %871 = vst.msk [vmem:[%s244 + $0xf8] sm:$0xff] %vm694, %v839
      $region44: #{decoder_forward.11} parent=35 // pred_fallthru
        _
      %s872 = smul.u32 32, %s19
      %p873 = scmp.lt.s32.totalorder %s872, 63
      %s874 = scalar_select %p873, %s872, 63
      %s875 = smul.addr %s874, 8
      %s876 = scalar_lea.vmem %s4, %s875
      // Predicated region
      $region45: #{decoder_forward.11} parent=35 // pred_check
        %p877 = pneg %p141
      $region46: #{decoder_forward.11} parent=35 // pred_check_branch
        %879 = sbr.rel (%p877) target = $region48
      $region47: #{decoder_forward.11} parent=35 // pred_region
        %s880 = smul.u32 32, %s19
      $region48: #{decoder_forward.11} parent=35 // pred_fallthru
        _
    $region36: #{decoder_forward.11} parent=5 // pred_fallthru
      _
    %p881 = scmp.le.s32.totalorder 2, %s10
    // Predicated region
    $region49: #{decoder_forward.11} parent=5 // pred_check
      %p882 = pneg %p881
    $region50: #{decoder_forward.11} parent=5 // pred_check_branch
      %884 = sbr.rel (%p882) target = $region52
    $region51: #{decoder_forward.11} parent=5 // pred_region
      %s885 = ssub.s32 %s10, 2
      // Predicated region
      $region53: #{decoder_forward.11} parent=51 // pred_check
        %p886 = pneg %p147
      $region54: #{decoder_forward.11} parent=51 // pred_check_branch
        %888 = sbr.rel (%p886) target = $region56
      $region55: #{decoder_forward.11} parent=51 // pred_region
        %s889 = smul.u32 32, %s21
        %p890 = scmp.lt.s32.totalorder %s889, 63
        %s891 = scalar_select %p890, %s889, 63
        %s892 = smul.addr %s891, 8
        %s893 = scalar_lea.vmem %s4, %s892
      $region56: #{decoder_forward.11} parent=51 // pred_fallthru
        _
    $region52: #{decoder_forward.11} parent=5 // pred_fallthru
      _
  $region6: #{decoder_forward.11} parent=0 // loop_footer
    %s14 = sadd.s32 1, %s10
  $region7: #{decoder_forward.11} parent=0 // loop_footer_branch
    %9 = sbr.rel target = $region3
  $region8: #{decoder_forward.11} parent=0 // loop_exit
    _

</llo_original>
